<compile_context>
chip_gen: v6e
topology: v6e:2x2x1
jax: 0.10.0
libtpu: 0.0.40
codegen_flags: <defaults>
</compile_context>

<pallas_src>
import functools

import jax
import jax.numpy as jnp
from jax import lax
from jax.experimental import pallas as pl
from jax.experimental.pallas import tpu as pltpu


def _round_up(x, m):
    return ((x + m - 1) // m) * m


# ------------------------------- fused kernel -----------------------------------

def _fused_lstm_kernel(x_ref, *refs, num_layers, bp, hp, tt, seq_len, mask_tail):
    """Whole model for one time block.

    x_ref      : (tt*Bp, I)        flattened input rows for this time block
    per layer  : w_ih (in, 4*Hp), w_hh (Hp, 4*Hp), b (1, 4*Hp)   (gate-padded)
    fc_w, fc_b : (Hp, Op), (1, Op)
    out_ref    : (Bp, Op)          fc(h_last_layer at t = seq_len-1), written on last step
    scratch    : h_scr (L,Bp,Hp), c_scr (L,Bp,Hp), xg_scr (tt*Bp,4*Hp),
                 [seq_a (tt*Bp,Hp), seq_b (tt*Bp,Hp)]  if num_layers > 1
    """
    idx = 0
    layer_w = []
    for _ in range(num_layers):
        layer_w.append((refs[idx], refs[idx + 1], refs[idx + 2]))
        idx += 3
    fc_w_ref, fc_b_ref = refs[idx], refs[idx + 1]
    idx += 2
    out_ref = refs[idx]
    idx += 1
    h_scr, c_scr, xg_scr = refs[idx], refs[idx + 1], refs[idx + 2]
    idx += 3
    seq_bufs = refs[idx:]            # () when num_layers == 1, else (seq_a, seq_b)

    tb = pl.program_id(0)

    @pl.when(tb == 0)
    def _():
        h_scr[...] = jnp.zeros_like(h_scr)
        c_scr[...] = jnp.zeros_like(c_scr)

    h_last = None
    for l in range(num_layers):
        w_ih_ref, w_hh_ref, b_ref = layer_w[l]
        src_ref = x_ref if l == 0 else seq_bufs[(l - 1) % 2]
        is_last = (l == num_layers - 1)
        dst_ref = None if is_last else seq_bufs[l % 2]

        # Hoisted input projection for the whole time block: one MXU matmul, M = tt*Bp.
        xg_scr[...] = (jnp.dot(src_ref[...], w_ih_ref[...],
                               preferred_element_type=jnp.float32)
                       + b_ref[...])

        w_hh = w_hh_ref[...]

        def step(i, carry, w_hh=w_hh, dst_ref=dst_ref, is_last=is_last):
            h, c = carry
            r = pl.multiple_of(i * bp, bp)
            g = xg_scr[pl.ds(r, bp), :] + jnp.dot(
                h, w_hh, preferred_element_type=jnp.float32)
            i_g = jax.nn.sigmoid(g[:, 0 * hp:1 * hp])
            f_g = jax.nn.sigmoid(g[:, 1 * hp:2 * hp])
            g_g = jnp.tanh(g[:, 2 * hp:3 * hp])
            o_g = jax.nn.sigmoid(g[:, 3 * hp:4 * hp])
            c_new = f_g * c + i_g * g_g
            h_new = o_g * jnp.tanh(c_new)
            if mask_tail:                              # freeze state on padded tail steps
                valid = (tb * tt + i) < seq_len
                h_new = jnp.where(valid, h_new, h)
                c_new = jnp.where(valid, c_new, c)
            if not is_last:                            # hand hidden seq to the next layer
                dst_ref[pl.ds(r, bp), :] = h_new
            return h_new, c_new

        h, c = lax.fori_loop(0, tt, step, (h_scr[l], c_scr[l]), unroll=True)
        h_scr[l] = h
        c_scr[l] = c
        h_last = h

    @pl.when(tb == pl.num_programs(0) - 1)
    def _():
        out_ref[...] = (jnp.dot(h_last, fc_w_ref[...],
                                preferred_element_type=jnp.float32)
                        + fc_b_ref[...]).astype(out_ref.dtype)


# ------------------------------ padding helpers ---------------------------------

def _pad_gate_matrix(w, in_pad, H, Hp):
    """(in_sz, 4*H) -> (in_pad, 4*Hp), each gate in its own 128-lane-aligned slab."""
    in_sz = w.shape[0]
    w4 = w.reshape(in_sz, 4, H)
    w4 = jnp.pad(w4, ((0, in_pad - in_sz), (0, 0), (0, Hp - H)))
    return w4.reshape(in_pad, 4 * Hp)


def _pad_gate_bias(b, H, Hp):
    """(1, 4*H) -> (1, 4*Hp) with gate-wise padding."""
    b4 = b.reshape(4, H)
    b4 = jnp.pad(b4, ((0, 0), (0, Hp - H)))
    return b4.reshape(1, 4 * Hp)


# ------------------------------ Model forward ------------------------------------

def lstm_model_forward(x_bti, params, time_block=32):
    """Equivalent of LSTM.forward: stacked LSTM over the sequence, Linear on last timestep."""
    B, T, I = x_bti.shape
    H = params["lstm"][0]["w_hh"].shape[0]
    O = params["fc_b"].shape[0]
    L = len(params["lstm"])

    Bp = _round_up(B, 8)          # full sublanes
    Hp = _round_up(H, 128)        # lane-aligned gates, unmasked stores
    Op = _round_up(O, 128)
    Tt = min(time_block, T)       # timesteps per grid step
    T_pad = _round_up(T, Tt)
    grid_t = T_pad // Tt

    # (B, T, I) -> time-major, padded, flattened to (T_pad*Bp, I)
    x = jnp.transpose(x_bti, (1, 0, 2)).astype(jnp.float32)
    x = jnp.pad(x, ((0, T_pad - T), (0, Bp - B), (0, 0)))
    x2d = x.reshape(T_pad * Bp, I)

    inputs = [x2d]
    in_specs = [pl.BlockSpec((Tt * Bp, I), lambda t: (t, 0))]
    for l, layer in enumerate(params["lstm"]):
        in_feat = I if l == 0 else Hp
        inputs += [
            _pad_gate_matrix(layer["w_ih"], in_feat, H, Hp),
            _pad_gate_matrix(layer["w_hh"], Hp, H, Hp),
            _pad_gate_bias(layer["b"], H, Hp),
        ]
        in_specs += [
            pl.BlockSpec((in_feat, 4 * Hp), lambda t: (0, 0)),
            pl.BlockSpec((Hp, 4 * Hp), lambda t: (0, 0)),
            pl.BlockSpec((1, 4 * Hp), lambda t: (0, 0)),
        ]
    fc_w_p = jnp.pad(params["fc_w"], ((0, Hp - H), (0, Op - O)))
    fc_b_p = jnp.pad(params["fc_b"], (0, Op - O)).reshape(1, Op)
    inputs += [fc_w_p, fc_b_p]
    in_specs += [pl.BlockSpec((Hp, Op), lambda t: (0, 0)),
                 pl.BlockSpec((1, Op), lambda t: (0, 0))]

    scratch = [
        pltpu.VMEM((L, Bp, Hp), jnp.float32),        # h state per layer
        pltpu.VMEM((L, Bp, Hp), jnp.float32),        # c state per layer
        pltpu.VMEM((Tt * Bp, 4 * Hp), jnp.float32),  # per-block gate inputs
    ]
    if L > 1:
        scratch += [pltpu.VMEM((Tt * Bp, Hp), jnp.float32),   # ping-pong hidden sequence
                    pltpu.VMEM((Tt * Bp, Hp), jnp.float32)]

    kernel = functools.partial(
        _fused_lstm_kernel, num_layers=L, bp=Bp, hp=Hp, tt=Tt,
        seq_len=T, mask_tail=(T_pad != T))

    flops = 0
    weight_bytes = 0
    for l in range(L):
        in_feat = I if l == 0 else Hp
        flops += 2 * T_pad * Bp * in_feat * (4 * Hp)   # input projection
        flops += 2 * T_pad * Bp * Hp * (4 * Hp)        # recurrent matmul
        flops += 10 * T_pad * Bp * Hp                  # elementwise cell update
        weight_bytes += 4 * (in_feat * 4 * Hp + Hp * 4 * Hp + 4 * Hp)
    flops += 2 * Bp * Hp * Op
    transcendentals = 5 * T_pad * Bp * Hp * L
    bytes_accessed = 4 * (T_pad * Bp * I + Bp * Op + Hp * Op + Op) + weight_bytes

    out = pl.pallas_call(
        kernel,
        out_shape=jax.ShapeDtypeStruct((Bp, Op), jnp.float32),
        grid_spec=pltpu.PrefetchScalarGridSpec(
            num_scalar_prefetch=0,
            grid=(grid_t,),
            in_specs=in_specs,
            out_specs=pl.BlockSpec((Bp, Op), lambda t: (0, 0)),  # resident, stored at end
            scratch_shapes=scratch,
        ),
        compiler_params=pltpu.CompilerParams(
            dimension_semantics=("arbitrary",)),       # sequential recurrence over time
        cost_estimate=pl.CostEstimate(
            flops=int(flops), transcendentals=int(transcendentals),
            bytes_accessed=int(bytes_accessed)),
    )(*inputs)

    return out[:B, :O]


# ------------------------------ Param init ----------------------------------------

def init_params(key, input_size, hidden_size, num_layers, output_size):
    # PyTorch nn.LSTM / nn.Linear default init: U(-1/sqrt(hidden), 1/sqrt(hidden)).
    k = float(1.0 / (hidden_size ** 0.5))
    layers = []
    for l in range(num_layers):
        in_sz = input_size if l == 0 else hidden_size
        key, k1, k2, k3, k4 = jax.random.split(key, 5)
        w_ih = jax.random.uniform(k1, (in_sz, 4 * hidden_size), jnp.float32, -k, k)
        w_hh = jax.random.uniform(k2, (hidden_size, 4 * hidden_size), jnp.float32, -k, k)
        b_ih = jax.random.uniform(k3, (4 * hidden_size,), jnp.float32, -k, k)
        b_hh = jax.random.uniform(k4, (4 * hidden_size,), jnp.float32, -k, k)
        layers.append(dict(w_ih=w_ih, w_hh=w_hh,
                           b=(b_ih + b_hh).reshape(1, 4 * hidden_size)))
    key, k5, k6 = jax.random.split(key, 3)
    fc_w = jax.random.uniform(k5, (hidden_size, output_size), jnp.float32, -k, k)
    fc_b = jax.random.uniform(k6, (output_size,), jnp.float32, -k, k)
    return dict(lstm=layers, fc_w=fc_w, fc_b=fc_b)


# ------------------------------ Pure-JAX reference --------------------------------

def _reference_forward(x_bti, params):
    x = jnp.transpose(x_bti, (1, 0, 2))              # (T, B, I)
    for layer in params["lstm"]:
        H = layer["w_hh"].shape[0]
        B = x.shape[1]
        h = jnp.zeros((B, H), jnp.float32)
        c = jnp.zeros((B, H), jnp.float32)

        def step(carry, x_t, layer=layer, H=H):
            h, c = carry
            g = x_t @ layer["w_ih"] + h @ layer["w_hh"] + layer["b"]
            i = jax.nn.sigmoid(g[:, 0 * H:1 * H])
            f = jax.nn.sigmoid(g[:, 1 * H:2 * H])
            gg = jnp.tanh(g[:, 2 * H:3 * H])
            o = jax.nn.sigmoid(g[:, 3 * H:4 * H])
            c = f * c + i * gg
            h = o * jnp.tanh(c)
            return (h, c), h

        (_, _), hs = jax.lax.scan(step, (h, c), x)
        x = hs
    return x[-1] @ params["fc_w"] + params["fc_b"]


# ------------------------------------ Main -----------------------------------------

if __name__ == "__main__":
    batch, seq_len = 2, 8
    input_size, hidden_size, num_layers, output_size = 4, 32, 2, 5

    key = jax.random.PRNGKey(0)
    key, pkey, xkey = jax.random.split(key, 3)
    params = init_params(pkey, input_size, hidden_size, num_layers, output_size)
    x = jax.random.normal(xkey, (batch, seq_len, input_size), jnp.float32)

    fwd = jax.jit(functools.partial(lstm_model_forward, time_block=32))
    out = fwd(x, params)
    jax.block_until_ready(out)
    assert out.shape == (batch, output_size), out.shape

    ref = _reference_forward(x, params)
    assert jnp.allclose(out, ref, rtol=2e-3, atol=2e-3), "mismatch vs. reference"

    print("KERNEL_OK")
</pallas_src>

<mosaic_0001>
module attributes {stable_mosaic.version = 11 : i64} {
  func.func @_fused_lstm_kernel(%arg0: i32, %arg1: memref<64x4xf32, #tpu.memory_space<vmem>>, %arg2: memref<4x512xf32, #tpu.memory_space<vmem>>, %arg3: memref<128x512xf32, #tpu.memory_space<vmem>>, %arg4: memref<1x512xf32, #tpu.memory_space<vmem>>, %arg5: memref<128x512xf32, #tpu.memory_space<vmem>>, %arg6: memref<128x512xf32, #tpu.memory_space<vmem>>, %arg7: memref<1x512xf32, #tpu.memory_space<vmem>>, %arg8: memref<128x128xf32, #tpu.memory_space<vmem>>, %arg9: memref<1x128xf32, #tpu.memory_space<vmem>>, %arg10: memref<8x128xf32, #tpu.memory_space<vmem>>, %arg11: memref<2x8x128xf32, #tpu.memory_space<vmem>>, %arg12: memref<2x8x128xf32, #tpu.memory_space<vmem>>, %arg13: memref<64x512xf32, #tpu.memory_space<vmem>>, %arg14: memref<64x128xf32, #tpu.memory_space<vmem>>, %arg15: memref<64x128xf32, #tpu.memory_space<vmem>>) attributes {dimension_semantics = [#tpu.dimension_semantics<arbitrary>], iteration_bounds = array<i64: 1>, scalar_prefetch = 0 : i64, scratch_operands = 5 : i64, tpu.core_type = #tpu.core_type<tc>, window_params = [{transform_indices = @transform_0, window_bounds = array<i64: 64, 4>}, {pipeline_mode = #tpu.pipeline_mode<synchronous>, transform_indices = @transform_1, window_bounds = array<i64: 4, 512>}, {pipeline_mode = #tpu.pipeline_mode<synchronous>, transform_indices = @transform_2, window_bounds = array<i64: 128, 512>}, {pipeline_mode = #tpu.pipeline_mode<synchronous>, transform_indices = @transform_3, window_bounds = array<i64: 1, 512>}, {pipeline_mode = #tpu.pipeline_mode<synchronous>, transform_indices = @transform_4, window_bounds = array<i64: 128, 512>}, {pipeline_mode = #tpu.pipeline_mode<synchronous>, transform_indices = @transform_5, window_bounds = array<i64: 128, 512>}, {pipeline_mode = #tpu.pipeline_mode<synchronous>, transform_indices = @transform_6, window_bounds = array<i64: 1, 512>}, {pipeline_mode = #tpu.pipeline_mode<synchronous>, transform_indices = @transform_7, window_bounds = array<i64: 128, 128>}, {pipeline_mode = #tpu.pipeline_mode<synchronous>, transform_indices = @transform_8, window_bounds = array<i64: 1, 128>}, {pipeline_mode = #tpu.pipeline_mode<synchronous>, transform_indices = @transform_9, window_bounds = array<i64: 8, 128>}]} {
    %c0_i32 = arith.constant 0 : i32
    %0 = arith.cmpi eq, %arg0, %c0_i32 : i32
    %1 = arith.extui %0 : i1 to i32
    %c0_i32_0 = arith.constant 0 : i32
    %2 = arith.cmpi ne, %1, %c0_i32_0 : i32
    scf.if %2 {
      %cst_160 = arith.constant 0.000000e+00 : f32
      %554 = vector.broadcast %cst_160 : f32 to vector<2x8x128xf32>
      %c0_161 = arith.constant 0 : index
      %c0_162 = arith.constant 0 : index
      %c0_163 = arith.constant 0 : index
      %555 = vector.load %arg11[%c0_161, %c0_162, %c0_163] : memref<2x8x128xf32, #tpu.memory_space<vmem>>, vector<2x8x128xf32>
      tpu.vector_store %arg11[%c0_161, %c0_162, %c0_163], %554 {strides = array<i32>} : memref<2x8x128xf32, #tpu.memory_space<vmem>>, vector<2x8x128xf32>,
      %cst_164 = arith.constant 0.000000e+00 : f32
      %556 = vector.broadcast %cst_164 : f32 to vector<2x8x128xf32>
      %c0_165 = arith.constant 0 : index
      %c0_166 = arith.constant 0 : index
      %c0_167 = arith.constant 0 : index
      %557 = vector.load %arg12[%c0_165, %c0_166, %c0_167] : memref<2x8x128xf32, #tpu.memory_space<vmem>>, vector<2x8x128xf32>
      tpu.vector_store %arg12[%c0_165, %c0_166, %c0_167], %556 {strides = array<i32>} : memref<2x8x128xf32, #tpu.memory_space<vmem>>, vector<2x8x128xf32>,
    } else {
    }
    %c0 = arith.constant 0 : index
    %c0_1 = arith.constant 0 : index
    %3 = vector.load %arg1[%c0, %c0_1] : memref<64x4xf32, #tpu.memory_space<vmem>>, vector<64x4xf32>
    %c0_2 = arith.constant 0 : index
    %c0_3 = arith.constant 0 : index
    %4 = vector.load %arg2[%c0_2, %c0_3] : memref<4x512xf32, #tpu.memory_space<vmem>>, vector<4x512xf32>
    %cst = arith.constant dense<0.000000e+00> : vector<64x512xf32>
    %5 = tpu.matmul %3, %4, %cst {dimension_numbers = #tpu.dot_dimension_numbers<[1], [0], [0], [1], [0, 0, 1, 1], [], []>} : vector<64x4xf32>, vector<4x512xf32>, vector<64x512xf32> -> vector<64x512xf32>
    %c0_4 = arith.constant 0 : index
    %c0_5 = arith.constant 0 : index
    %6 = vector.load %arg4[%c0_4, %c0_5] : memref<1x512xf32, #tpu.memory_space<vmem>>, vector<1x512xf32>
    %7 = vector.broadcast %6 : vector<1x512xf32> to vector<64x512xf32>
    %8 = arith.addf %5, %7 : vector<64x512xf32>
    %c0_6 = arith.constant 0 : index
    %c0_7 = arith.constant 0 : index
    %9 = vector.load %arg13[%c0_6, %c0_7] : memref<64x512xf32, #tpu.memory_space<vmem>>, vector<64x512xf32>
    tpu.vector_store %arg13[%c0_6, %c0_7], %8 {strides = array<i32>} : memref<64x512xf32, #tpu.memory_space<vmem>>, vector<64x512xf32>,
    %c0_8 = arith.constant 0 : index
    %c0_9 = arith.constant 0 : index
    %10 = vector.load %arg3[%c0_8, %c0_9] : memref<128x512xf32, #tpu.memory_space<vmem>>, vector<128x512xf32>
    %c0_10 = arith.constant 0 : index
    %c0_11 = arith.constant 0 : index
    %c0_12 = arith.constant 0 : index
    %11 = vector.load %arg11[%c0_10, %c0_11, %c0_12] : memref<2x8x128xf32, #tpu.memory_space<vmem>>, vector<1x8x128xf32>
    %12 = vector.shape_cast %11 : vector<1x8x128xf32> to vector<8x128xf32>
    %c0_13 = arith.constant 0 : index
    %c0_14 = arith.constant 0 : index
    %c0_15 = arith.constant 0 : index
    %13 = vector.load %arg12[%c0_13, %c0_14, %c0_15] : memref<2x8x128xf32, #tpu.memory_space<vmem>>, vector<1x8x128xf32>
    %14 = vector.shape_cast %13 : vector<1x8x128xf32> to vector<8x128xf32>
    %c0_i32_16 = arith.constant 0 : i32
    %c8_i32 = arith.constant 8 : i32
    %15 = arith.muli %c0_i32_16, %c8_i32 : i32
    %16 = tpu.assume_multiple %15, 8 : i32
    %17 = arith.index_cast %16 : i32 to index
    %c0_17 = arith.constant 0 : index
    %18 = vector.load %arg13[%17, %c0_17] : memref<64x512xf32, #tpu.memory_space<vmem>>, vector<8x512xf32>
    %cst_18 = arith.constant dense<0.000000e+00> : vector<8x512xf32>
    %19 = tpu.matmul %12, %10, %cst_18 {dimension_numbers = #tpu.dot_dimension_numbers<[1], [0], [0], [1], [0, 0, 1, 1], [], []>} : vector<8x128xf32>, vector<128x512xf32>, vector<8x512xf32> -> vector<8x512xf32>
    %20 = arith.addf %18, %19 : vector<8x512xf32>
    %21 = vector.extract_strided_slice %20 {offsets = [0, 0], sizes = [8, 128], strides = [1, 1]} : vector<8x512xf32> to vector<8x128xf32>
    %22 = arith.negf %21 : vector<8x128xf32>
    %23 = math.exp %22 : vector<8x128xf32>
    %cst_19 = arith.constant 1.000000e+00 : f32
    %24 = vector.broadcast %cst_19 : f32 to vector<8x128xf32>
    %25 = arith.addf %24, %23 : vector<8x128xf32>
    %26 = arith.divf %24, %25 : vector<8x128xf32>
    %27 = vector.extract_strided_slice %20 {offsets = [0, 128], sizes = [8, 128], strides = [1, 1]} : vector<8x512xf32> to vector<8x128xf32>
    %28 = arith.negf %27 : vector<8x128xf32>
    %29 = math.exp %28 : vector<8x128xf32>
    %cst_20 = arith.constant 1.000000e+00 : f32
    %30 = vector.broadcast %cst_20 : f32 to vector<8x128xf32>
    %31 = arith.addf %30, %29 : vector<8x128xf32>
    %32 = arith.divf %30, %31 : vector<8x128xf32>
    %33 = vector.extract_strided_slice %20 {offsets = [0, 256], sizes = [8, 128], strides = [1, 1]} : vector<8x512xf32> to vector<8x128xf32>
    %34 = math.tanh %33 : vector<8x128xf32>
    %35 = vector.extract_strided_slice %20 {offsets = [0, 384], sizes = [8, 128], strides = [1, 1]} : vector<8x512xf32> to vector<8x128xf32>
    %36 = arith.negf %35 : vector<8x128xf32>
    %37 = math.exp %36 : vector<8x128xf32>
    %cst_21 = arith.constant 1.000000e+00 : f32
    %38 = vector.broadcast %cst_21 : f32 to vector<8x128xf32>
    %39 = arith.addf %38, %37 : vector<8x128xf32>
    %40 = arith.divf %38, %39 : vector<8x128xf32>
    %41 = arith.mulf %32, %14 : vector<8x128xf32>
    %42 = arith.mulf %26, %34 : vector<8x128xf32>
    %43 = arith.addf %41, %42 : vector<8x128xf32>
    %44 = math.tanh %43 : vector<8x128xf32>
    %45 = arith.mulf %40, %44 : vector<8x128xf32>
    %46 = arith.index_cast %16 : i32 to index
    %c0_22 = arith.constant 0 : index
    %47 = vector.load %arg14[%46, %c0_22] : memref<64x128xf32, #tpu.memory_space<vmem>>, vector<8x128xf32>
    tpu.vector_store %arg14[%46, %c0_22], %45 {strides = array<i32>} : memref<64x128xf32, #tpu.memory_space<vmem>>, vector<8x128xf32>,
    %c1_i32 = arith.constant 1 : i32
    %c8_i32_23 = arith.constant 8 : i32
    %48 = arith.muli %c1_i32, %c8_i32_23 : i32
    %49 = tpu.assume_multiple %48, 8 : i32
    %50 = arith.index_cast %49 : i32 to index
    %c0_24 = arith.constant 0 : index
    %51 = vector.load %arg13[%50, %c0_24] : memref<64x512xf32, #tpu.memory_space<vmem>>, vector<8x512xf32>
    %cst_25 = arith.constant dense<0.000000e+00> : vector<8x512xf32>
    %52 = tpu.matmul %45, %10, %cst_25 {dimension_numbers = #tpu.dot_dimension_numbers<[1], [0], [0], [1], [0, 0, 1, 1], [], []>} : vector<8x128xf32>, vector<128x512xf32>, vector<8x512xf32> -> vector<8x512xf32>
    %53 = arith.addf %51, %52 : vector<8x512xf32>
    %54 = vector.extract_strided_slice %53 {offsets = [0, 0], sizes = [8, 128], strides = [1, 1]} : vector<8x512xf32> to vector<8x128xf32>
    %55 = arith.negf %54 : vector<8x128xf32>
    %56 = math.exp %55 : vector<8x128xf32>
    %cst_26 = arith.constant 1.000000e+00 : f32
    %57 = vector.broadcast %cst_26 : f32 to vector<8x128xf32>
    %58 = arith.addf %57, %56 : vector<8x128xf32>
    %59 = arith.divf %57, %58 : vector<8x128xf32>
    %60 = vector.extract_strided_slice %53 {offsets = [0, 128], sizes = [8, 128], strides = [1, 1]} : vector<8x512xf32> to vector<8x128xf32>
    %61 = arith.negf %60 : vector<8x128xf32>
    %62 = math.exp %61 : vector<8x128xf32>
    %cst_27 = arith.constant 1.000000e+00 : f32
    %63 = vector.broadcast %cst_27 : f32 to vector<8x128xf32>
    %64 = arith.addf %63, %62 : vector<8x128xf32>
    %65 = arith.divf %63, %64 : vector<8x128xf32>
    %66 = vector.extract_strided_slice %53 {offsets = [0, 256], sizes = [8, 128], strides = [1, 1]} : vector<8x512xf32> to vector<8x128xf32>
    %67 = math.tanh %66 : vector<8x128xf32>
    %68 = vector.extract_strided_slice %53 {offsets = [0, 384], sizes = [8, 128], strides = [1, 1]} : vector<8x512xf32> to vector<8x128xf32>
    %69 = arith.negf %68 : vector<8x128xf32>
    %70 = math.exp %69 : vector<8x128xf32>
    %cst_28 = arith.constant 1.000000e+00 : f32
    %71 = vector.broadcast %cst_28 : f32 to vector<8x128xf32>
    %72 = arith.addf %71, %70 : vector<8x128xf32>
    %73 = arith.divf %71, %72 : vector<8x128xf32>
    %74 = arith.mulf %65, %43 : vector<8x128xf32>
    %75 = arith.mulf %59, %67 : vector<8x128xf32>
    %76 = arith.addf %74, %75 : vector<8x128xf32>
    %77 = math.tanh %76 : vector<8x128xf32>
    %78 = arith.mulf %73, %77 : vector<8x128xf32>
    %79 = arith.index_cast %49 : i32 to index
    %c0_29 = arith.constant 0 : index
    %80 = vector.load %arg14[%79, %c0_29] : memref<64x128xf32, #tpu.memory_space<vmem>>, vector<8x128xf32>
    tpu.vector_store %arg14[%79, %c0_29], %78 {strides = array<i32>} : memref<64x128xf32, #tpu.memory_space<vmem>>, vector<8x128xf32>,
    %c2_i32 = arith.constant 2 : i32
    %c8_i32_30 = arith.constant 8 : i32
    %81 = arith.muli %c2_i32, %c8_i32_30 : i32
    %82 = tpu.assume_multiple %81, 8 : i32
    %83 = arith.index_cast %82 : i32 to index
    %c0_31 = arith.constant 0 : index
    %84 = vector.load %arg13[%83, %c0_31] : memref<64x512xf32, #tpu.memory_space<vmem>>, vector<8x512xf32>
    %cst_32 = arith.constant dense<0.000000e+00> : vector<8x512xf32>
    %85 = tpu.matmul %78, %10, %cst_32 {dimension_numbers = #tpu.dot_dimension_numbers<[1], [0], [0], [1], [0, 0, 1, 1], [], []>} : vector<8x128xf32>, vector<128x512xf32>, vector<8x512xf32> -> vector<8x512xf32>
    %86 = arith.addf %84, %85 : vector<8x512xf32>
    %87 = vector.extract_strided_slice %86 {offsets = [0, 0], sizes = [8, 128], strides = [1, 1]} : vector<8x512xf32> to vector<8x128xf32>
    %88 = arith.negf %87 : vector<8x128xf32>
    %89 = math.exp %88 : vector<8x128xf32>
    %cst_33 = arith.constant 1.000000e+00 : f32
    %90 = vector.broadcast %cst_33 : f32 to vector<8x128xf32>
    %91 = arith.addf %90, %89 : vector<8x128xf32>
    %92 = arith.divf %90, %91 : vector<8x128xf32>
    %93 = vector.extract_strided_slice %86 {offsets = [0, 128], sizes = [8, 128], strides = [1, 1]} : vector<8x512xf32> to vector<8x128xf32>
    %94 = arith.negf %93 : vector<8x128xf32>
    %95 = math.exp %94 : vector<8x128xf32>
    %cst_34 = arith.constant 1.000000e+00 : f32
    %96 = vector.broadcast %cst_34 : f32 to vector<8x128xf32>
    %97 = arith.addf %96, %95 : vector<8x128xf32>
    %98 = arith.divf %96, %97 : vector<8x128xf32>
    %99 = vector.extract_strided_slice %86 {offsets = [0, 256], sizes = [8, 128], strides = [1, 1]} : vector<8x512xf32> to vector<8x128xf32>
    %100 = math.tanh %99 : vector<8x128xf32>
    %101 = vector.extract_strided_slice %86 {offsets = [0, 384], sizes = [8, 128], strides = [1, 1]} : vector<8x512xf32> to vector<8x128xf32>
    %102 = arith.negf %101 : vector<8x128xf32>
    %103 = math.exp %102 : vector<8x128xf32>
    %cst_35 = arith.constant 1.000000e+00 : f32
    %104 = vector.broadcast %cst_35 : f32 to vector<8x128xf32>
    %105 = arith.addf %104, %103 : vector<8x128xf32>
    %106 = arith.divf %104, %105 : vector<8x128xf32>
    %107 = arith.mulf %98, %76 : vector<8x128xf32>
    %108 = arith.mulf %92, %100 : vector<8x128xf32>
    %109 = arith.addf %107, %108 : vector<8x128xf32>
    %110 = math.tanh %109 : vector<8x128xf32>
    %111 = arith.mulf %106, %110 : vector<8x128xf32>
    %112 = arith.index_cast %82 : i32 to index
    %c0_36 = arith.constant 0 : index
    %113 = vector.load %arg14[%112, %c0_36] : memref<64x128xf32, #tpu.memory_space<vmem>>, vector<8x128xf32>
    tpu.vector_store %arg14[%112, %c0_36], %111 {strides = array<i32>} : memref<64x128xf32, #tpu.memory_space<vmem>>, vector<8x128xf32>,
    %c3_i32 = arith.constant 3 : i32
    %c8_i32_37 = arith.constant 8 : i32
    %114 = arith.muli %c3_i32, %c8_i32_37 : i32
    %115 = tpu.assume_multiple %114, 8 : i32
    %116 = arith.index_cast %115 : i32 to index
    %c0_38 = arith.constant 0 : index
    %117 = vector.load %arg13[%116, %c0_38] : memref<64x512xf32, #tpu.memory_space<vmem>>, vector<8x512xf32>
    %cst_39 = arith.constant dense<0.000000e+00> : vector<8x512xf32>
    %118 = tpu.matmul %111, %10, %cst_39 {dimension_numbers = #tpu.dot_dimension_numbers<[1], [0], [0], [1], [0, 0, 1, 1], [], []>} : vector<8x128xf32>, vector<128x512xf32>, vector<8x512xf32> -> vector<8x512xf32>
    %119 = arith.addf %117, %118 : vector<8x512xf32>
    %120 = vector.extract_strided_slice %119 {offsets = [0, 0], sizes = [8, 128], strides = [1, 1]} : vector<8x512xf32> to vector<8x128xf32>
    %121 = arith.negf %120 : vector<8x128xf32>
    %122 = math.exp %121 : vector<8x128xf32>
    %cst_40 = arith.constant 1.000000e+00 : f32
    %123 = vector.broadcast %cst_40 : f32 to vector<8x128xf32>
    %124 = arith.addf %123, %122 : vector<8x128xf32>
    %125 = arith.divf %123, %124 : vector<8x128xf32>
    %126 = vector.extract_strided_slice %119 {offsets = [0, 128], sizes = [8, 128], strides = [1, 1]} : vector<8x512xf32> to vector<8x128xf32>
    %127 = arith.negf %126 : vector<8x128xf32>
    %128 = math.exp %127 : vector<8x128xf32>
    %cst_41 = arith.constant 1.000000e+00 : f32
    %129 = vector.broadcast %cst_41 : f32 to vector<8x128xf32>
    %130 = arith.addf %129, %128 : vector<8x128xf32>
    %131 = arith.divf %129, %130 : vector<8x128xf32>
    %132 = vector.extract_strided_slice %119 {offsets = [0, 256], sizes = [8, 128], strides = [1, 1]} : vector<8x512xf32> to vector<8x128xf32>
    %133 = math.tanh %132 : vector<8x128xf32>
    %134 = vector.extract_strided_slice %119 {offsets = [0, 384], sizes = [8, 128], strides = [1, 1]} : vector<8x512xf32> to vector<8x128xf32>
    %135 = arith.negf %134 : vector<8x128xf32>
    %136 = math.exp %135 : vector<8x128xf32>
    %cst_42 = arith.constant 1.000000e+00 : f32
    %137 = vector.broadcast %cst_42 : f32 to vector<8x128xf32>
    %138 = arith.addf %137, %136 : vector<8x128xf32>
    %139 = arith.divf %137, %138 : vector<8x128xf32>
    %140 = arith.mulf %131, %109 : vector<8x128xf32>
    %141 = arith.mulf %125, %133 : vector<8x128xf32>
    %142 = arith.addf %140, %141 : vector<8x128xf32>
    %143 = math.tanh %142 : vector<8x128xf32>
    %144 = arith.mulf %139, %143 : vector<8x128xf32>
    %145 = arith.index_cast %115 : i32 to index
    %c0_43 = arith.constant 0 : index
    %146 = vector.load %arg14[%145, %c0_43] : memref<64x128xf32, #tpu.memory_space<vmem>>, vector<8x128xf32>
    tpu.vector_store %arg14[%145, %c0_43], %144 {strides = array<i32>} : memref<64x128xf32, #tpu.memory_space<vmem>>, vector<8x128xf32>,
    %c4_i32 = arith.constant 4 : i32
    %c8_i32_44 = arith.constant 8 : i32
    %147 = arith.muli %c4_i32, %c8_i32_44 : i32
    %148 = tpu.assume_multiple %147, 8 : i32
    %149 = arith.index_cast %148 : i32 to index
    %c0_45 = arith.constant 0 : index
    %150 = vector.load %arg13[%149, %c0_45] : memref<64x512xf32, #tpu.memory_space<vmem>>, vector<8x512xf32>
    %cst_46 = arith.constant dense<0.000000e+00> : vector<8x512xf32>
    %151 = tpu.matmul %144, %10, %cst_46 {dimension_numbers = #tpu.dot_dimension_numbers<[1], [0], [0], [1], [0, 0, 1, 1], [], []>} : vector<8x128xf32>, vector<128x512xf32>, vector<8x512xf32> -> vector<8x512xf32>
    %152 = arith.addf %150, %151 : vector<8x512xf32>
    %153 = vector.extract_strided_slice %152 {offsets = [0, 0], sizes = [8, 128], strides = [1, 1]} : vector<8x512xf32> to vector<8x128xf32>
    %154 = arith.negf %153 : vector<8x128xf32>
    %155 = math.exp %154 : vector<8x128xf32>
    %cst_47 = arith.constant 1.000000e+00 : f32
    %156 = vector.broadcast %cst_47 : f32 to vector<8x128xf32>
    %157 = arith.addf %156, %155 : vector<8x128xf32>
    %158 = arith.divf %156, %157 : vector<8x128xf32>
    %159 = vector.extract_strided_slice %152 {offsets = [0, 128], sizes = [8, 128], strides = [1, 1]} : vector<8x512xf32> to vector<8x128xf32>
    %160 = arith.negf %159 : vector<8x128xf32>
    %161 = math.exp %160 : vector<8x128xf32>
    %cst_48 = arith.constant 1.000000e+00 : f32
    %162 = vector.broadcast %cst_48 : f32 to vector<8x128xf32>
    %163 = arith.addf %162, %161 : vector<8x128xf32>
    %164 = arith.divf %162, %163 : vector<8x128xf32>
    %165 = vector.extract_strided_slice %152 {offsets = [0, 256], sizes = [8, 128], strides = [1, 1]} : vector<8x512xf32> to vector<8x128xf32>
    %166 = math.tanh %165 : vector<8x128xf32>
    %167 = vector.extract_strided_slice %152 {offsets = [0, 384], sizes = [8, 128], strides = [1, 1]} : vector<8x512xf32> to vector<8x128xf32>
    %168 = arith.negf %167 : vector<8x128xf32>
    %169 = math.exp %168 : vector<8x128xf32>
    %cst_49 = arith.constant 1.000000e+00 : f32
    %170 = vector.broadcast %cst_49 : f32 to vector<8x128xf32>
    %171 = arith.addf %170, %169 : vector<8x128xf32>
    %172 = arith.divf %170, %171 : vector<8x128xf32>
    %173 = arith.mulf %164, %142 : vector<8x128xf32>
    %174 = arith.mulf %158, %166 : vector<8x128xf32>
    %175 = arith.addf %173, %174 : vector<8x128xf32>
    %176 = math.tanh %175 : vector<8x128xf32>
    %177 = arith.mulf %172, %176 : vector<8x128xf32>
    %178 = arith.index_cast %148 : i32 to index
    %c0_50 = arith.constant 0 : index
    %179 = vector.load %arg14[%178, %c0_50] : memref<64x128xf32, #tpu.memory_space<vmem>>, vector<8x128xf32>
    tpu.vector_store %arg14[%178, %c0_50], %177 {strides = array<i32>} : memref<64x128xf32, #tpu.memory_space<vmem>>, vector<8x128xf32>,
    %c5_i32 = arith.constant 5 : i32
    %c8_i32_51 = arith.constant 8 : i32
    %180 = arith.muli %c5_i32, %c8_i32_51 : i32
    %181 = tpu.assume_multiple %180, 8 : i32
    %182 = arith.index_cast %181 : i32 to index
    %c0_52 = arith.constant 0 : index
    %183 = vector.load %arg13[%182, %c0_52] : memref<64x512xf32, #tpu.memory_space<vmem>>, vector<8x512xf32>
    %cst_53 = arith.constant dense<0.000000e+00> : vector<8x512xf32>
    %184 = tpu.matmul %177, %10, %cst_53 {dimension_numbers = #tpu.dot_dimension_numbers<[1], [0], [0], [1], [0, 0, 1, 1], [], []>} : vector<8x128xf32>, vector<128x512xf32>, vector<8x512xf32> -> vector<8x512xf32>
    %185 = arith.addf %183, %184 : vector<8x512xf32>
    %186 = vector.extract_strided_slice %185 {offsets = [0, 0], sizes = [8, 128], strides = [1, 1]} : vector<8x512xf32> to vector<8x128xf32>
    %187 = arith.negf %186 : vector<8x128xf32>
    %188 = math.exp %187 : vector<8x128xf32>
    %cst_54 = arith.constant 1.000000e+00 : f32
    %189 = vector.broadcast %cst_54 : f32 to vector<8x128xf32>
    %190 = arith.addf %189, %188 : vector<8x128xf32>
    %191 = arith.divf %189, %190 : vector<8x128xf32>
    %192 = vector.extract_strided_slice %185 {offsets = [0, 128], sizes = [8, 128], strides = [1, 1]} : vector<8x512xf32> to vector<8x128xf32>
    %193 = arith.negf %192 : vector<8x128xf32>
    %194 = math.exp %193 : vector<8x128xf32>
    %cst_55 = arith.constant 1.000000e+00 : f32
    %195 = vector.broadcast %cst_55 : f32 to vector<8x128xf32>
    %196 = arith.addf %195, %194 : vector<8x128xf32>
    %197 = arith.divf %195, %196 : vector<8x128xf32>
    %198 = vector.extract_strided_slice %185 {offsets = [0, 256], sizes = [8, 128], strides = [1, 1]} : vector<8x512xf32> to vector<8x128xf32>
    %199 = math.tanh %198 : vector<8x128xf32>
    %200 = vector.extract_strided_slice %185 {offsets = [0, 384], sizes = [8, 128], strides = [1, 1]} : vector<8x512xf32> to vector<8x128xf32>
    %201 = arith.negf %200 : vector<8x128xf32>
    %202 = math.exp %201 : vector<8x128xf32>
    %cst_56 = arith.constant 1.000000e+00 : f32
    %203 = vector.broadcast %cst_56 : f32 to vector<8x128xf32>
    %204 = arith.addf %203, %202 : vector<8x128xf32>
    %205 = arith.divf %203, %204 : vector<8x128xf32>
    %206 = arith.mulf %197, %175 : vector<8x128xf32>
    %207 = arith.mulf %191, %199 : vector<8x128xf32>
    %208 = arith.addf %206, %207 : vector<8x128xf32>
    %209 = math.tanh %208 : vector<8x128xf32>
    %210 = arith.mulf %205, %209 : vector<8x128xf32>
    %211 = arith.index_cast %181 : i32 to index
    %c0_57 = arith.constant 0 : index
    %212 = vector.load %arg14[%211, %c0_57] : memref<64x128xf32, #tpu.memory_space<vmem>>, vector<8x128xf32>
    tpu.vector_store %arg14[%211, %c0_57], %210 {strides = array<i32>} : memref<64x128xf32, #tpu.memory_space<vmem>>, vector<8x128xf32>,
    %c6_i32 = arith.constant 6 : i32
    %c8_i32_58 = arith.constant 8 : i32
    %213 = arith.muli %c6_i32, %c8_i32_58 : i32
    %214 = tpu.assume_multiple %213, 8 : i32
    %215 = arith.index_cast %214 : i32 to index
    %c0_59 = arith.constant 0 : index
    %216 = vector.load %arg13[%215, %c0_59] : memref<64x512xf32, #tpu.memory_space<vmem>>, vector<8x512xf32>
    %cst_60 = arith.constant dense<0.000000e+00> : vector<8x512xf32>
    %217 = tpu.matmul %210, %10, %cst_60 {dimension_numbers = #tpu.dot_dimension_numbers<[1], [0], [0], [1], [0, 0, 1, 1], [], []>} : vector<8x128xf32>, vector<128x512xf32>, vector<8x512xf32> -> vector<8x512xf32>
    %218 = arith.addf %216, %217 : vector<8x512xf32>
    %219 = vector.extract_strided_slice %218 {offsets = [0, 0], sizes = [8, 128], strides = [1, 1]} : vector<8x512xf32> to vector<8x128xf32>
    %220 = arith.negf %219 : vector<8x128xf32>
    %221 = math.exp %220 : vector<8x128xf32>
    %cst_61 = arith.constant 1.000000e+00 : f32
    %222 = vector.broadcast %cst_61 : f32 to vector<8x128xf32>
    %223 = arith.addf %222, %221 : vector<8x128xf32>
    %224 = arith.divf %222, %223 : vector<8x128xf32>
    %225 = vector.extract_strided_slice %218 {offsets = [0, 128], sizes = [8, 128], strides = [1, 1]} : vector<8x512xf32> to vector<8x128xf32>
    %226 = arith.negf %225 : vector<8x128xf32>
    %227 = math.exp %226 : vector<8x128xf32>
    %cst_62 = arith.constant 1.000000e+00 : f32
    %228 = vector.broadcast %cst_62 : f32 to vector<8x128xf32>
    %229 = arith.addf %228, %227 : vector<8x128xf32>
    %230 = arith.divf %228, %229 : vector<8x128xf32>
    %231 = vector.extract_strided_slice %218 {offsets = [0, 256], sizes = [8, 128], strides = [1, 1]} : vector<8x512xf32> to vector<8x128xf32>
    %232 = math.tanh %231 : vector<8x128xf32>
    %233 = vector.extract_strided_slice %218 {offsets = [0, 384], sizes = [8, 128], strides = [1, 1]} : vector<8x512xf32> to vector<8x128xf32>
    %234 = arith.negf %233 : vector<8x128xf32>
    %235 = math.exp %234 : vector<8x128xf32>
    %cst_63 = arith.constant 1.000000e+00 : f32
    %236 = vector.broadcast %cst_63 : f32 to vector<8x128xf32>
    %237 = arith.addf %236, %235 : vector<8x128xf32>
    %238 = arith.divf %236, %237 : vector<8x128xf32>
    %239 = arith.mulf %230, %208 : vector<8x128xf32>
    %240 = arith.mulf %224, %232 : vector<8x128xf32>
    %241 = arith.addf %239, %240 : vector<8x128xf32>
    %242 = math.tanh %241 : vector<8x128xf32>
    %243 = arith.mulf %238, %242 : vector<8x128xf32>
    %244 = arith.index_cast %214 : i32 to index
    %c0_64 = arith.constant 0 : index
    %245 = vector.load %arg14[%244, %c0_64] : memref<64x128xf32, #tpu.memory_space<vmem>>, vector<8x128xf32>
    tpu.vector_store %arg14[%244, %c0_64], %243 {strides = array<i32>} : memref<64x128xf32, #tpu.memory_space<vmem>>, vector<8x128xf32>,
    %c7_i32 = arith.constant 7 : i32
    %c8_i32_65 = arith.constant 8 : i32
    %246 = arith.muli %c7_i32, %c8_i32_65 : i32
    %247 = tpu.assume_multiple %246, 8 : i32
    %248 = arith.index_cast %247 : i32 to index
    %c0_66 = arith.constant 0 : index
    %249 = vector.load %arg13[%248, %c0_66] : memref<64x512xf32, #tpu.memory_space<vmem>>, vector<8x512xf32>
    %cst_67 = arith.constant dense<0.000000e+00> : vector<8x512xf32>
    %250 = tpu.matmul %243, %10, %cst_67 {dimension_numbers = #tpu.dot_dimension_numbers<[1], [0], [0], [1], [0, 0, 1, 1], [], []>} : vector<8x128xf32>, vector<128x512xf32>, vector<8x512xf32> -> vector<8x512xf32>
    %251 = arith.addf %249, %250 : vector<8x512xf32>
    %252 = vector.extract_strided_slice %251 {offsets = [0, 0], sizes = [8, 128], strides = [1, 1]} : vector<8x512xf32> to vector<8x128xf32>
    %253 = arith.negf %252 : vector<8x128xf32>
    %254 = math.exp %253 : vector<8x128xf32>
    %cst_68 = arith.constant 1.000000e+00 : f32
    %255 = vector.broadcast %cst_68 : f32 to vector<8x128xf32>
    %256 = arith.addf %255, %254 : vector<8x128xf32>
    %257 = arith.divf %255, %256 : vector<8x128xf32>
    %258 = vector.extract_strided_slice %251 {offsets = [0, 128], sizes = [8, 128], strides = [1, 1]} : vector<8x512xf32> to vector<8x128xf32>
    %259 = arith.negf %258 : vector<8x128xf32>
    %260 = math.exp %259 : vector<8x128xf32>
    %cst_69 = arith.constant 1.000000e+00 : f32
    %261 = vector.broadcast %cst_69 : f32 to vector<8x128xf32>
    %262 = arith.addf %261, %260 : vector<8x128xf32>
    %263 = arith.divf %261, %262 : vector<8x128xf32>
    %264 = vector.extract_strided_slice %251 {offsets = [0, 256], sizes = [8, 128], strides = [1, 1]} : vector<8x512xf32> to vector<8x128xf32>
    %265 = math.tanh %264 : vector<8x128xf32>
    %266 = vector.extract_strided_slice %251 {offsets = [0, 384], sizes = [8, 128], strides = [1, 1]} : vector<8x512xf32> to vector<8x128xf32>
    %267 = arith.negf %266 : vector<8x128xf32>
    %268 = math.exp %267 : vector<8x128xf32>
    %cst_70 = arith.constant 1.000000e+00 : f32
    %269 = vector.broadcast %cst_70 : f32 to vector<8x128xf32>
    %270 = arith.addf %269, %268 : vector<8x128xf32>
    %271 = arith.divf %269, %270 : vector<8x128xf32>
    %272 = arith.mulf %263, %241 : vector<8x128xf32>
    %273 = arith.mulf %257, %265 : vector<8x128xf32>
    %274 = arith.addf %272, %273 : vector<8x128xf32>
    %275 = math.tanh %274 : vector<8x128xf32>
    %276 = arith.mulf %271, %275 : vector<8x128xf32>
    %277 = arith.index_cast %247 : i32 to index
    %c0_71 = arith.constant 0 : index
    %278 = vector.load %arg14[%277, %c0_71] : memref<64x128xf32, #tpu.memory_space<vmem>>, vector<8x128xf32>
    tpu.vector_store %arg14[%277, %c0_71], %276 {strides = array<i32>} : memref<64x128xf32, #tpu.memory_space<vmem>>, vector<8x128xf32>,
    %c8_i32_72 = arith.constant 8 : i32
    %c0_73 = arith.constant 0 : index
    %c0_74 = arith.constant 0 : index
    %c0_75 = arith.constant 0 : index
    %279 = vector.load %arg11[%c0_73, %c0_74, %c0_75] : memref<2x8x128xf32, #tpu.memory_space<vmem>>, vector<1x8x128xf32>
    %280 = vector.shape_cast %279 : vector<1x8x128xf32> to vector<8x128xf32>
    %281 = vector.shape_cast %276 : vector<8x128xf32> to vector<1x8x128xf32>
    tpu.vector_store %arg11[%c0_73, %c0_74, %c0_75], %281 {strides = array<i32>} : memref<2x8x128xf32, #tpu.memory_space<vmem>>, vector<1x8x128xf32>,
    %c0_76 = arith.constant 0 : index
    %c0_77 = arith.constant 0 : index
    %c0_78 = arith.constant 0 : index
    %282 = vector.load %arg12[%c0_76, %c0_77, %c0_78] : memref<2x8x128xf32, #tpu.memory_space<vmem>>, vector<1x8x128xf32>
    %283 = vector.shape_cast %282 : vector<1x8x128xf32> to vector<8x128xf32>
    %284 = vector.shape_cast %274 : vector<8x128xf32> to vector<1x8x128xf32>
    tpu.vector_store %arg12[%c0_76, %c0_77, %c0_78], %284 {strides = array<i32>} : memref<2x8x128xf32, #tpu.memory_space<vmem>>, vector<1x8x128xf32>,
    %c0_79 = arith.constant 0 : index
    %c0_80 = arith.constant 0 : index
    %285 = vector.load %arg14[%c0_79, %c0_80] : memref<64x128xf32, #tpu.memory_space<vmem>>, vector<64x128xf32>
    %c0_81 = arith.constant 0 : index
    %c0_82 = arith.constant 0 : index
    %286 = vector.load %arg5[%c0_81, %c0_82] : memref<128x512xf32, #tpu.memory_space<vmem>>, vector<128x512xf32>
    %cst_83 = arith.constant dense<0.000000e+00> : vector<64x512xf32>
    %287 = tpu.matmul %285, %286, %cst_83 {dimension_numbers = #tpu.dot_dimension_numbers<[1], [0], [0], [1], [0, 0, 1, 1], [], []>} : vector<64x128xf32>, vector<128x512xf32>, vector<64x512xf32> -> vector<64x512xf32>
    %c0_84 = arith.constant 0 : index
    %c0_85 = arith.constant 0 : index
    %288 = vector.load %arg7[%c0_84, %c0_85] : memref<1x512xf32, #tpu.memory_space<vmem>>, vector<1x512xf32>
    %289 = vector.broadcast %288 : vector<1x512xf32> to vector<64x512xf32>
    %290 = arith.addf %287, %289 : vector<64x512xf32>
    %c0_86 = arith.constant 0 : index
    %c0_87 = arith.constant 0 : index
    %291 = vector.load %arg13[%c0_86, %c0_87] : memref<64x512xf32, #tpu.memory_space<vmem>>, vector<64x512xf32>
    tpu.vector_store %arg13[%c0_86, %c0_87], %290 {strides = array<i32>} : memref<64x512xf32, #tpu.memory_space<vmem>>, vector<64x512xf32>,
    %c0_88 = arith.constant 0 : index
    %c0_89 = arith.constant 0 : index
    %292 = vector.load %arg6[%c0_88, %c0_89] : memref<128x512xf32, #tpu.memory_space<vmem>>, vector<128x512xf32>
    %c1 = arith.constant 1 : index
    %c0_90 = arith.constant 0 : index
    %c0_91 = arith.constant 0 : index
    %293 = vector.load %arg11[%c1, %c0_90, %c0_91] : memref<2x8x128xf32, #tpu.memory_space<vmem>>, vector<1x8x128xf32>
    %294 = vector.shape_cast %293 : vector<1x8x128xf32> to vector<8x128xf32>
    %c1_92 = arith.constant 1 : index
    %c0_93 = arith.constant 0 : index
    %c0_94 = arith.constant 0 : index
    %295 = vector.load %arg12[%c1_92, %c0_93, %c0_94] : memref<2x8x128xf32, #tpu.memory_space<vmem>>, vector<1x8x128xf32>
    %296 = vector.shape_cast %295 : vector<1x8x128xf32> to vector<8x128xf32>
    %c0_i32_95 = arith.constant 0 : i32
    %c8_i32_96 = arith.constant 8 : i32
    %297 = arith.muli %c0_i32_95, %c8_i32_96 : i32
    %298 = tpu.assume_multiple %297, 8 : i32
    %299 = arith.index_cast %298 : i32 to index
    %c0_97 = arith.constant 0 : index
    %300 = vector.load %arg13[%299, %c0_97] : memref<64x512xf32, #tpu.memory_space<vmem>>, vector<8x512xf32>
    %cst_98 = arith.constant dense<0.000000e+00> : vector<8x512xf32>
    %301 = tpu.matmul %294, %292, %cst_98 {dimension_numbers = #tpu.dot_dimension_numbers<[1], [0], [0], [1], [0, 0, 1, 1], [], []>} : vector<8x128xf32>, vector<128x512xf32>, vector<8x512xf32> -> vector<8x512xf32>
    %302 = arith.addf %300, %301 : vector<8x512xf32>
    %303 = vector.extract_strided_slice %302 {offsets = [0, 0], sizes = [8, 128], strides = [1, 1]} : vector<8x512xf32> to vector<8x128xf32>
    %304 = arith.negf %303 : vector<8x128xf32>
    %305 = math.exp %304 : vector<8x128xf32>
    %cst_99 = arith.constant 1.000000e+00 : f32
    %306 = vector.broadcast %cst_99 : f32 to vector<8x128xf32>
    %307 = arith.addf %306, %305 : vector<8x128xf32>
    %308 = arith.divf %306, %307 : vector<8x128xf32>
    %309 = vector.extract_strided_slice %302 {offsets = [0, 128], sizes = [8, 128], strides = [1, 1]} : vector<8x512xf32> to vector<8x128xf32>
    %310 = arith.negf %309 : vector<8x128xf32>
    %311 = math.exp %310 : vector<8x128xf32>
    %cst_100 = arith.constant 1.000000e+00 : f32
    %312 = vector.broadcast %cst_100 : f32 to vector<8x128xf32>
    %313 = arith.addf %312, %311 : vector<8x128xf32>
    %314 = arith.divf %312, %313 : vector<8x128xf32>
    %315 = vector.extract_strided_slice %302 {offsets = [0, 256], sizes = [8, 128], strides = [1, 1]} : vector<8x512xf32> to vector<8x128xf32>
    %316 = math.tanh %315 : vector<8x128xf32>
    %317 = vector.extract_strided_slice %302 {offsets = [0, 384], sizes = [8, 128], strides = [1, 1]} : vector<8x512xf32> to vector<8x128xf32>
    %318 = arith.negf %317 : vector<8x128xf32>
    %319 = math.exp %318 : vector<8x128xf32>
    %cst_101 = arith.constant 1.000000e+00 : f32
    %320 = vector.broadcast %cst_101 : f32 to vector<8x128xf32>
    %321 = arith.addf %320, %319 : vector<8x128xf32>
    %322 = arith.divf %320, %321 : vector<8x128xf32>
    %323 = arith.mulf %314, %296 : vector<8x128xf32>
    %324 = arith.mulf %308, %316 : vector<8x128xf32>
    %325 = arith.addf %323, %324 : vector<8x128xf32>
    %326 = math.tanh %325 : vector<8x128xf32>
    %327 = arith.mulf %322, %326 : vector<8x128xf32>
    %c1_i32_102 = arith.constant 1 : i32
    %c8_i32_103 = arith.constant 8 : i32
    %328 = arith.muli %c1_i32_102, %c8_i32_103 : i32
    %329 = tpu.assume_multiple %328, 8 : i32
    %330 = arith.index_cast %329 : i32 to index
    %c0_104 = arith.constant 0 : index
    %331 = vector.load %arg13[%330, %c0_104] : memref<64x512xf32, #tpu.memory_space<vmem>>, vector<8x512xf32>
    %cst_105 = arith.constant dense<0.000000e+00> : vector<8x512xf32>
    %332 = tpu.matmul %327, %292, %cst_105 {dimension_numbers = #tpu.dot_dimension_numbers<[1], [0], [0], [1], [0, 0, 1, 1], [], []>} : vector<8x128xf32>, vector<128x512xf32>, vector<8x512xf32> -> vector<8x512xf32>
    %333 = arith.addf %331, %332 : vector<8x512xf32>
    %334 = vector.extract_strided_slice %333 {offsets = [0, 0], sizes = [8, 128], strides = [1, 1]} : vector<8x512xf32> to vector<8x128xf32>
    %335 = arith.negf %334 : vector<8x128xf32>
    %336 = math.exp %335 : vector<8x128xf32>
    %cst_106 = arith.constant 1.000000e+00 : f32
    %337 = vector.broadcast %cst_106 : f32 to vector<8x128xf32>
    %338 = arith.addf %337, %336 : vector<8x128xf32>
    %339 = arith.divf %337, %338 : vector<8x128xf32>
    %340 = vector.extract_strided_slice %333 {offsets = [0, 128], sizes = [8, 128], strides = [1, 1]} : vector<8x512xf32> to vector<8x128xf32>
    %341 = arith.negf %340 : vector<8x128xf32>
    %342 = math.exp %341 : vector<8x128xf32>
    %cst_107 = arith.constant 1.000000e+00 : f32
    %343 = vector.broadcast %cst_107 : f32 to vector<8x128xf32>
    %344 = arith.addf %343, %342 : vector<8x128xf32>
    %345 = arith.divf %343, %344 : vector<8x128xf32>
    %346 = vector.extract_strided_slice %333 {offsets = [0, 256], sizes = [8, 128], strides = [1, 1]} : vector<8x512xf32> to vector<8x128xf32>
    %347 = math.tanh %346 : vector<8x128xf32>
    %348 = vector.extract_strided_slice %333 {offsets = [0, 384], sizes = [8, 128], strides = [1, 1]} : vector<8x512xf32> to vector<8x128xf32>
    %349 = arith.negf %348 : vector<8x128xf32>
    %350 = math.exp %349 : vector<8x128xf32>
    %cst_108 = arith.constant 1.000000e+00 : f32
    %351 = vector.broadcast %cst_108 : f32 to vector<8x128xf32>
    %352 = arith.addf %351, %350 : vector<8x128xf32>
    %353 = arith.divf %351, %352 : vector<8x128xf32>
    %354 = arith.mulf %345, %325 : vector<8x128xf32>
    %355 = arith.mulf %339, %347 : vector<8x128xf32>
    %356 = arith.addf %354, %355 : vector<8x128xf32>
    %357 = math.tanh %356 : vector<8x128xf32>
    %358 = arith.mulf %353, %357 : vector<8x128xf32>
    %c2_i32_109 = arith.constant 2 : i32
    %c8_i32_110 = arith.constant 8 : i32
    %359 = arith.muli %c2_i32_109, %c8_i32_110 : i32
    %360 = tpu.assume_multiple %359, 8 : i32
    %361 = arith.index_cast %360 : i32 to index
    %c0_111 = arith.constant 0 : index
    %362 = vector.load %arg13[%361, %c0_111] : memref<64x512xf32, #tpu.memory_space<vmem>>, vector<8x512xf32>
    %cst_112 = arith.constant dense<0.000000e+00> : vector<8x512xf32>
    %363 = tpu.matmul %358, %292, %cst_112 {dimension_numbers = #tpu.dot_dimension_numbers<[1], [0], [0], [1], [0, 0, 1, 1], [], []>} : vector<8x128xf32>, vector<128x512xf32>, vector<8x512xf32> -> vector<8x512xf32>
    %364 = arith.addf %362, %363 : vector<8x512xf32>
    %365 = vector.extract_strided_slice %364 {offsets = [0, 0], sizes = [8, 128], strides = [1, 1]} : vector<8x512xf32> to vector<8x128xf32>
    %366 = arith.negf %365 : vector<8x128xf32>
    %367 = math.exp %366 : vector<8x128xf32>
    %cst_113 = arith.constant 1.000000e+00 : f32
    %368 = vector.broadcast %cst_113 : f32 to vector<8x128xf32>
    %369 = arith.addf %368, %367 : vector<8x128xf32>
    %370 = arith.divf %368, %369 : vector<8x128xf32>
    %371 = vector.extract_strided_slice %364 {offsets = [0, 128], sizes = [8, 128], strides = [1, 1]} : vector<8x512xf32> to vector<8x128xf32>
    %372 = arith.negf %371 : vector<8x128xf32>
    %373 = math.exp %372 : vector<8x128xf32>
    %cst_114 = arith.constant 1.000000e+00 : f32
    %374 = vector.broadcast %cst_114 : f32 to vector<8x128xf32>
    %375 = arith.addf %374, %373 : vector<8x128xf32>
    %376 = arith.divf %374, %375 : vector<8x128xf32>
    %377 = vector.extract_strided_slice %364 {offsets = [0, 256], sizes = [8, 128], strides = [1, 1]} : vector<8x512xf32> to vector<8x128xf32>
    %378 = math.tanh %377 : vector<8x128xf32>
    %379 = vector.extract_strided_slice %364 {offsets = [0, 384], sizes = [8, 128], strides = [1, 1]} : vector<8x512xf32> to vector<8x128xf32>
    %380 = arith.negf %379 : vector<8x128xf32>
    %381 = math.exp %380 : vector<8x128xf32>
    %cst_115 = arith.constant 1.000000e+00 : f32
    %382 = vector.broadcast %cst_115 : f32 to vector<8x128xf32>
    %383 = arith.addf %382, %381 : vector<8x128xf32>
    %384 = arith.divf %382, %383 : vector<8x128xf32>
    %385 = arith.mulf %376, %356 : vector<8x128xf32>
    %386 = arith.mulf %370, %378 : vector<8x128xf32>
    %387 = arith.addf %385, %386 : vector<8x128xf32>
    %388 = math.tanh %387 : vector<8x128xf32>
    %389 = arith.mulf %384, %388 : vector<8x128xf32>
    %c3_i32_116 = arith.constant 3 : i32
    %c8_i32_117 = arith.constant 8 : i32
    %390 = arith.muli %c3_i32_116, %c8_i32_117 : i32
    %391 = tpu.assume_multiple %390, 8 : i32
    %392 = arith.index_cast %391 : i32 to index
    %c0_118 = arith.constant 0 : index
    %393 = vector.load %arg13[%392, %c0_118] : memref<64x512xf32, #tpu.memory_space<vmem>>, vector<8x512xf32>
    %cst_119 = arith.constant dense<0.000000e+00> : vector<8x512xf32>
    %394 = tpu.matmul %389, %292, %cst_119 {dimension_numbers = #tpu.dot_dimension_numbers<[1], [0], [0], [1], [0, 0, 1, 1], [], []>} : vector<8x128xf32>, vector<128x512xf32>, vector<8x512xf32> -> vector<8x512xf32>
    %395 = arith.addf %393, %394 : vector<8x512xf32>
    %396 = vector.extract_strided_slice %395 {offsets = [0, 0], sizes = [8, 128], strides = [1, 1]} : vector<8x512xf32> to vector<8x128xf32>
    %397 = arith.negf %396 : vector<8x128xf32>
    %398 = math.exp %397 : vector<8x128xf32>
    %cst_120 = arith.constant 1.000000e+00 : f32
    %399 = vector.broadcast %cst_120 : f32 to vector<8x128xf32>
    %400 = arith.addf %399, %398 : vector<8x128xf32>
    %401 = arith.divf %399, %400 : vector<8x128xf32>
    %402 = vector.extract_strided_slice %395 {offsets = [0, 128], sizes = [8, 128], strides = [1, 1]} : vector<8x512xf32> to vector<8x128xf32>
    %403 = arith.negf %402 : vector<8x128xf32>
    %404 = math.exp %403 : vector<8x128xf32>
    %cst_121 = arith.constant 1.000000e+00 : f32
    %405 = vector.broadcast %cst_121 : f32 to vector<8x128xf32>
    %406 = arith.addf %405, %404 : vector<8x128xf32>
    %407 = arith.divf %405, %406 : vector<8x128xf32>
    %408 = vector.extract_strided_slice %395 {offsets = [0, 256], sizes = [8, 128], strides = [1, 1]} : vector<8x512xf32> to vector<8x128xf32>
    %409 = math.tanh %408 : vector<8x128xf32>
    %410 = vector.extract_strided_slice %395 {offsets = [0, 384], sizes = [8, 128], strides = [1, 1]} : vector<8x512xf32> to vector<8x128xf32>
    %411 = arith.negf %410 : vector<8x128xf32>
    %412 = math.exp %411 : vector<8x128xf32>
    %cst_122 = arith.constant 1.000000e+00 : f32
    %413 = vector.broadcast %cst_122 : f32 to vector<8x128xf32>
    %414 = arith.addf %413, %412 : vector<8x128xf32>
    %415 = arith.divf %413, %414 : vector<8x128xf32>
    %416 = arith.mulf %407, %387 : vector<8x128xf32>
    %417 = arith.mulf %401, %409 : vector<8x128xf32>
    %418 = arith.addf %416, %417 : vector<8x128xf32>
    %419 = math.tanh %418 : vector<8x128xf32>
    %420 = arith.mulf %415, %419 : vector<8x128xf32>
    %c4_i32_123 = arith.constant 4 : i32
    %c8_i32_124 = arith.constant 8 : i32
    %421 = arith.muli %c4_i32_123, %c8_i32_124 : i32
    %422 = tpu.assume_multiple %421, 8 : i32
    %423 = arith.index_cast %422 : i32 to index
    %c0_125 = arith.constant 0 : index
    %424 = vector.load %arg13[%423, %c0_125] : memref<64x512xf32, #tpu.memory_space<vmem>>, vector<8x512xf32>
    %cst_126 = arith.constant dense<0.000000e+00> : vector<8x512xf32>
    %425 = tpu.matmul %420, %292, %cst_126 {dimension_numbers = #tpu.dot_dimension_numbers<[1], [0], [0], [1], [0, 0, 1, 1], [], []>} : vector<8x128xf32>, vector<128x512xf32>, vector<8x512xf32> -> vector<8x512xf32>
    %426 = arith.addf %424, %425 : vector<8x512xf32>
    %427 = vector.extract_strided_slice %426 {offsets = [0, 0], sizes = [8, 128], strides = [1, 1]} : vector<8x512xf32> to vector<8x128xf32>
    %428 = arith.negf %427 : vector<8x128xf32>
    %429 = math.exp %428 : vector<8x128xf32>
    %cst_127 = arith.constant 1.000000e+00 : f32
    %430 = vector.broadcast %cst_127 : f32 to vector<8x128xf32>
    %431 = arith.addf %430, %429 : vector<8x128xf32>
    %432 = arith.divf %430, %431 : vector<8x128xf32>
    %433 = vector.extract_strided_slice %426 {offsets = [0, 128], sizes = [8, 128], strides = [1, 1]} : vector<8x512xf32> to vector<8x128xf32>
    %434 = arith.negf %433 : vector<8x128xf32>
    %435 = math.exp %434 : vector<8x128xf32>
    %cst_128 = arith.constant 1.000000e+00 : f32
    %436 = vector.broadcast %cst_128 : f32 to vector<8x128xf32>
    %437 = arith.addf %436, %435 : vector<8x128xf32>
    %438 = arith.divf %436, %437 : vector<8x128xf32>
    %439 = vector.extract_strided_slice %426 {offsets = [0, 256], sizes = [8, 128], strides = [1, 1]} : vector<8x512xf32> to vector<8x128xf32>
    %440 = math.tanh %439 : vector<8x128xf32>
    %441 = vector.extract_strided_slice %426 {offsets = [0, 384], sizes = [8, 128], strides = [1, 1]} : vector<8x512xf32> to vector<8x128xf32>
    %442 = arith.negf %441 : vector<8x128xf32>
    %443 = math.exp %442 : vector<8x128xf32>
    %cst_129 = arith.constant 1.000000e+00 : f32
    %444 = vector.broadcast %cst_129 : f32 to vector<8x128xf32>
    %445 = arith.addf %444, %443 : vector<8x128xf32>
    %446 = arith.divf %444, %445 : vector<8x128xf32>
    %447 = arith.mulf %438, %418 : vector<8x128xf32>
    %448 = arith.mulf %432, %440 : vector<8x128xf32>
    %449 = arith.addf %447, %448 : vector<8x128xf32>
    %450 = math.tanh %449 : vector<8x128xf32>
    %451 = arith.mulf %446, %450 : vector<8x128xf32>
    %c5_i32_130 = arith.constant 5 : i32
    %c8_i32_131 = arith.constant 8 : i32
    %452 = arith.muli %c5_i32_130, %c8_i32_131 : i32
    %453 = tpu.assume_multiple %452, 8 : i32
    %454 = arith.index_cast %453 : i32 to index
    %c0_132 = arith.constant 0 : index
    %455 = vector.load %arg13[%454, %c0_132] : memref<64x512xf32, #tpu.memory_space<vmem>>, vector<8x512xf32>
    %cst_133 = arith.constant dense<0.000000e+00> : vector<8x512xf32>
    %456 = tpu.matmul %451, %292, %cst_133 {dimension_numbers = #tpu.dot_dimension_numbers<[1], [0], [0], [1], [0, 0, 1, 1], [], []>} : vector<8x128xf32>, vector<128x512xf32>, vector<8x512xf32> -> vector<8x512xf32>
    %457 = arith.addf %455, %456 : vector<8x512xf32>
    %458 = vector.extract_strided_slice %457 {offsets = [0, 0], sizes = [8, 128], strides = [1, 1]} : vector<8x512xf32> to vector<8x128xf32>
    %459 = arith.negf %458 : vector<8x128xf32>
    %460 = math.exp %459 : vector<8x128xf32>
    %cst_134 = arith.constant 1.000000e+00 : f32
    %461 = vector.broadcast %cst_134 : f32 to vector<8x128xf32>
    %462 = arith.addf %461, %460 : vector<8x128xf32>
    %463 = arith.divf %461, %462 : vector<8x128xf32>
    %464 = vector.extract_strided_slice %457 {offsets = [0, 128], sizes = [8, 128], strides = [1, 1]} : vector<8x512xf32> to vector<8x128xf32>
    %465 = arith.negf %464 : vector<8x128xf32>
    %466 = math.exp %465 : vector<8x128xf32>
    %cst_135 = arith.constant 1.000000e+00 : f32
    %467 = vector.broadcast %cst_135 : f32 to vector<8x128xf32>
    %468 = arith.addf %467, %466 : vector<8x128xf32>
    %469 = arith.divf %467, %468 : vector<8x128xf32>
    %470 = vector.extract_strided_slice %457 {offsets = [0, 256], sizes = [8, 128], strides = [1, 1]} : vector<8x512xf32> to vector<8x128xf32>
    %471 = math.tanh %470 : vector<8x128xf32>
    %472 = vector.extract_strided_slice %457 {offsets = [0, 384], sizes = [8, 128], strides = [1, 1]} : vector<8x512xf32> to vector<8x128xf32>
    %473 = arith.negf %472 : vector<8x128xf32>
    %474 = math.exp %473 : vector<8x128xf32>
    %cst_136 = arith.constant 1.000000e+00 : f32
    %475 = vector.broadcast %cst_136 : f32 to vector<8x128xf32>
    %476 = arith.addf %475, %474 : vector<8x128xf32>
    %477 = arith.divf %475, %476 : vector<8x128xf32>
    %478 = arith.mulf %469, %449 : vector<8x128xf32>
    %479 = arith.mulf %463, %471 : vector<8x128xf32>
    %480 = arith.addf %478, %479 : vector<8x128xf32>
    %481 = math.tanh %480 : vector<8x128xf32>
    %482 = arith.mulf %477, %481 : vector<8x128xf32>
    %c6_i32_137 = arith.constant 6 : i32
    %c8_i32_138 = arith.constant 8 : i32
    %483 = arith.muli %c6_i32_137, %c8_i32_138 : i32
    %484 = tpu.assume_multiple %483, 8 : i32
    %485 = arith.index_cast %484 : i32 to index
    %c0_139 = arith.constant 0 : index
    %486 = vector.load %arg13[%485, %c0_139] : memref<64x512xf32, #tpu.memory_space<vmem>>, vector<8x512xf32>
    %cst_140 = arith.constant dense<0.000000e+00> : vector<8x512xf32>
    %487 = tpu.matmul %482, %292, %cst_140 {dimension_numbers = #tpu.dot_dimension_numbers<[1], [0], [0], [1], [0, 0, 1, 1], [], []>} : vector<8x128xf32>, vector<128x512xf32>, vector<8x512xf32> -> vector<8x512xf32>
    %488 = arith.addf %486, %487 : vector<8x512xf32>
    %489 = vector.extract_strided_slice %488 {offsets = [0, 0], sizes = [8, 128], strides = [1, 1]} : vector<8x512xf32> to vector<8x128xf32>
    %490 = arith.negf %489 : vector<8x128xf32>
    %491 = math.exp %490 : vector<8x128xf32>
    %cst_141 = arith.constant 1.000000e+00 : f32
    %492 = vector.broadcast %cst_141 : f32 to vector<8x128xf32>
    %493 = arith.addf %492, %491 : vector<8x128xf32>
    %494 = arith.divf %492, %493 : vector<8x128xf32>
    %495 = vector.extract_strided_slice %488 {offsets = [0, 128], sizes = [8, 128], strides = [1, 1]} : vector<8x512xf32> to vector<8x128xf32>
    %496 = arith.negf %495 : vector<8x128xf32>
    %497 = math.exp %496 : vector<8x128xf32>
    %cst_142 = arith.constant 1.000000e+00 : f32
    %498 = vector.broadcast %cst_142 : f32 to vector<8x128xf32>
    %499 = arith.addf %498, %497 : vector<8x128xf32>
    %500 = arith.divf %498, %499 : vector<8x128xf32>
    %501 = vector.extract_strided_slice %488 {offsets = [0, 256], sizes = [8, 128], strides = [1, 1]} : vector<8x512xf32> to vector<8x128xf32>
    %502 = math.tanh %501 : vector<8x128xf32>
    %503 = vector.extract_strided_slice %488 {offsets = [0, 384], sizes = [8, 128], strides = [1, 1]} : vector<8x512xf32> to vector<8x128xf32>
    %504 = arith.negf %503 : vector<8x128xf32>
    %505 = math.exp %504 : vector<8x128xf32>
    %cst_143 = arith.constant 1.000000e+00 : f32
    %506 = vector.broadcast %cst_143 : f32 to vector<8x128xf32>
    %507 = arith.addf %506, %505 : vector<8x128xf32>
    %508 = arith.divf %506, %507 : vector<8x128xf32>
    %509 = arith.mulf %500, %480 : vector<8x128xf32>
    %510 = arith.mulf %494, %502 : vector<8x128xf32>
    %511 = arith.addf %509, %510 : vector<8x128xf32>
    %512 = math.tanh %511 : vector<8x128xf32>
    %513 = arith.mulf %508, %512 : vector<8x128xf32>
    %c7_i32_144 = arith.constant 7 : i32
    %c8_i32_145 = arith.constant 8 : i32
    %514 = arith.muli %c7_i32_144, %c8_i32_145 : i32
    %515 = tpu.assume_multiple %514, 8 : i32
    %516 = arith.index_cast %515 : i32 to index
    %c0_146 = arith.constant 0 : index
    %517 = vector.load %arg13[%516, %c0_146] : memref<64x512xf32, #tpu.memory_space<vmem>>, vector<8x512xf32>
    %cst_147 = arith.constant dense<0.000000e+00> : vector<8x512xf32>
    %518 = tpu.matmul %513, %292, %cst_147 {dimension_numbers = #tpu.dot_dimension_numbers<[1], [0], [0], [1], [0, 0, 1, 1], [], []>} : vector<8x128xf32>, vector<128x512xf32>, vector<8x512xf32> -> vector<8x512xf32>
    %519 = arith.addf %517, %518 : vector<8x512xf32>
    %520 = vector.extract_strided_slice %519 {offsets = [0, 0], sizes = [8, 128], strides = [1, 1]} : vector<8x512xf32> to vector<8x128xf32>
    %521 = arith.negf %520 : vector<8x128xf32>
    %522 = math.exp %521 : vector<8x128xf32>
    %cst_148 = arith.constant 1.000000e+00 : f32
    %523 = vector.broadcast %cst_148 : f32 to vector<8x128xf32>
    %524 = arith.addf %523, %522 : vector<8x128xf32>
    %525 = arith.divf %523, %524 : vector<8x128xf32>
    %526 = vector.extract_strided_slice %519 {offsets = [0, 128], sizes = [8, 128], strides = [1, 1]} : vector<8x512xf32> to vector<8x128xf32>
    %527 = arith.negf %526 : vector<8x128xf32>
    %528 = math.exp %527 : vector<8x128xf32>
    %cst_149 = arith.constant 1.000000e+00 : f32
    %529 = vector.broadcast %cst_149 : f32 to vector<8x128xf32>
    %530 = arith.addf %529, %528 : vector<8x128xf32>
    %531 = arith.divf %529, %530 : vector<8x128xf32>
    %532 = vector.extract_strided_slice %519 {offsets = [0, 256], sizes = [8, 128], strides = [1, 1]} : vector<8x512xf32> to vector<8x128xf32>
    %533 = math.tanh %532 : vector<8x128xf32>
    %534 = vector.extract_strided_slice %519 {offsets = [0, 384], sizes = [8, 128], strides = [1, 1]} : vector<8x512xf32> to vector<8x128xf32>
    %535 = arith.negf %534 : vector<8x128xf32>
    %536 = math.exp %535 : vector<8x128xf32>
    %cst_150 = arith.constant 1.000000e+00 : f32
    %537 = vector.broadcast %cst_150 : f32 to vector<8x128xf32>
    %538 = arith.addf %537, %536 : vector<8x128xf32>
    %539 = arith.divf %537, %538 : vector<8x128xf32>
    %540 = arith.mulf %531, %511 : vector<8x128xf32>
    %541 = arith.mulf %525, %533 : vector<8x128xf32>
    %542 = arith.addf %540, %541 : vector<8x128xf32>
    %543 = math.tanh %542 : vector<8x128xf32>
    %544 = arith.mulf %539, %543 : vector<8x128xf32>
    %c8_i32_151 = arith.constant 8 : i32
    %c1_152 = arith.constant 1 : index
    %c0_153 = arith.constant 0 : index
    %c0_154 = arith.constant 0 : index
    %545 = vector.load %arg11[%c1_152, %c0_153, %c0_154] : memref<2x8x128xf32, #tpu.memory_space<vmem>>, vector<1x8x128xf32>
    %546 = vector.shape_cast %545 : vector<1x8x128xf32> to vector<8x128xf32>
    %547 = vector.shape_cast %544 : vector<8x128xf32> to vector<1x8x128xf32>
    tpu.vector_store %arg11[%c1_152, %c0_153, %c0_154], %547 {strides = array<i32>} : memref<2x8x128xf32, #tpu.memory_space<vmem>>, vector<1x8x128xf32>,
    %c1_155 = arith.constant 1 : index
    %c0_156 = arith.constant 0 : index
    %c0_157 = arith.constant 0 : index
    %548 = vector.load %arg12[%c1_155, %c0_156, %c0_157] : memref<2x8x128xf32, #tpu.memory_space<vmem>>, vector<1x8x128xf32>
    %549 = vector.shape_cast %548 : vector<1x8x128xf32> to vector<8x128xf32>
    %550 = vector.shape_cast %542 : vector<8x128xf32> to vector<1x8x128xf32>
    tpu.vector_store %arg12[%c1_155, %c0_156, %c0_157], %550 {strides = array<i32>} : memref<2x8x128xf32, #tpu.memory_space<vmem>>, vector<1x8x128xf32>,
    %c0_i32_158 = arith.constant 0 : i32
    %551 = arith.cmpi eq, %arg0, %c0_i32_158 : i32
    %552 = arith.extui %551 : i1 to i32
    %c0_i32_159 = arith.constant 0 : i32
    %553 = arith.cmpi ne, %552, %c0_i32_159 : i32
    scf.if %553 {
      %c0_160 = arith.constant 0 : index
      %c0_161 = arith.constant 0 : index
      %554 = vector.load %arg8[%c0_160, %c0_161] : memref<128x128xf32, #tpu.memory_space<vmem>>, vector<128x128xf32>
      %cst_162 = arith.constant dense<0.000000e+00> : vector<8x128xf32>
      %555 = tpu.matmul %544, %554, %cst_162 {dimension_numbers = #tpu.dot_dimension_numbers<[1], [0], [0], [1], [0, 0, 1, 1], [], []>} : vector<8x128xf32>, vector<128x128xf32>, vector<8x128xf32> -> vector<8x128xf32>
      %c0_163 = arith.constant 0 : index
      %c0_164 = arith.constant 0 : index
      %556 = vector.load %arg9[%c0_163, %c0_164] : memref<1x128xf32, #tpu.memory_space<vmem>>, vector<1x128xf32>
      %557 = vector.broadcast %556 : vector<1x128xf32> to vector<8x128xf32>
      %558 = arith.addf %555, %557 : vector<8x128xf32>
      %c0_165 = arith.constant 0 : index
      %c0_166 = arith.constant 0 : index
      %559 = vector.load %arg10[%c0_165, %c0_166] : memref<8x128xf32, #tpu.memory_space<vmem>>, vector<8x128xf32>
      tpu.vector_store %arg10[%c0_165, %c0_166], %558 {strides = array<i32>} : memref<8x128xf32, #tpu.memory_space<vmem>>, vector<8x128xf32>,
    } else {
    }
    return
  }
  func.func @transform_0(%arg0: i32) -> (i32, i32) {
    %c0_i32 = arith.constant 0 : i32
    %c0_i32_0 = arith.constant 0 : i32
    return %arg0, %c0_i32 : i32, i32
  }
  func.func @transform_1(%arg0: i32) -> (i32, i32) {
    %c0_i32 = arith.constant 0 : i32
    %c0_i32_0 = arith.constant 0 : i32
    %c0_i32_1 = arith.constant 0 : i32
    return %c0_i32, %c0_i32_0 : i32, i32
  }
  func.func @transform_2(%arg0: i32) -> (i32, i32) {
    %c0_i32 = arith.constant 0 : i32
    %c0_i32_0 = arith.constant 0 : i32
    %c0_i32_1 = arith.constant 0 : i32
    return %c0_i32, %c0_i32_0 : i32, i32
  }
  func.func @transform_3(%arg0: i32) -> (i32, i32) {
    %c0_i32 = arith.constant 0 : i32
    %c0_i32_0 = arith.constant 0 : i32
    %c0_i32_1 = arith.constant 0 : i32
    return %c0_i32, %c0_i32_0 : i32, i32
  }
  func.func @transform_4(%arg0: i32) -> (i32, i32) {
    %c0_i32 = arith.constant 0 : i32
    %c0_i32_0 = arith.constant 0 : i32
    %c0_i32_1 = arith.constant 0 : i32
    return %c0_i32, %c0_i32_0 : i32, i32
  }
  func.func @transform_5(%arg0: i32) -> (i32, i32) {
    %c0_i32 = arith.constant 0 : i32
    %c0_i32_0 = arith.constant 0 : i32
    %c0_i32_1 = arith.constant 0 : i32
    return %c0_i32, %c0_i32_0 : i32, i32
  }
  func.func @transform_6(%arg0: i32) -> (i32, i32) {
    %c0_i32 = arith.constant 0 : i32
    %c0_i32_0 = arith.constant 0 : i32
    %c0_i32_1 = arith.constant 0 : i32
    return %c0_i32, %c0_i32_0 : i32, i32
  }
  func.func @transform_7(%arg0: i32) -> (i32, i32) {
    %c0_i32 = arith.constant 0 : i32
    %c0_i32_0 = arith.constant 0 : i32
    %c0_i32_1 = arith.constant 0 : i32
    return %c0_i32, %c0_i32_0 : i32, i32
  }
  func.func @transform_8(%arg0: i32) -> (i32, i32) {
    %c0_i32 = arith.constant 0 : i32
    %c0_i32_0 = arith.constant 0 : i32
    %c0_i32_1 = arith.constant 0 : i32
    return %c0_i32, %c0_i32_0 : i32, i32
  }
  func.func @transform_9(%arg0: i32) -> (i32, i32) {
    %c0_i32 = arith.constant 0 : i32
    %c0_i32_0 = arith.constant 0 : i32
    %c0_i32_1 = arith.constant 0 : i32
    return %c0_i32, %c0_i32_0 : i32, i32
  }
}

</mosaic_0001>

<llo_original>
// kernel: lstm_model_forward.1
$region0: #{lstm_model_forward.1}
  #allocation0 [shape = 'u32[]', space=smem, size = 0x4, offset = 0x4, fixed_abs, tag = 'smem constant byte address 0x4 - core index']
  #allocation1 [shape = 'u32[144,128]{1,0:T(1,128)}', space=vmem, size = 0x12000, scoped, tag = 'internal scratch']
  #allocation2 [shape = 'f32[2,8,128]{2,1,0:T(8,128)}', space=vmem, size = 0x2000, scoped, tag = 'scratch operand']
  #allocation3 [shape = 'f32[2,8,128]{2,1,0:T(8,128)}', space=vmem, size = 0x2000, scoped, tag = 'scratch operand']
  #allocation4 [shape = 'f32[64,512]{1,0:T(8,128)}', space=vmem, size = 0x20000, scoped, tag = 'scratch operand']
  #allocation5 [shape = 'f32[64,128]{1,0:T(8,128)}', space=vmem, size = 0x8000, scoped, tag = 'scratch operand']
  #allocation6 [shape = 'f32[64,128]{1,0:T(8,128)}', space=vmem, size = 0x8000, scoped, tag = 'scratch operand']
  %s0 = inlined_call_operand.vmem [shape: f32[64,4], index: 0, kind: input, shape index: {}]
  %s1 = inlined_call_operand.vmem [shape: f32[4,512], index: 1, kind: input, shape index: {}]
  %s2 = inlined_call_operand.vmem [shape: f32[128,512], index: 2, kind: input, shape index: {}]
  %s3 = inlined_call_operand.vmem [shape: f32[1,512], index: 3, kind: input, shape index: {}]
  %s4 = inlined_call_operand.vmem [shape: f32[128,512], index: 4, kind: input, shape index: {}]
  %s5 = inlined_call_operand.vmem [shape: f32[128,512], index: 5, kind: input, shape index: {}]
  %s6 = inlined_call_operand.vmem [shape: f32[1,512], index: 6, kind: input, shape index: {}]
  %s7 = inlined_call_operand.vmem [shape: f32[128,128], index: 7, kind: input, shape index: {}]
  %s8 = inlined_call_operand.vmem [shape: f32[1,128], index: 8, kind: input, shape index: {}]
  %s9 = inlined_call_operand.vmem [shape: f32[8,128], index: 9, kind: output, shape index: {}]
  %s10 = sld [smem:[#allocation0]]
  $region54: #{lstm_model_forward.1} parent=0
    _
  %s12 = ssub.s32 1, %s10
  %s13 = scalar_select 0, %s12, %s10
  // Predicated region
  $region2: #{lstm_model_forward.1} parent=0 // pred_check
    _
  $region3: #{lstm_model_forward.1} parent=0 // pred_check_branch
    %15 = sbr.rel (0) target = $region5
  $region4: #{lstm_model_forward.1} parent=0 // pred_region
    _
  $region5: #{lstm_model_forward.1} parent=0 // pred_fallthru
    _
  // Predicated region
  $region6: #{lstm_model_forward.1} parent=0 // pred_check
    _
  $region7: #{lstm_model_forward.1} parent=0 // pred_check_branch
    %17 = sbr.rel (0) target = $region9
  $region8: #{lstm_model_forward.1} parent=0 // pred_region
    _
  $region9: #{lstm_model_forward.1} parent=0 // pred_fallthru
    _
  // Predicated region
  $region10: #{lstm_model_forward.1} parent=0 // pred_check
    _
  $region11: #{lstm_model_forward.1} parent=0 // pred_check_branch
    %19 = sbr.rel (0) target = $region13
  $region12: #{lstm_model_forward.1} parent=0 // pred_region
    _
  $region13: #{lstm_model_forward.1} parent=0 // pred_fallthru
    _
  // Predicated region
  $region14: #{lstm_model_forward.1} parent=0 // pred_check
    _
  $region15: #{lstm_model_forward.1} parent=0 // pred_check_branch
    %21 = sbr.rel (0) target = $region17
  $region16: #{lstm_model_forward.1} parent=0 // pred_region
    _
  $region17: #{lstm_model_forward.1} parent=0 // pred_fallthru
    _
  // Predicated region
  $region18: #{lstm_model_forward.1} parent=0 // pred_check
    _
  $region19: #{lstm_model_forward.1} parent=0 // pred_check_branch
    %23 = sbr.rel (0) target = $region21
  $region20: #{lstm_model_forward.1} parent=0 // pred_region
    _
  $region21: #{lstm_model_forward.1} parent=0 // pred_fallthru
    _
  // Predicated region
  $region22: #{lstm_model_forward.1} parent=0 // pred_check
    _
  $region23: #{lstm_model_forward.1} parent=0 // pred_check_branch
    %25 = sbr.rel (0) target = $region25
  $region24: #{lstm_model_forward.1} parent=0 // pred_region
    _
  $region25: #{lstm_model_forward.1} parent=0 // pred_fallthru
    _
  // Predicated region
  $region26: #{lstm_model_forward.1} parent=0 // pred_check
    _
  $region27: #{lstm_model_forward.1} parent=0 // pred_check_branch
    %27 = sbr.rel (0) target = $region29
  $region28: #{lstm_model_forward.1} parent=0 // pred_region
    _
  $region29: #{lstm_model_forward.1} parent=0 // pred_fallthru
    _
  // Predicated region
  $region30: #{lstm_model_forward.1} parent=0 // pred_check
    _
  $region31: #{lstm_model_forward.1} parent=0 // pred_check_branch
    %29 = sbr.rel (0) target = $region33
  $region32: #{lstm_model_forward.1} parent=0 // pred_region
    _
  $region33: #{lstm_model_forward.1} parent=0 // pred_fallthru
    _
  // Predicated region
  $region34: #{lstm_model_forward.1} parent=0 // pred_check
    _
  $region35: #{lstm_model_forward.1} parent=0 // pred_check_branch
    %31 = sbr.rel (0) target = $region37
  $region36: #{lstm_model_forward.1} parent=0 // pred_region
    _
  $region37: #{lstm_model_forward.1} parent=0 // pred_fallthru
    _
  %p32 = scmp.eq.s32.totalorder 0, 0
  // Predicated region
  $region38: #{lstm_model_forward.1} parent=0 // pred_check
    %p33 = pneg %p32
  $region39: #{lstm_model_forward.1} parent=0 // pred_check_branch
    %35 = sbr.rel (%p33) target = $region41
  $region40: #{lstm_model_forward.1} parent=0 // pred_region
    %36 = vst [vmem:[#allocation2] sm:$0xff] 0.0
    %37 = vst [vmem:[#allocation2 + $0x8] sm:$0xff] 0.0
    %38 = vst [vmem:[#allocation3] sm:$0xff] 0.0
    %39 = vst [vmem:[#allocation3 + $0x8] sm:$0xff] 0.0
  $region41: #{lstm_model_forward.1} parent=0 // pred_fallthru
    _
  %v40 = vld [vmem:[%s0] sm:$0xff]
  %v41 = vld [vmem:[%s0 + $0x8] sm:$0xff]
  %v42 = vld [vmem:[%s0 + $0x10] sm:$0xff]
  %v43 = vld [vmem:[%s0 + $0x18] sm:$0xff]
  %v44 = vld [vmem:[%s0 + $0x20] sm:$0xff]
  %v45 = vld [vmem:[%s0 + $0x28] sm:$0xff]
  %v46 = vld [vmem:[%s0 + $0x30] sm:$0xff]
  %v47 = vld [vmem:[%s0 + $0x38] sm:$0xff]
  %v48 = vld [vmem:[%s1] sm:$0xff]
  %v49 = vld [vmem:[%s1 + $0x8] sm:$0xff]
  %v50 = vld [vmem:[%s3] sm:$0xf]
  %v52 = vlaneseq
  %v53 = vshrl.u32 %v52, 7
  %v54 = vsub.s32 0, %v53
  %v55 = vrot.slane %v50, %v54
  %v56 = vlaneseq
  %v57 = vshrl.u32 %v56, 7
  %v58 = vsub.s32 1, %v57
  %v59 = vrot.slane %v50, %v58
  %v60 = vlaneseq
  %v61 = vshrl.u32 %v60, 7
  %v62 = vsub.s32 2, %v61
  %v63 = vrot.slane %v50, %v62
  %v64 = vlaneseq
  %v65 = vshrl.u32 %v64, 7
  %v66 = vsub.s32 3, %v65
  %v67 = vrot.slane %v50, %v66
  %v74 = vcombine.high %v48, %v48
  %v75 = vcombine.high %v49, %v49
  %vm76 = vcmask 31744
  %v78 = vsel %vm76, %v40, 0
  %v81 = vsel %vm76, %v41, 0
  %v84 = vsel %vm76, %v42, 0
  %v87 = vsel %vm76, %v43, 0
  %v90 = vsel %vm76, %v44, 0
  %v93 = vsel %vm76, %v45, 0
  %v96 = vsel %vm76, %v46, 0
  %v99 = vsel %vm76, %v47, 0
  %vm101 = vcmask 1043456
  %v102 = vsel %vm101, %v48, 0
  %v104 = vsel %vm101, %v74, 0
  %v106 = vsel %vm101, %v49, 0
  %v108 = vsel %vm101, %v75, 0
  %110 = vmatprep.subr.mxu0 0.0
  %111 = vmatpush1.msra.mxu0 0.0
  %112 = vmatprep.subr.mxu0 0.0
  %113 = vmatpush1.msra.mxu0 0.0
  %114 = vmatprep.subr.mxu0 0.0
  %115 = vmatpush1.msra.mxu0 0.0
  %116 = vmatprep.subr.mxu0 0.0
  %117 = vmatpush1.msra.mxu0 0.0
  %118 = vmatprep.subr.mxu0 0.0
  %119 = vmatpush1.msra.mxu0 0.0
  %120 = vmatprep.subr.mxu0 0.0
  %121 = vmatpush1.msra.mxu0 0.0
  %122 = vmatprep.subr.mxu0 0.0
  %123 = vmatpush1.msra.mxu0 0.0
  %124 = vmatprep.subr.mxu0 0.0
  %125 = vmatpush1.msra.mxu0 0.0
  %126 = vmatprep.subr.mxu0 0.0
  %127 = vmatpush1.msra.mxu0 0.0
  %128 = vmatprep.subr.mxu0 0.0
  %129 = vmatpush1.msra.mxu0 0.0
  %130 = vmatprep.subr.mxu0 0.0
  %131 = vmatpush1.msra.mxu0 0.0
  %132 = vmatprep.subr.mxu0 0.0
  %133 = vmatpush1.msra.mxu0 0.0
  %134 = vmatprep.subr.mxu0 0.0
  %135 = vmatpush1.msra.mxu0 0.0
  %136 = vmatprep.subr.mxu0 0.0
  %137 = vmatpush1.msra.mxu0 0.0
  %138 = vmatprep.subr.mxu0 0.0
  %139 = vmatpush1.msra.mxu0 0.0
  %140 = vmatprep.subr.mxu0 %v104
  %141 = vmatpush1.msra.mxu0 %v102
  %142 = vmatprep.subr.mxu0 0.0
  %143 = vmatpush2.msra.mxu0 0.0
  %144 = vmatprep.subr.mxu0 0.0
  %145 = vmatpush2.msra.mxu0 0.0
  %146 = vmatprep.subr.mxu0 0.0
  %147 = vmatpush2.msra.mxu0 0.0
  %148 = vmatprep.subr.mxu0 0.0
  %149 = vmatpush2.msra.mxu0 0.0
  %150 = vmatprep.subr.mxu0 0.0
  %151 = vmatpush2.msra.mxu0 0.0
  %152 = vmatprep.subr.mxu0 0.0
  %153 = vmatpush2.msra.mxu0 0.0
  %154 = vmatprep.subr.mxu0 0.0
  %155 = vmatpush2.msra.mxu0 0.0
  %156 = vmatprep.subr.mxu0 0.0
  %157 = vmatpush2.msra.mxu0 0.0
  %158 = vmatprep.subr.mxu0 0.0
  %159 = vmatpush2.msra.mxu0 0.0
  %160 = vmatprep.subr.mxu0 0.0
  %161 = vmatpush2.msra.mxu0 0.0
  %162 = vmatprep.subr.mxu0 0.0
  %163 = vmatpush2.msra.mxu0 0.0
  %164 = vmatprep.subr.mxu0 0.0
  %165 = vmatpush2.msra.mxu0 0.0
  %166 = vmatprep.subr.mxu0 0.0
  %167 = vmatpush2.msra.mxu0 0.0
  %168 = vmatprep.subr.mxu0 0.0
  %169 = vmatpush2.msra.mxu0 0.0
  %170 = vmatprep.subr.mxu0 0.0
  %171 = vmatpush2.msra.mxu0 0.0
  %172 = vmatprep.subr.mxu0 0.0
  %173 = vmatpush2.msra.mxu0 0.0
  %174 = vmatprep.mubr.f32.mxu0 0.0
  %175 = vmatmul.mubr.f32.gmra.mxu0 %v78
  %v176 = vpop.f32.mrf.mxu0
  %v177 = vadd.f32 %v55, %v176
  %v178 = vpop.f32.mrf.mxu0
  %v179 = vadd.f32 %v59, %v178
  %180 = vmatprep.mubr.f32.mxu0 0.0
  %181 = vmatmul.mubr.f32.gmra.mxu0 %v81
  %v182 = vpop.f32.mrf.mxu0
  %v183 = vadd.f32 %v55, %v182
  %v184 = vpop.f32.mrf.mxu0
  %v185 = vadd.f32 %v59, %v184
  %186 = vmatprep.mubr.f32.mxu0 0.0
  %187 = vmatmul.mubr.f32.gmra.mxu0 %v84
  %v188 = vpop.f32.mrf.mxu0
  %v189 = vadd.f32 %v55, %v188
  %v190 = vpop.f32.mrf.mxu0
  %v191 = vadd.f32 %v59, %v190
  %192 = vmatprep.mubr.f32.mxu0 0.0
  %193 = vmatmul.mubr.f32.gmra.mxu0 %v87
  %v194 = vpop.f32.mrf.mxu0
  %v195 = vadd.f32 %v55, %v194
  %v196 = vpop.f32.mrf.mxu0
  %v197 = vadd.f32 %v59, %v196
  %198 = vmatprep.mubr.f32.mxu0 0.0
  %199 = vmatmul.mubr.f32.gmra.mxu0 %v90
  %v200 = vpop.f32.mrf.mxu0
  %v201 = vadd.f32 %v55, %v200
  %v202 = vpop.f32.mrf.mxu0
  %v203 = vadd.f32 %v59, %v202
  %204 = vmatprep.mubr.f32.mxu0 0.0
  %205 = vmatmul.mubr.f32.gmra.mxu0 %v93
  %v206 = vpop.f32.mrf.mxu0
  %v207 = vadd.f32 %v55, %v206
  %v208 = vpop.f32.mrf.mxu0
  %v209 = vadd.f32 %v59, %v208
  %210 = vmatprep.mubr.f32.mxu0 0.0
  %211 = vmatmul.mubr.f32.gmra.mxu0 %v96
  %v212 = vpop.f32.mrf.mxu0
  %v213 = vadd.f32 %v55, %v212
  %v214 = vpop.f32.mrf.mxu0
  %v215 = vadd.f32 %v59, %v214
  %216 = vmatprep.mubr.f32.mxu0 0.0
  %217 = vmatmul.mubr.f32.gmra.mxu0 %v99
  %v218 = vpop.f32.mrf.mxu0
  %v219 = vadd.f32 %v55, %v218
  %v220 = vpop.f32.mrf.mxu0
  %v221 = vadd.f32 %v59, %v220
  %222 = vdwg.mxu0
  %223 = vmatprep.subr.mxu0 0.0
  %224 = vmatpush1.msra.mxu0 0.0
  %225 = vmatprep.subr.mxu0 0.0
  %226 = vmatpush1.msra.mxu0 0.0
  %227 = vmatprep.subr.mxu0 0.0
  %228 = vmatpush1.msra.mxu0 0.0
  %229 = vmatprep.subr.mxu0 0.0
  %230 = vmatpush1.msra.mxu0 0.0
  %231 = vmatprep.subr.mxu0 0.0
  %232 = vmatpush1.msra.mxu0 0.0
  %233 = vmatprep.subr.mxu0 0.0
  %234 = vmatpush1.msra.mxu0 0.0
  %235 = vmatprep.subr.mxu0 0.0
  %236 = vmatpush1.msra.mxu0 0.0
  %237 = vmatprep.subr.mxu0 0.0
  %238 = vmatpush1.msra.mxu0 0.0
  %239 = vmatprep.subr.mxu0 0.0
  %240 = vmatpush1.msra.mxu0 0.0
  %241 = vmatprep.subr.mxu0 0.0
  %242 = vmatpush1.msra.mxu0 0.0
  %243 = vmatprep.subr.mxu0 0.0
  %244 = vmatpush1.msra.mxu0 0.0
  %245 = vmatprep.subr.mxu0 0.0
  %246 = vmatpush1.msra.mxu0 0.0
  %247 = vmatprep.subr.mxu0 0.0
  %248 = vmatpush1.msra.mxu0 0.0
  %249 = vmatprep.subr.mxu0 0.0
  %250 = vmatpush1.msra.mxu0 0.0
  %251 = vmatprep.subr.mxu0 0.0
  %252 = vmatpush1.msra.mxu0 0.0
  %253 = vmatprep.subr.mxu0 %v108
  %254 = vmatpush1.msra.mxu0 %v106
  %255 = vmatprep.subr.mxu0 0.0
  %256 = vmatpush2.msra.mxu0 0.0
  %257 = vmatprep.subr.mxu0 0.0
  %258 = vmatpush2.msra.mxu0 0.0
  %259 = vmatprep.subr.mxu0 0.0
  %260 = vmatpush2.msra.mxu0 0.0
  %261 = vmatprep.subr.mxu0 0.0
  %262 = vmatpush2.msra.mxu0 0.0
  %263 = vmatprep.subr.mxu0 0.0
  %264 = vmatpush2.msra.mxu0 0.0
  %265 = vmatprep.subr.mxu0 0.0
  %266 = vmatpush2.msra.mxu0 0.0
  %267 = vmatprep.subr.mxu0 0.0
  %268 = vmatpush2.msra.mxu0 0.0
  %269 = vmatprep.subr.mxu0 0.0
  %270 = vmatpush2.msra.mxu0 0.0
  %271 = vmatprep.subr.mxu0 0.0
  %272 = vmatpush2.msra.mxu0 0.0
  %273 = vmatprep.subr.mxu0 0.0
  %274 = vmatpush2.msra.mxu0 0.0
  %275 = vmatprep.subr.mxu0 0.0
  %276 = vmatpush2.msra.mxu0 0.0
  %277 = vmatprep.subr.mxu0 0.0
  %278 = vmatpush2.msra.mxu0 0.0
  %279 = vmatprep.subr.mxu0 0.0
  %280 = vmatpush2.msra.mxu0 0.0
  %281 = vmatprep.subr.mxu0 0.0
  %282 = vmatpush2.msra.mxu0 0.0
  %283 = vmatprep.subr.mxu0 0.0
  %284 = vmatpush2.msra.mxu0 0.0
  %285 = vmatprep.subr.mxu0 0.0
  %286 = vmatpush2.msra.mxu0 0.0
  %287 = vmatprep.mubr.f32.mxu0 0.0
  %288 = vmatmul.mubr.f32.gmra.mxu0 %v78
  %v289 = vpop.f32.mrf.mxu0
  %v290 = vadd.f32 %v63, %v289
  %v291 = vpop.f32.mrf.mxu0
  %v292 = vadd.f32 %v67, %v291
  %293 = vmatprep.mubr.f32.mxu0 0.0
  %294 = vmatmul.mubr.f32.gmra.mxu0 %v81
  %v295 = vpop.f32.mrf.mxu0
  %v296 = vadd.f32 %v63, %v295
  %v297 = vpop.f32.mrf.mxu0
  %v298 = vadd.f32 %v67, %v297
  %299 = vmatprep.mubr.f32.mxu0 0.0
  %300 = vmatmul.mubr.f32.gmra.mxu0 %v84
  %v301 = vpop.f32.mrf.mxu0
  %v302 = vadd.f32 %v63, %v301
  %v303 = vpop.f32.mrf.mxu0
  %v304 = vadd.f32 %v67, %v303
  %305 = vmatprep.mubr.f32.mxu0 0.0
  %306 = vmatmul.mubr.f32.gmra.mxu0 %v87
  %v307 = vpop.f32.mrf.mxu0
  %v308 = vadd.f32 %v63, %v307
  %v309 = vpop.f32.mrf.mxu0
  %v310 = vadd.f32 %v67, %v309
  %311 = vmatprep.mubr.f32.mxu0 0.0
  %312 = vmatmul.mubr.f32.gmra.mxu0 %v90
  %v313 = vpop.f32.mrf.mxu0
  %v314 = vadd.f32 %v63, %v313
  %v315 = vpop.f32.mrf.mxu0
  %v316 = vadd.f32 %v67, %v315
  %317 = vmatprep.mubr.f32.mxu0 0.0
  %318 = vmatmul.mubr.f32.gmra.mxu0 %v93
  %v319 = vpop.f32.mrf.mxu0
  %v320 = vadd.f32 %v63, %v319
  %v321 = vpop.f32.mrf.mxu0
  %v322 = vadd.f32 %v67, %v321
  %323 = vmatprep.mubr.f32.mxu0 0.0
  %324 = vmatmul.mubr.f32.gmra.mxu0 %v96
  %v325 = vpop.f32.mrf.mxu0
  %v326 = vadd.f32 %v63, %v325
  %v327 = vpop.f32.mrf.mxu0
  %v328 = vadd.f32 %v67, %v327
  %329 = vmatprep.mubr.f32.mxu0 0.0
  %330 = vmatmul.mubr.f32.gmra.mxu0 %v99
  %v331 = vpop.f32.mrf.mxu0
  %v332 = vadd.f32 %v63, %v331
  %v333 = vpop.f32.mrf.mxu0
  %v334 = vadd.f32 %v67, %v333
  %335 = vdwg.mxu0
  %336 = vst [vmem:[#allocation4] sm:$0xff] %v177
  %337 = vst [vmem:[#allocation4 + $0x8] sm:$0xff] %v179
  %338 = vst [vmem:[#allocation4 + $0x10] sm:$0xff] %v290
  %339 = vst [vmem:[#allocation4 + $0x18] sm:$0xff] %v292
  %340 = vst [vmem:[#allocation4 + $0x20] sm:$0xff] %v183
  %341 = vst [vmem:[#allocation4 + $0x28] sm:$0xff] %v185
  %342 = vst [vmem:[#allocation4 + $0x30] sm:$0xff] %v296
  %343 = vst [vmem:[#allocation4 + $0x38] sm:$0xff] %v298
  %344 = vst [vmem:[#allocation4 + $0x40] sm:$0xff] %v189
  %345 = vst [vmem:[#allocation4 + $0x48] sm:$0xff] %v191
  %346 = vst [vmem:[#allocation4 + $0x50] sm:$0xff] %v302
  %347 = vst [vmem:[#allocation4 + $0x58] sm:$0xff] %v304
  %348 = vst [vmem:[#allocation4 + $0x60] sm:$0xff] %v195
  %349 = vst [vmem:[#allocation4 + $0x68] sm:$0xff] %v197
  %350 = vst [vmem:[#allocation4 + $0x70] sm:$0xff] %v308
  %351 = vst [vmem:[#allocation4 + $0x78] sm:$0xff] %v310
  %352 = vst [vmem:[#allocation4 + $0x80] sm:$0xff] %v201
  %353 = vst [vmem:[#allocation4 + $0x88] sm:$0xff] %v203
  %354 = vst [vmem:[#allocation4 + $0x90] sm:$0xff] %v314
  %355 = vst [vmem:[#allocation4 + $0x98] sm:$0xff] %v316
  %356 = vst [vmem:[#allocation4 + $0xa0] sm:$0xff] %v207
  %357 = vst [vmem:[#allocation4 + $0xa8] sm:$0xff] %v209
  %358 = vst [vmem:[#allocation4 + $0xb0] sm:$0xff] %v320
  %359 = vst [vmem:[#allocation4 + $0xb8] sm:$0xff] %v322
  %360 = vst [vmem:[#allocation4 + $0xc0] sm:$0xff] %v213
  %361 = vst [vmem:[#allocation4 + $0xc8] sm:$0xff] %v215
  %362 = vst [vmem:[#allocation4 + $0xd0] sm:$0xff] %v326
  %363 = vst [vmem:[#allocation4 + $0xd8] sm:$0xff] %v328
  %364 = vst [vmem:[#allocation4 + $0xe0] sm:$0xff] %v219
  %365 = vst [vmem:[#allocation4 + $0xe8] sm:$0xff] %v221
  %366 = vst [vmem:[#allocation4 + $0xf0] sm:$0xff] %v332
  %367 = vst [vmem:[#allocation4 + $0xf8] sm:$0xff] %v334
  %v368 = vld [vmem:[%s2] sm:$0xff]
  %v369 = vld [vmem:[%s2 + $0x8] sm:$0xff]
  %v370 = vld [vmem:[%s2 + $0x10] sm:$0xff]
  %v371 = vld [vmem:[%s2 + $0x18] sm:$0xff]
  %v372 = vld [vmem:[%s2 + $0x20] sm:$0xff]
  %v373 = vld [vmem:[%s2 + $0x28] sm:$0xff]
  %v374 = vld [vmem:[%s2 + $0x30] sm:$0xff]
  %v375 = vld [vmem:[%s2 + $0x38] sm:$0xff]
  %v376 = vld [vmem:[%s2 + $0x40] sm:$0xff]
  %v377 = vld [vmem:[%s2 + $0x48] sm:$0xff]
  %v378 = vld [vmem:[%s2 + $0x50] sm:$0xff]
  %v379 = vld [vmem:[%s2 + $0x58] sm:$0xff]
  %v380 = vld [vmem:[%s2 + $0x60] sm:$0xff]
  %v381 = vld [vmem:[%s2 + $0x68] sm:$0xff]
  %v382 = vld [vmem:[%s2 + $0x70] sm:$0xff]
  %v383 = vld [vmem:[%s2 + $0x78] sm:$0xff]
  %v384 = vld [vmem:[%s2 + $0x80] sm:$0xff]
  %v385 = vld [vmem:[%s2 + $0x88] sm:$0xff]
  %v386 = vld [vmem:[%s2 + $0x90] sm:$0xff]
  %v387 = vld [vmem:[%s2 + $0x98] sm:$0xff]
  %v388 = vld [vmem:[%s2 + $0xa0] sm:$0xff]
  %v389 = vld [vmem:[%s2 + $0xa8] sm:$0xff]
  %v390 = vld [vmem:[%s2 + $0xb0] sm:$0xff]
  %v391 = vld [vmem:[%s2 + $0xb8] sm:$0xff]
  %v392 = vld [vmem:[%s2 + $0xc0] sm:$0xff]
  %v393 = vld [vmem:[%s2 + $0xc8] sm:$0xff]
  %v394 = vld [vmem:[%s2 + $0xd0] sm:$0xff]
  %v395 = vld [vmem:[%s2 + $0xd8] sm:$0xff]
  %v396 = vld [vmem:[%s2 + $0xe0] sm:$0xff]
  %v397 = vld [vmem:[%s2 + $0xe8] sm:$0xff]
  %v398 = vld [vmem:[%s2 + $0xf0] sm:$0xff]
  %v399 = vld [vmem:[%s2 + $0xf8] sm:$0xff]
  %v400 = vld [vmem:[%s2 + $0x100] sm:$0xff]
  %v401 = vld [vmem:[%s2 + $0x108] sm:$0xff]
  %v402 = vld [vmem:[%s2 + $0x110] sm:$0xff]
  %v403 = vld [vmem:[%s2 + $0x118] sm:$0xff]
  %v404 = vld [vmem:[%s2 + $0x120] sm:$0xff]
  %v405 = vld [vmem:[%s2 + $0x128] sm:$0xff]
  %v406 = vld [vmem:[%s2 + $0x130] sm:$0xff]
  %v407 = vld [vmem:[%s2 + $0x138] sm:$0xff]
  %v408 = vld [vmem:[%s2 + $0x140] sm:$0xff]
  %v409 = vld [vmem:[%s2 + $0x148] sm:$0xff]
  %v410 = vld [vmem:[%s2 + $0x150] sm:$0xff]
  %v411 = vld [vmem:[%s2 + $0x158] sm:$0xff]
  %v412 = vld [vmem:[%s2 + $0x160] sm:$0xff]
  %v413 = vld [vmem:[%s2 + $0x168] sm:$0xff]
  %v414 = vld [vmem:[%s2 + $0x170] sm:$0xff]
  %v415 = vld [vmem:[%s2 + $0x178] sm:$0xff]
  %v416 = vld [vmem:[%s2 + $0x180] sm:$0xff]
  %v417 = vld [vmem:[%s2 + $0x188] sm:$0xff]
  %v418 = vld [vmem:[%s2 + $0x190] sm:$0xff]
  %v419 = vld [vmem:[%s2 + $0x198] sm:$0xff]
  %v420 = vld [vmem:[%s2 + $0x1a0] sm:$0xff]
  %v421 = vld [vmem:[%s2 + $0x1a8] sm:$0xff]
  %v422 = vld [vmem:[%s2 + $0x1b0] sm:$0xff]
  %v423 = vld [vmem:[%s2 + $0x1b8] sm:$0xff]
  %v424 = vld [vmem:[%s2 + $0x1c0] sm:$0xff]
  %v425 = vld [vmem:[%s2 + $0x1c8] sm:$0xff]
  %v426 = vld [vmem:[%s2 + $0x1d0] sm:$0xff]
  %v427 = vld [vmem:[%s2 + $0x1d8] sm:$0xff]
  %v428 = vld [vmem:[%s2 + $0x1e0] sm:$0xff]
  %v429 = vld [vmem:[%s2 + $0x1e8] sm:$0xff]
  %v430 = vld [vmem:[%s2 + $0x1f0] sm:$0xff]
  %v431 = vld [vmem:[%s2 + $0x1f8] sm:$0xff]
  %v432 = vld [vmem:[#allocation2] sm:$0xff]
  %v433 = vld [vmem:[#allocation3] sm:$0xff]
  %s434 = smul.u32 0, 4
  %s435 = smul.addr %s434, 8
  %s436 = scalar_lea.vmem [#allocation4], %s435
  %v437 = vld [vmem:[%s436] sm:$0xff]
  %v438 = vld [vmem:[%s436 + $0x8] sm:$0xff]
  %v439 = vld [vmem:[%s436 + $0x10] sm:$0xff]
  %v440 = vld [vmem:[%s436 + $0x18] sm:$0xff]
  %441 = vmatprep.subr.mxu0 %v429
  %442 = vmatpush1.msra.mxu0 %v428
  %443 = vmatprep.subr.mxu0 %v425
  %444 = vmatpush1.msra.mxu0 %v424
  %445 = vmatprep.subr.mxu0 %v421
  %446 = vmatpush1.msra.mxu0 %v420
  %447 = vmatprep.subr.mxu0 %v417
  %448 = vmatpush1.msra.mxu0 %v416
  %449 = vmatprep.subr.mxu0 %v413
  %450 = vmatpush1.msra.mxu0 %v412
  %451 = vmatprep.subr.mxu0 %v409
  %452 = vmatpush1.msra.mxu0 %v408
  %453 = vmatprep.subr.mxu0 %v405
  %454 = vmatpush1.msra.mxu0 %v404
  %455 = vmatprep.subr.mxu0 %v401
  %456 = vmatpush1.msra.mxu0 %v400
  %457 = vmatprep.subr.mxu0 %v397
  %458 = vmatpush1.msra.mxu0 %v396
  %459 = vmatprep.subr.mxu0 %v393
  %460 = vmatpush1.msra.mxu0 %v392
  %461 = vmatprep.subr.mxu0 %v389
  %462 = vmatpush1.msra.mxu0 %v388
  %463 = vmatprep.subr.mxu0 %v385
  %464 = vmatpush1.msra.mxu0 %v384
  %465 = vmatprep.subr.mxu0 %v381
  %466 = vmatpush1.msra.mxu0 %v380
  %467 = vmatprep.subr.mxu0 %v377
  %468 = vmatpush1.msra.mxu0 %v376
  %469 = vmatprep.subr.mxu0 %v373
  %470 = vmatpush1.msra.mxu0 %v372
  %471 = vmatprep.subr.mxu0 %v369
  %472 = vmatpush1.msra.mxu0 %v368
  %473 = vmatprep.subr.mxu0 0.0
  %474 = vmatpush2.msra.mxu0 0.0
  %475 = vmatprep.subr.mxu0 0.0
  %476 = vmatpush2.msra.mxu0 0.0
  %477 = vmatprep.subr.mxu0 0.0
  %478 = vmatpush2.msra.mxu0 0.0
  %479 = vmatprep.subr.mxu0 0.0
  %480 = vmatpush2.msra.mxu0 0.0
  %481 = vmatprep.subr.mxu0 0.0
  %482 = vmatpush2.msra.mxu0 0.0
  %483 = vmatprep.subr.mxu0 0.0
  %484 = vmatpush2.msra.mxu0 0.0
  %485 = vmatprep.subr.mxu0 0.0
  %486 = vmatpush2.msra.mxu0 0.0
  %487 = vmatprep.subr.mxu0 0.0
  %488 = vmatpush2.msra.mxu0 0.0
  %489 = vmatprep.subr.mxu0 0.0
  %490 = vmatpush2.msra.mxu0 0.0
  %491 = vmatprep.subr.mxu0 0.0
  %492 = vmatpush2.msra.mxu0 0.0
  %493 = vmatprep.subr.mxu0 0.0
  %494 = vmatpush2.msra.mxu0 0.0
  %495 = vmatprep.subr.mxu0 0.0
  %496 = vmatpush2.msra.mxu0 0.0
  %497 = vmatprep.subr.mxu0 0.0
  %498 = vmatpush2.msra.mxu0 0.0
  %499 = vmatprep.subr.mxu0 0.0
  %500 = vmatpush2.msra.mxu0 0.0
  %501 = vmatprep.subr.mxu0 0.0
  %502 = vmatpush2.msra.mxu0 0.0
  %503 = vmatprep.subr.mxu0 0.0
  %504 = vmatpush2.msra.mxu0 0.0
  %505 = vmatprep.mubr.f32.mxu0 0.0
  %506 = vmatmul.mubr.f32.gmra.mxu0 %v432
  %v507 = vpop.f32.mrf.mxu0
  %v508 = vadd.f32 0.0, %v507
  %v509 = vpop.f32.mrf.mxu0
  %v510 = vadd.f32 0.0, %v509
  %511 = vdwg.mxu0
  %512 = vmatprep.subr.mxu0 %v431
  %513 = vmatpush1.msra.mxu0 %v430
  %514 = vmatprep.subr.mxu0 %v427
  %515 = vmatpush1.msra.mxu0 %v426
  %516 = vmatprep.subr.mxu0 %v423
  %517 = vmatpush1.msra.mxu0 %v422
  %518 = vmatprep.subr.mxu0 %v419
  %519 = vmatpush1.msra.mxu0 %v418
  %520 = vmatprep.subr.mxu0 %v415
  %521 = vmatpush1.msra.mxu0 %v414
  %522 = vmatprep.subr.mxu0 %v411
  %523 = vmatpush1.msra.mxu0 %v410
  %524 = vmatprep.subr.mxu0 %v407
  %525 = vmatpush1.msra.mxu0 %v406
  %526 = vmatprep.subr.mxu0 %v403
  %527 = vmatpush1.msra.mxu0 %v402
  %528 = vmatprep.subr.mxu0 %v399
  %529 = vmatpush1.msra.mxu0 %v398
  %530 = vmatprep.subr.mxu0 %v395
  %531 = vmatpush1.msra.mxu0 %v394
  %532 = vmatprep.subr.mxu0 %v391
  %533 = vmatpush1.msra.mxu0 %v390
  %534 = vmatprep.subr.mxu0 %v387
  %535 = vmatpush1.msra.mxu0 %v386
  %536 = vmatprep.subr.mxu0 %v383
  %537 = vmatpush1.msra.mxu0 %v382
  %538 = vmatprep.subr.mxu0 %v379
  %539 = vmatpush1.msra.mxu0 %v378
  %540 = vmatprep.subr.mxu0 %v375
  %541 = vmatpush1.msra.mxu0 %v374
  %542 = vmatprep.subr.mxu0 %v371
  %543 = vmatpush1.msra.mxu0 %v370
  %544 = vmatprep.subr.mxu0 0.0
  %545 = vmatpush2.msra.mxu0 0.0
  %546 = vmatprep.subr.mxu0 0.0
  %547 = vmatpush2.msra.mxu0 0.0
  %548 = vmatprep.subr.mxu0 0.0
  %549 = vmatpush2.msra.mxu0 0.0
  %550 = vmatprep.subr.mxu0 0.0
  %551 = vmatpush2.msra.mxu0 0.0
  %552 = vmatprep.subr.mxu0 0.0
  %553 = vmatpush2.msra.mxu0 0.0
  %554 = vmatprep.subr.mxu0 0.0
  %555 = vmatpush2.msra.mxu0 0.0
  %556 = vmatprep.subr.mxu0 0.0
  %557 = vmatpush2.msra.mxu0 0.0
  %558 = vmatprep.subr.mxu0 0.0
  %559 = vmatpush2.msra.mxu0 0.0
  %560 = vmatprep.subr.mxu0 0.0
  %561 = vmatpush2.msra.mxu0 0.0
  %562 = vmatprep.subr.mxu0 0.0
  %563 = vmatpush2.msra.mxu0 0.0
  %564 = vmatprep.subr.mxu0 0.0
  %565 = vmatpush2.msra.mxu0 0.0
  %566 = vmatprep.subr.mxu0 0.0
  %567 = vmatpush2.msra.mxu0 0.0
  %568 = vmatprep.subr.mxu0 0.0
  %569 = vmatpush2.msra.mxu0 0.0
  %570 = vmatprep.subr.mxu0 0.0
  %571 = vmatpush2.msra.mxu0 0.0
  %572 = vmatprep.subr.mxu0 0.0
  %573 = vmatpush2.msra.mxu0 0.0
  %574 = vmatprep.subr.mxu0 0.0
  %575 = vmatpush2.msra.mxu0 0.0
  %576 = vmatprep.mubr.f32.mxu0 0.0
  %577 = vmatmul.mubr.f32.gmra.mxu0 %v432
  %v578 = vpop.f32.mrf.mxu0
  %v579 = vadd.f32 0.0, %v578
  %v580 = vpop.f32.mrf.mxu0
  %v581 = vadd.f32 0.0, %v580
  %582 = vdwg.mxu0
  %v583 = vadd.f32 %v437, %v508
  %v584 = vadd.f32 %v438, %v510
  %v585 = vadd.f32 %v439, %v579
  %v586 = vadd.f32 %v440, %v581
  %v587 = vxor.u32 %v583, 2147483648
  %v588 = vmul.f32 %v587, 1.442695
  %v589 = vpow.pop %v588
  %v590 = vadd.f32 %v589, 1.0
  %v591 = vrcp.pop %v590
  %v592 = vmul.f32 1.0, %v591
  %v593 = vxor.u32 %v584, 2147483648
  %v594 = vmul.f32 %v593, 1.442695
  %v595 = vpow.pop %v594
  %v596 = vadd.f32 %v595, 1.0
  %v597 = vrcp.pop %v596
  %v598 = vmul.f32 1.0, %v597
  %v599 = vtanh.pop %v585
  %v600 = vxor.u32 %v586, 2147483648
  %v601 = vmul.f32 %v600, 1.442695
  %v602 = vpow.pop %v601
  %v603 = vadd.f32 %v602, 1.0
  %v604 = vrcp.pop %v603
  %v605 = vmul.f32 1.0, %v604
  %v606 = vmul.f32 %v598, %v433
  %v607 = vmul.f32 %v592, %v599
  %v608 = vadd.f32 %v606, %v607
  %v609 = vtanh.pop %v608
  %v610 = vmul.f32 %v605, %v609
  %611 = vst [vmem:[#allocation5] sm:$0xff] %v610
  %s612 = smul.u32 1, 4
  %s613 = smul.addr %s612, 8
  %s614 = scalar_lea.vmem [#allocation4], %s613
  %v615 = vld [vmem:[%s614] sm:$0xff]
  %v616 = vld [vmem:[%s614 + $0x8] sm:$0xff]
  %v617 = vld [vmem:[%s614 + $0x10] sm:$0xff]
  %v618 = vld [vmem:[%s614 + $0x18] sm:$0xff]
  %619 = vmatprep.subr.mxu0 %v429
  %620 = vmatpush1.msra.mxu0 %v428
  %621 = vmatprep.subr.mxu0 %v425
  %622 = vmatpush1.msra.mxu0 %v424
  %623 = vmatprep.subr.mxu0 %v421
  %624 = vmatpush1.msra.mxu0 %v420
  %625 = vmatprep.subr.mxu0 %v417
  %626 = vmatpush1.msra.mxu0 %v416
  %627 = vmatprep.subr.mxu0 %v413
  %628 = vmatpush1.msra.mxu0 %v412
  %629 = vmatprep.subr.mxu0 %v409
  %630 = vmatpush1.msra.mxu0 %v408
  %631 = vmatprep.subr.mxu0 %v405
  %632 = vmatpush1.msra.mxu0 %v404
  %633 = vmatprep.subr.mxu0 %v401
  %634 = vmatpush1.msra.mxu0 %v400
  %635 = vmatprep.subr.mxu0 %v397
  %636 = vmatpush1.msra.mxu0 %v396
  %637 = vmatprep.subr.mxu0 %v393
  %638 = vmatpush1.msra.mxu0 %v392
  %639 = vmatprep.subr.mxu0 %v389
  %640 = vmatpush1.msra.mxu0 %v388
  %641 = vmatprep.subr.mxu0 %v385
  %642 = vmatpush1.msra.mxu0 %v384
  %643 = vmatprep.subr.mxu0 %v381
  %644 = vmatpush1.msra.mxu0 %v380
  %645 = vmatprep.subr.mxu0 %v377
  %646 = vmatpush1.msra.mxu0 %v376
  %647 = vmatprep.subr.mxu0 %v373
  %648 = vmatpush1.msra.mxu0 %v372
  %649 = vmatprep.subr.mxu0 %v369
  %650 = vmatpush1.msra.mxu0 %v368
  %651 = vmatprep.subr.mxu0 0.0
  %652 = vmatpush2.msra.mxu0 0.0
  %653 = vmatprep.subr.mxu0 0.0
  %654 = vmatpush2.msra.mxu0 0.0
  %655 = vmatprep.subr.mxu0 0.0
  %656 = vmatpush2.msra.mxu0 0.0
  %657 = vmatprep.subr.mxu0 0.0
  %658 = vmatpush2.msra.mxu0 0.0
  %659 = vmatprep.subr.mxu0 0.0
  %660 = vmatpush2.msra.mxu0 0.0
  %661 = vmatprep.subr.mxu0 0.0
  %662 = vmatpush2.msra.mxu0 0.0
  %663 = vmatprep.subr.mxu0 0.0
  %664 = vmatpush2.msra.mxu0 0.0
  %665 = vmatprep.subr.mxu0 0.0
  %666 = vmatpush2.msra.mxu0 0.0
  %667 = vmatprep.subr.mxu0 0.0
  %668 = vmatpush2.msra.mxu0 0.0
  %669 = vmatprep.subr.mxu0 0.0
  %670 = vmatpush2.msra.mxu0 0.0
  %671 = vmatprep.subr.mxu0 0.0
  %672 = vmatpush2.msra.mxu0 0.0
  %673 = vmatprep.subr.mxu0 0.0
  %674 = vmatpush2.msra.mxu0 0.0
  %675 = vmatprep.subr.mxu0 0.0
  %676 = vmatpush2.msra.mxu0 0.0
  %677 = vmatprep.subr.mxu0 0.0
  %678 = vmatpush2.msra.mxu0 0.0
  %679 = vmatprep.subr.mxu0 0.0
  %680 = vmatpush2.msra.mxu0 0.0
  %681 = vmatprep.subr.mxu0 0.0
  %682 = vmatpush2.msra.mxu0 0.0
  %683 = vmatprep.mubr.f32.mxu0 0.0
  %684 = vmatmul.mubr.f32.gmra.mxu0 %v610
  %v685 = vpop.f32.mrf.mxu0
  %v686 = vadd.f32 0.0, %v685
  %v687 = vpop.f32.mrf.mxu0
  %v688 = vadd.f32 0.0, %v687
  %689 = vdwg.mxu0
  %690 = vmatprep.subr.mxu0 %v431
  %691 = vmatpush1.msra.mxu0 %v430
  %692 = vmatprep.subr.mxu0 %v427
  %693 = vmatpush1.msra.mxu0 %v426
  %694 = vmatprep.subr.mxu0 %v423
  %695 = vmatpush1.msra.mxu0 %v422
  %696 = vmatprep.subr.mxu0 %v419
  %697 = vmatpush1.msra.mxu0 %v418
  %698 = vmatprep.subr.mxu0 %v415
  %699 = vmatpush1.msra.mxu0 %v414
  %700 = vmatprep.subr.mxu0 %v411
  %701 = vmatpush1.msra.mxu0 %v410
  %702 = vmatprep.subr.mxu0 %v407
  %703 = vmatpush1.msra.mxu0 %v406
  %704 = vmatprep.subr.mxu0 %v403
  %705 = vmatpush1.msra.mxu0 %v402
  %706 = vmatprep.subr.mxu0 %v399
  %707 = vmatpush1.msra.mxu0 %v398
  %708 = vmatprep.subr.mxu0 %v395
  %709 = vmatpush1.msra.mxu0 %v394
  %710 = vmatprep.subr.mxu0 %v391
  %711 = vmatpush1.msra.mxu0 %v390
  %712 = vmatprep.subr.mxu0 %v387
  %713 = vmatpush1.msra.mxu0 %v386
  %714 = vmatprep.subr.mxu0 %v383
  %715 = vmatpush1.msra.mxu0 %v382
  %716 = vmatprep.subr.mxu0 %v379
  %717 = vmatpush1.msra.mxu0 %v378
  %718 = vmatprep.subr.mxu0 %v375
  %719 = vmatpush1.msra.mxu0 %v374
  %720 = vmatprep.subr.mxu0 %v371
  %721 = vmatpush1.msra.mxu0 %v370
  %722 = vmatprep.subr.mxu0 0.0
  %723 = vmatpush2.msra.mxu0 0.0
  %724 = vmatprep.subr.mxu0 0.0
  %725 = vmatpush2.msra.mxu0 0.0
  %726 = vmatprep.subr.mxu0 0.0
  %727 = vmatpush2.msra.mxu0 0.0
  %728 = vmatprep.subr.mxu0 0.0
  %729 = vmatpush2.msra.mxu0 0.0
  %730 = vmatprep.subr.mxu0 0.0
  %731 = vmatpush2.msra.mxu0 0.0
  %732 = vmatprep.subr.mxu0 0.0
  %733 = vmatpush2.msra.mxu0 0.0
  %734 = vmatprep.subr.mxu0 0.0
  %735 = vmatpush2.msra.mxu0 0.0
  %736 = vmatprep.subr.mxu0 0.0
  %737 = vmatpush2.msra.mxu0 0.0
  %738 = vmatprep.subr.mxu0 0.0
  %739 = vmatpush2.msra.mxu0 0.0
  %740 = vmatprep.subr.mxu0 0.0
  %741 = vmatpush2.msra.mxu0 0.0
  %742 = vmatprep.subr.mxu0 0.0
  %743 = vmatpush2.msra.mxu0 0.0
  %744 = vmatprep.subr.mxu0 0.0
  %745 = vmatpush2.msra.mxu0 0.0
  %746 = vmatprep.subr.mxu0 0.0
  %747 = vmatpush2.msra.mxu0 0.0
  %748 = vmatprep.subr.mxu0 0.0
  %749 = vmatpush2.msra.mxu0 0.0
  %750 = vmatprep.subr.mxu0 0.0
  %751 = vmatpush2.msra.mxu0 0.0
  %752 = vmatprep.subr.mxu0 0.0
  %753 = vmatpush2.msra.mxu0 0.0
  %754 = vmatprep.mubr.f32.mxu0 0.0
  %755 = vmatmul.mubr.f32.gmra.mxu0 %v610
  %v756 = vpop.f32.mrf.mxu0
  %v757 = vadd.f32 0.0, %v756
  %v758 = vpop.f32.mrf.mxu0
  %v759 = vadd.f32 0.0, %v758
  %760 = vdwg.mxu0
  %v761 = vadd.f32 %v615, %v686
  %v762 = vadd.f32 %v616, %v688
  %v763 = vadd.f32 %v617, %v757
  %v764 = vadd.f32 %v618, %v759
  %v765 = vxor.u32 %v761, 2147483648
  %v766 = vmul.f32 %v765, 1.442695
  %v767 = vpow.pop %v766
  %v768 = vadd.f32 %v767, 1.0
  %v769 = vrcp.pop %v768
  %v770 = vmul.f32 1.0, %v769
  %v771 = vxor.u32 %v762, 2147483648
  %v772 = vmul.f32 %v771, 1.442695
  %v773 = vpow.pop %v772
  %v774 = vadd.f32 %v773, 1.0
  %v775 = vrcp.pop %v774
  %v776 = vmul.f32 1.0, %v775
  %v777 = vtanh.pop %v763
  %v778 = vxor.u32 %v764, 2147483648
  %v779 = vmul.f32 %v778, 1.442695
  %v780 = vpow.pop %v779
  %v781 = vadd.f32 %v780, 1.0
  %v782 = vrcp.pop %v781
  %v783 = vmul.f32 1.0, %v782
  %v784 = vmul.f32 %v776, %v608
  %v785 = vmul.f32 %v770, %v777
  %v786 = vadd.f32 %v784, %v785
  %v787 = vtanh.pop %v786
  %v788 = vmul.f32 %v783, %v787
  %s789 = scalar_lea.vmem [#allocation5], 8
  %790 = vst [vmem:[%s789] sm:$0xff] %v788
  %s791 = smul.u32 2, 4
  %s792 = smul.addr %s791, 8
  %s793 = scalar_lea.vmem [#allocation4], %s792
  %v794 = vld [vmem:[%s793] sm:$0xff]
  %v795 = vld [vmem:[%s793 + $0x8] sm:$0xff]
  %v796 = vld [vmem:[%s793 + $0x10] sm:$0xff]
  %v797 = vld [vmem:[%s793 + $0x18] sm:$0xff]
  %798 = vmatprep.subr.mxu0 %v429
  %799 = vmatpush1.msra.mxu0 %v428
  %800 = vmatprep.subr.mxu0 %v425
  %801 = vmatpush1.msra.mxu0 %v424
  %802 = vmatprep.subr.mxu0 %v421
  %803 = vmatpush1.msra.mxu0 %v420
  %804 = vmatprep.subr.mxu0 %v417
  %805 = vmatpush1.msra.mxu0 %v416
  %806 = vmatprep.subr.mxu0 %v413
  %807 = vmatpush1.msra.mxu0 %v412
  %808 = vmatprep.subr.mxu0 %v409
  %809 = vmatpush1.msra.mxu0 %v408
  %810 = vmatprep.subr.mxu0 %v405
  %811 = vmatpush1.msra.mxu0 %v404
  %812 = vmatprep.subr.mxu0 %v401
  %813 = vmatpush1.msra.mxu0 %v400
  %814 = vmatprep.subr.mxu0 %v397
  %815 = vmatpush1.msra.mxu0 %v396
  %816 = vmatprep.subr.mxu0 %v393
  %817 = vmatpush1.msra.mxu0 %v392
  %818 = vmatprep.subr.mxu0 %v389
  %819 = vmatpush1.msra.mxu0 %v388
  %820 = vmatprep.subr.mxu0 %v385
  %821 = vmatpush1.msra.mxu0 %v384
  %822 = vmatprep.subr.mxu0 %v381
  %823 = vmatpush1.msra.mxu0 %v380
  %824 = vmatprep.subr.mxu0 %v377
  %825 = vmatpush1.msra.mxu0 %v376
  %826 = vmatprep.subr.mxu0 %v373
  %827 = vmatpush1.msra.mxu0 %v372
  %828 = vmatprep.subr.mxu0 %v369
  %829 = vmatpush1.msra.mxu0 %v368
  %830 = vmatprep.subr.mxu0 0.0
  %831 = vmatpush2.msra.mxu0 0.0
  %832 = vmatprep.subr.mxu0 0.0
  %833 = vmatpush2.msra.mxu0 0.0
  %834 = vmatprep.subr.mxu0 0.0
  %835 = vmatpush2.msra.mxu0 0.0
  %836 = vmatprep.subr.mxu0 0.0
  %837 = vmatpush2.msra.mxu0 0.0
  %838 = vmatprep.subr.mxu0 0.0
  %839 = vmatpush2.msra.mxu0 0.0
  %840 = vmatprep.subr.mxu0 0.0
  %841 = vmatpush2.msra.mxu0 0.0
  %842 = vmatprep.subr.mxu0 0.0
  %843 = vmatpush2.msra.mxu0 0.0
  %844 = vmatprep.subr.mxu0 0.0
  %845 = vmatpush2.msra.mxu0 0.0
  %846 = vmatprep.subr.mxu0 0.0
  %847 = vmatpush2.msra.mxu0 0.0
  %848 = vmatprep.subr.mxu0 0.0
  %849 = vmatpush2.msra.mxu0 0.0
  %850 = vmatprep.subr.mxu0 0.0
  %851 = vmatpush2.msra.mxu0 0.0
  %852 = vmatprep.subr.mxu0 0.0
  %853 = vmatpush2.msra.mxu0 0.0
  %854 = vmatprep.subr.mxu0 0.0
  %855 = vmatpush2.msra.mxu0 0.0
  %856 = vmatprep.subr.mxu0 0.0
  %857 = vmatpush2.msra.mxu0 0.0
  %858 = vmatprep.subr.mxu0 0.0
  %859 = vmatpush2.msra.mxu0 0.0
  %860 = vmatprep.subr.mxu0 0.0
  %861 = vmatpush2.msra.mxu0 0.0
  %862 = vmatprep.mubr.f32.mxu0 0.0
  %863 = vmatmul.mubr.f32.gmra.mxu0 %v788
  %v864 = vpop.f32.mrf.mxu0
  %v865 = vadd.f32 0.0, %v864
  %v866 = vpop.f32.mrf.mxu0
  %v867 = vadd.f32 0.0, %v866
  %868 = vdwg.mxu0
  %869 = vmatprep.subr.mxu0 %v431
  %870 = vmatpush1.msra.mxu0 %v430
  %871 = vmatprep.subr.mxu0 %v427
  %872 = vmatpush1.msra.mxu0 %v426
  %873 = vmatprep.subr.mxu0 %v423
  %874 = vmatpush1.msra.mxu0 %v422
  %875 = vmatprep.subr.mxu0 %v419
  %876 = vmatpush1.msra.mxu0 %v418
  %877 = vmatprep.subr.mxu0 %v415
  %878 = vmatpush1.msra.mxu0 %v414
  %879 = vmatprep.subr.mxu0 %v411
  %880 = vmatpush1.msra.mxu0 %v410
  %881 = vmatprep.subr.mxu0 %v407
  %882 = vmatpush1.msra.mxu0 %v406
  %883 = vmatprep.subr.mxu0 %v403
  %884 = vmatpush1.msra.mxu0 %v402
  %885 = vmatprep.subr.mxu0 %v399
  %886 = vmatpush1.msra.mxu0 %v398
  %887 = vmatprep.subr.mxu0 %v395
  %888 = vmatpush1.msra.mxu0 %v394
  %889 = vmatprep.subr.mxu0 %v391
  %890 = vmatpush1.msra.mxu0 %v390
  %891 = vmatprep.subr.mxu0 %v387
  %892 = vmatpush1.msra.mxu0 %v386
  %893 = vmatprep.subr.mxu0 %v383
  %894 = vmatpush1.msra.mxu0 %v382
  %895 = vmatprep.subr.mxu0 %v379
  %896 = vmatpush1.msra.mxu0 %v378
  %897 = vmatprep.subr.mxu0 %v375
  %898 = vmatpush1.msra.mxu0 %v374
  %899 = vmatprep.subr.mxu0 %v371
  %900 = vmatpush1.msra.mxu0 %v370
  %901 = vmatprep.subr.mxu0 0.0
  %902 = vmatpush2.msra.mxu0 0.0
  %903 = vmatprep.subr.mxu0 0.0
  %904 = vmatpush2.msra.mxu0 0.0
  %905 = vmatprep.subr.mxu0 0.0
  %906 = vmatpush2.msra.mxu0 0.0
  %907 = vmatprep.subr.mxu0 0.0
  %908 = vmatpush2.msra.mxu0 0.0
  %909 = vmatprep.subr.mxu0 0.0
  %910 = vmatpush2.msra.mxu0 0.0
  %911 = vmatprep.subr.mxu0 0.0
  %912 = vmatpush2.msra.mxu0 0.0
  %913 = vmatprep.subr.mxu0 0.0
  %914 = vmatpush2.msra.mxu0 0.0
  %915 = vmatprep.subr.mxu0 0.0
  %916 = vmatpush2.msra.mxu0 0.0
  %917 = vmatprep.subr.mxu0 0.0
  %918 = vmatpush2.msra.mxu0 0.0
  %919 = vmatprep.subr.mxu0 0.0
  %920 = vmatpush2.msra.mxu0 0.0
  %921 = vmatprep.subr.mxu0 0.0
  %922 = vmatpush2.msra.mxu0 0.0
  %923 = vmatprep.subr.mxu0 0.0
  %924 = vmatpush2.msra.mxu0 0.0
  %925 = vmatprep.subr.mxu0 0.0
  %926 = vmatpush2.msra.mxu0 0.0
  %927 = vmatprep.subr.mxu0 0.0
  %928 = vmatpush2.msra.mxu0 0.0
  %929 = vmatprep.subr.mxu0 0.0
  %930 = vmatpush2.msra.mxu0 0.0
  %931 = vmatprep.subr.mxu0 0.0
  %932 = vmatpush2.msra.mxu0 0.0
  %933 = vmatprep.mubr.f32.mxu0 0.0
  %934 = vmatmul.mubr.f32.gmra.mxu0 %v788
  %v935 = vpop.f32.mrf.mxu0
  %v936 = vadd.f32 0.0, %v935
  %v937 = vpop.f32.mrf.mxu0
  %v938 = vadd.f32 0.0, %v937
  %939 = vdwg.mxu0
  %v940 = vadd.f32 %v794, %v865
  %v941 = vadd.f32 %v795, %v867
  %v942 = vadd.f32 %v796, %v936
  %v943 = vadd.f32 %v797, %v938
  %v944 = vxor.u32 %v940, 2147483648
  %v945 = vmul.f32 %v944, 1.442695
  %v946 = vpow.pop %v945
  %v947 = vadd.f32 %v946, 1.0
  %v948 = vrcp.pop %v947
  %v949 = vmul.f32 1.0, %v948
  %v950 = vxor.u32 %v941, 2147483648
  %v951 = vmul.f32 %v950, 1.442695
  %v952 = vpow.pop %v951
  %v953 = vadd.f32 %v952, 1.0
  %v954 = vrcp.pop %v953
  %v955 = vmul.f32 1.0, %v954
  %v956 = vtanh.pop %v942
  %v957 = vxor.u32 %v943, 2147483648
  %v958 = vmul.f32 %v957, 1.442695
  %v959 = vpow.pop %v958
  %v960 = vadd.f32 %v959, 1.0
  %v961 = vrcp.pop %v960
  %v962 = vmul.f32 1.0, %v961
  %v963 = vmul.f32 %v955, %v786
  %v964 = vmul.f32 %v949, %v956
  %v965 = vadd.f32 %v963, %v964
  %v966 = vtanh.pop %v965
  %v967 = vmul.f32 %v962, %v966
  %s968 = scalar_lea.vmem [#allocation5], 16
  %969 = vst [vmem:[%s968] sm:$0xff] %v967
  %s970 = smul.u32 3, 4
  %s971 = smul.addr %s970, 8
  %s972 = scalar_lea.vmem [#allocation4], %s971
  %v973 = vld [vmem:[%s972] sm:$0xff]
  %v974 = vld [vmem:[%s972 + $0x8] sm:$0xff]
  %v975 = vld [vmem:[%s972 + $0x10] sm:$0xff]
  %v976 = vld [vmem:[%s972 + $0x18] sm:$0xff]
  %977 = vmatprep.subr.mxu0 %v429
  %978 = vmatpush1.msra.mxu0 %v428
  %979 = vmatprep.subr.mxu0 %v425
  %980 = vmatpush1.msra.mxu0 %v424
  %981 = vmatprep.subr.mxu0 %v421
  %982 = vmatpush1.msra.mxu0 %v420
  %983 = vmatprep.subr.mxu0 %v417
  %984 = vmatpush1.msra.mxu0 %v416
  %985 = vmatprep.subr.mxu0 %v413
  %986 = vmatpush1.msra.mxu0 %v412
  %987 = vmatprep.subr.mxu0 %v409
  %988 = vmatpush1.msra.mxu0 %v408
  %989 = vmatprep.subr.mxu0 %v405
  %990 = vmatpush1.msra.mxu0 %v404
  %991 = vmatprep.subr.mxu0 %v401
  %992 = vmatpush1.msra.mxu0 %v400
  %993 = vmatprep.subr.mxu0 %v397
  %994 = vmatpush1.msra.mxu0 %v396
  %995 = vmatprep.subr.mxu0 %v393
  %996 = vmatpush1.msra.mxu0 %v392
  %997 = vmatprep.subr.mxu0 %v389
  %998 = vmatpush1.msra.mxu0 %v388
  %999 = vmatprep.subr.mxu0 %v385
  %1000 = vmatpush1.msra.mxu0 %v384
  %1001 = vmatprep.subr.mxu0 %v381
  %1002 = vmatpush1.msra.mxu0 %v380
  %1003 = vmatprep.subr.mxu0 %v377
  %1004 = vmatpush1.msra.mxu0 %v376
  %1005 = vmatprep.subr.mxu0 %v373
  %1006 = vmatpush1.msra.mxu0 %v372
  %1007 = vmatprep.subr.mxu0 %v369
  %1008 = vmatpush1.msra.mxu0 %v368
  %1009 = vmatprep.subr.mxu0 0.0
  %1010 = vmatpush2.msra.mxu0 0.0
  %1011 = vmatprep.subr.mxu0 0.0
  %1012 = vmatpush2.msra.mxu0 0.0
  %1013 = vmatprep.subr.mxu0 0.0
  %1014 = vmatpush2.msra.mxu0 0.0
  %1015 = vmatprep.subr.mxu0 0.0
  %1016 = vmatpush2.msra.mxu0 0.0
  %1017 = vmatprep.subr.mxu0 0.0
  %1018 = vmatpush2.msra.mxu0 0.0
  %1019 = vmatprep.subr.mxu0 0.0
  %1020 = vmatpush2.msra.mxu0 0.0
  %1021 = vmatprep.subr.mxu0 0.0
  %1022 = vmatpush2.msra.mxu0 0.0
  %1023 = vmatprep.subr.mxu0 0.0
  %1024 = vmatpush2.msra.mxu0 0.0
  %1025 = vmatprep.subr.mxu0 0.0
  %1026 = vmatpush2.msra.mxu0 0.0
  %1027 = vmatprep.subr.mxu0 0.0
  %1028 = vmatpush2.msra.mxu0 0.0
  %1029 = vmatprep.subr.mxu0 0.0
  %1030 = vmatpush2.msra.mxu0 0.0
  %1031 = vmatprep.subr.mxu0 0.0
  %1032 = vmatpush2.msra.mxu0 0.0
  %1033 = vmatprep.subr.mxu0 0.0
  %1034 = vmatpush2.msra.mxu0 0.0
  %1035 = vmatprep.subr.mxu0 0.0
  %1036 = vmatpush2.msra.mxu0 0.0
  %1037 = vmatprep.subr.mxu0 0.0
  %1038 = vmatpush2.msra.mxu0 0.0
  %1039 = vmatprep.subr.mxu0 0.0
  %1040 = vmatpush2.msra.mxu0 0.0
  %1041 = vmatprep.mubr.f32.mxu0 0.0
  %1042 = vmatmul.mubr.f32.gmra.mxu0 %v967
  %v1043 = vpop.f32.mrf.mxu0
  %v1044 = vadd.f32 0.0, %v1043
  %v1045 = vpop.f32.mrf.mxu0
  %v1046 = vadd.f32 0.0, %v1045
  %1047 = vdwg.mxu0
  %1048 = vmatprep.subr.mxu0 %v431
  %1049 = vmatpush1.msra.mxu0 %v430
  %1050 = vmatprep.subr.mxu0 %v427
  %1051 = vmatpush1.msra.mxu0 %v426
  %1052 = vmatprep.subr.mxu0 %v423
  %1053 = vmatpush1.msra.mxu0 %v422
  %1054 = vmatprep.subr.mxu0 %v419
  %1055 = vmatpush1.msra.mxu0 %v418
  %1056 = vmatprep.subr.mxu0 %v415
  %1057 = vmatpush1.msra.mxu0 %v414
  %1058 = vmatprep.subr.mxu0 %v411
  %1059 = vmatpush1.msra.mxu0 %v410
  %1060 = vmatprep.subr.mxu0 %v407
  %1061 = vmatpush1.msra.mxu0 %v406
  %1062 = vmatprep.subr.mxu0 %v403
  %1063 = vmatpush1.msra.mxu0 %v402
  %1064 = vmatprep.subr.mxu0 %v399
  %1065 = vmatpush1.msra.mxu0 %v398
  %1066 = vmatprep.subr.mxu0 %v395
  %1067 = vmatpush1.msra.mxu0 %v394
  %1068 = vmatprep.subr.mxu0 %v391
  %1069 = vmatpush1.msra.mxu0 %v390
  %1070 = vmatprep.subr.mxu0 %v387
  %1071 = vmatpush1.msra.mxu0 %v386
  %1072 = vmatprep.subr.mxu0 %v383
  %1073 = vmatpush1.msra.mxu0 %v382
  %1074 = vmatprep.subr.mxu0 %v379
  %1075 = vmatpush1.msra.mxu0 %v378
  %1076 = vmatprep.subr.mxu0 %v375
  %1077 = vmatpush1.msra.mxu0 %v374
  %1078 = vmatprep.subr.mxu0 %v371
  %1079 = vmatpush1.msra.mxu0 %v370
  %1080 = vmatprep.subr.mxu0 0.0
  %1081 = vmatpush2.msra.mxu0 0.0
  %1082 = vmatprep.subr.mxu0 0.0
  %1083 = vmatpush2.msra.mxu0 0.0
  %1084 = vmatprep.subr.mxu0 0.0
  %1085 = vmatpush2.msra.mxu0 0.0
  %1086 = vmatprep.subr.mxu0 0.0
  %1087 = vmatpush2.msra.mxu0 0.0
  %1088 = vmatprep.subr.mxu0 0.0
  %1089 = vmatpush2.msra.mxu0 0.0
  %1090 = vmatprep.subr.mxu0 0.0
  %1091 = vmatpush2.msra.mxu0 0.0
  %1092 = vmatprep.subr.mxu0 0.0
  %1093 = vmatpush2.msra.mxu0 0.0
  %1094 = vmatprep.subr.mxu0 0.0
  %1095 = vmatpush2.msra.mxu0 0.0
  %1096 = vmatprep.subr.mxu0 0.0
  %1097 = vmatpush2.msra.mxu0 0.0
  %1098 = vmatprep.subr.mxu0 0.0
  %1099 = vmatpush2.msra.mxu0 0.0
  %1100 = vmatprep.subr.mxu0 0.0
  %1101 = vmatpush2.msra.mxu0 0.0
  %1102 = vmatprep.subr.mxu0 0.0
  %1103 = vmatpush2.msra.mxu0 0.0
  %1104 = vmatprep.subr.mxu0 0.0
  %1105 = vmatpush2.msra.mxu0 0.0
  %1106 = vmatprep.subr.mxu0 0.0
  %1107 = vmatpush2.msra.mxu0 0.0
  %1108 = vmatprep.subr.mxu0 0.0
  %1109 = vmatpush2.msra.mxu0 0.0
  %1110 = vmatprep.subr.mxu0 0.0
  %1111 = vmatpush2.msra.mxu0 0.0
  %1112 = vmatprep.mubr.f32.mxu0 0.0
  %1113 = vmatmul.mubr.f32.gmra.mxu0 %v967
  %v1114 = vpop.f32.mrf.mxu0
  %v1115 = vadd.f32 0.0, %v1114
  %v1116 = vpop.f32.mrf.mxu0
  %v1117 = vadd.f32 0.0, %v1116
  %1118 = vdwg.mxu0
  %v1119 = vadd.f32 %v973, %v1044
  %v1120 = vadd.f32 %v974, %v1046
  %v1121 = vadd.f32 %v975, %v1115
  %v1122 = vadd.f32 %v976, %v1117
  %v1123 = vxor.u32 %v1119, 2147483648
  %v1124 = vmul.f32 %v1123, 1.442695
  %v1125 = vpow.pop %v1124
  %v1126 = vadd.f32 %v1125, 1.0
  %v1127 = vrcp.pop %v1126
  %v1128 = vmul.f32 1.0, %v1127
  %v1129 = vxor.u32 %v1120, 2147483648
  %v1130 = vmul.f32 %v1129, 1.442695
  %v1131 = vpow.pop %v1130
  %v1132 = vadd.f32 %v1131, 1.0
  %v1133 = vrcp.pop %v1132
  %v1134 = vmul.f32 1.0, %v1133
  %v1135 = vtanh.pop %v1121
  %v1136 = vxor.u32 %v1122, 2147483648
  %v1137 = vmul.f32 %v1136, 1.442695
  %v1138 = vpow.pop %v1137
  %v1139 = vadd.f32 %v1138, 1.0
  %v1140 = vrcp.pop %v1139
  %v1141 = vmul.f32 1.0, %v1140
  %v1142 = vmul.f32 %v1134, %v965
  %v1143 = vmul.f32 %v1128, %v1135
  %v1144 = vadd.f32 %v1142, %v1143
  %v1145 = vtanh.pop %v1144
  %v1146 = vmul.f32 %v1141, %v1145
  %s1147 = scalar_lea.vmem [#allocation5], 24
  %1148 = vst [vmem:[%s1147] sm:$0xff] %v1146
  %s1149 = smul.u32 4, 4
  %s1150 = smul.addr %s1149, 8
  %s1151 = scalar_lea.vmem [#allocation4], %s1150
  %v1152 = vld [vmem:[%s1151] sm:$0xff]
  %v1153 = vld [vmem:[%s1151 + $0x8] sm:$0xff]
  %v1154 = vld [vmem:[%s1151 + $0x10] sm:$0xff]
  %v1155 = vld [vmem:[%s1151 + $0x18] sm:$0xff]
  %1156 = vmatprep.subr.mxu0 %v429
  %1157 = vmatpush1.msra.mxu0 %v428
  %1158 = vmatprep.subr.mxu0 %v425
  %1159 = vmatpush1.msra.mxu0 %v424
  %1160 = vmatprep.subr.mxu0 %v421
  %1161 = vmatpush1.msra.mxu0 %v420
  %1162 = vmatprep.subr.mxu0 %v417
  %1163 = vmatpush1.msra.mxu0 %v416
  %1164 = vmatprep.subr.mxu0 %v413
  %1165 = vmatpush1.msra.mxu0 %v412
  %1166 = vmatprep.subr.mxu0 %v409
  %1167 = vmatpush1.msra.mxu0 %v408
  %1168 = vmatprep.subr.mxu0 %v405
  %1169 = vmatpush1.msra.mxu0 %v404
  %1170 = vmatprep.subr.mxu0 %v401
  %1171 = vmatpush1.msra.mxu0 %v400
  %1172 = vmatprep.subr.mxu0 %v397
  %1173 = vmatpush1.msra.mxu0 %v396
  %1174 = vmatprep.subr.mxu0 %v393
  %1175 = vmatpush1.msra.mxu0 %v392
  %1176 = vmatprep.subr.mxu0 %v389
  %1177 = vmatpush1.msra.mxu0 %v388
  %1178 = vmatprep.subr.mxu0 %v385
  %1179 = vmatpush1.msra.mxu0 %v384
  %1180 = vmatprep.subr.mxu0 %v381
  %1181 = vmatpush1.msra.mxu0 %v380
  %1182 = vmatprep.subr.mxu0 %v377
  %1183 = vmatpush1.msra.mxu0 %v376
  %1184 = vmatprep.subr.mxu0 %v373
  %1185 = vmatpush1.msra.mxu0 %v372
  %1186 = vmatprep.subr.mxu0 %v369
  %1187 = vmatpush1.msra.mxu0 %v368
  %1188 = vmatprep.subr.mxu0 0.0
  %1189 = vmatpush2.msra.mxu0 0.0
  %1190 = vmatprep.subr.mxu0 0.0
  %1191 = vmatpush2.msra.mxu0 0.0
  %1192 = vmatprep.subr.mxu0 0.0
  %1193 = vmatpush2.msra.mxu0 0.0
  %1194 = vmatprep.subr.mxu0 0.0
  %1195 = vmatpush2.msra.mxu0 0.0
  %1196 = vmatprep.subr.mxu0 0.0
  %1197 = vmatpush2.msra.mxu0 0.0
  %1198 = vmatprep.subr.mxu0 0.0
  %1199 = vmatpush2.msra.mxu0 0.0
  %1200 = vmatprep.subr.mxu0 0.0
  %1201 = vmatpush2.msra.mxu0 0.0
  %1202 = vmatprep.subr.mxu0 0.0
  %1203 = vmatpush2.msra.mxu0 0.0
  %1204 = vmatprep.subr.mxu0 0.0
  %1205 = vmatpush2.msra.mxu0 0.0
  %1206 = vmatprep.subr.mxu0 0.0
  %1207 = vmatpush2.msra.mxu0 0.0
  %1208 = vmatprep.subr.mxu0 0.0
  %1209 = vmatpush2.msra.mxu0 0.0
  %1210 = vmatprep.subr.mxu0 0.0
  %1211 = vmatpush2.msra.mxu0 0.0
  %1212 = vmatprep.subr.mxu0 0.0
  %1213 = vmatpush2.msra.mxu0 0.0
  %1214 = vmatprep.subr.mxu0 0.0
  %1215 = vmatpush2.msra.mxu0 0.0
  %1216 = vmatprep.subr.mxu0 0.0
  %1217 = vmatpush2.msra.mxu0 0.0
  %1218 = vmatprep.subr.mxu0 0.0
  %1219 = vmatpush2.msra.mxu0 0.0
  %1220 = vmatprep.mubr.f32.mxu0 0.0
  %1221 = vmatmul.mubr.f32.gmra.mxu0 %v1146
  %v1222 = vpop.f32.mrf.mxu0
  %v1223 = vadd.f32 0.0, %v1222
  %v1224 = vpop.f32.mrf.mxu0
  %v1225 = vadd.f32 0.0, %v1224
  %1226 = vdwg.mxu0
  %1227 = vmatprep.subr.mxu0 %v431
  %1228 = vmatpush1.msra.mxu0 %v430
  %1229 = vmatprep.subr.mxu0 %v427
  %1230 = vmatpush1.msra.mxu0 %v426
  %1231 = vmatprep.subr.mxu0 %v423
  %1232 = vmatpush1.msra.mxu0 %v422
  %1233 = vmatprep.subr.mxu0 %v419
  %1234 = vmatpush1.msra.mxu0 %v418
  %1235 = vmatprep.subr.mxu0 %v415
  %1236 = vmatpush1.msra.mxu0 %v414
  %1237 = vmatprep.subr.mxu0 %v411
  %1238 = vmatpush1.msra.mxu0 %v410
  %1239 = vmatprep.subr.mxu0 %v407
  %1240 = vmatpush1.msra.mxu0 %v406
  %1241 = vmatprep.subr.mxu0 %v403
  %1242 = vmatpush1.msra.mxu0 %v402
  %1243 = vmatprep.subr.mxu0 %v399
  %1244 = vmatpush1.msra.mxu0 %v398
  %1245 = vmatprep.subr.mxu0 %v395
  %1246 = vmatpush1.msra.mxu0 %v394
  %1247 = vmatprep.subr.mxu0 %v391
  %1248 = vmatpush1.msra.mxu0 %v390
  %1249 = vmatprep.subr.mxu0 %v387
  %1250 = vmatpush1.msra.mxu0 %v386
  %1251 = vmatprep.subr.mxu0 %v383
  %1252 = vmatpush1.msra.mxu0 %v382
  %1253 = vmatprep.subr.mxu0 %v379
  %1254 = vmatpush1.msra.mxu0 %v378
  %1255 = vmatprep.subr.mxu0 %v375
  %1256 = vmatpush1.msra.mxu0 %v374
  %1257 = vmatprep.subr.mxu0 %v371
  %1258 = vmatpush1.msra.mxu0 %v370
  %1259 = vmatprep.subr.mxu0 0.0
  %1260 = vmatpush2.msra.mxu0 0.0
  %1261 = vmatprep.subr.mxu0 0.0
  %1262 = vmatpush2.msra.mxu0 0.0
  %1263 = vmatprep.subr.mxu0 0.0
  %1264 = vmatpush2.msra.mxu0 0.0
  %1265 = vmatprep.subr.mxu0 0.0
  %1266 = vmatpush2.msra.mxu0 0.0
  %1267 = vmatprep.subr.mxu0 0.0
  %1268 = vmatpush2.msra.mxu0 0.0
  %1269 = vmatprep.subr.mxu0 0.0
  %1270 = vmatpush2.msra.mxu0 0.0
  %1271 = vmatprep.subr.mxu0 0.0
  %1272 = vmatpush2.msra.mxu0 0.0
  %1273 = vmatprep.subr.mxu0 0.0
  %1274 = vmatpush2.msra.mxu0 0.0
  %1275 = vmatprep.subr.mxu0 0.0
  %1276 = vmatpush2.msra.mxu0 0.0
  %1277 = vmatprep.subr.mxu0 0.0
  %1278 = vmatpush2.msra.mxu0 0.0
  %1279 = vmatprep.subr.mxu0 0.0
  %1280 = vmatpush2.msra.mxu0 0.0
  %1281 = vmatprep.subr.mxu0 0.0
  %1282 = vmatpush2.msra.mxu0 0.0
  %1283 = vmatprep.subr.mxu0 0.0
  %1284 = vmatpush2.msra.mxu0 0.0
  %1285 = vmatprep.subr.mxu0 0.0
  %1286 = vmatpush2.msra.mxu0 0.0
  %1287 = vmatprep.subr.mxu0 0.0
  %1288 = vmatpush2.msra.mxu0 0.0
  %1289 = vmatprep.subr.mxu0 0.0
  %1290 = vmatpush2.msra.mxu0 0.0
  %1291 = vmatprep.mubr.f32.mxu0 0.0
  %1292 = vmatmul.mubr.f32.gmra.mxu0 %v1146
  %v1293 = vpop.f32.mrf.mxu0
  %v1294 = vadd.f32 0.0, %v1293
  %v1295 = vpop.f32.mrf.mxu0
  %v1296 = vadd.f32 0.0, %v1295
  %1297 = vdwg.mxu0
  %v1298 = vadd.f32 %v1152, %v1223
  %v1299 = vadd.f32 %v1153, %v1225
  %v1300 = vadd.f32 %v1154, %v1294
  %v1301 = vadd.f32 %v1155, %v1296
  %v1302 = vxor.u32 %v1298, 2147483648
  %v1303 = vmul.f32 %v1302, 1.442695
  %v1304 = vpow.pop %v1303
  %v1305 = vadd.f32 %v1304, 1.0
  %v1306 = vrcp.pop %v1305
  %v1307 = vmul.f32 1.0, %v1306
  %v1308 = vxor.u32 %v1299, 2147483648
  %v1309 = vmul.f32 %v1308, 1.442695
  %v1310 = vpow.pop %v1309
  %v1311 = vadd.f32 %v1310, 1.0
  %v1312 = vrcp.pop %v1311
  %v1313 = vmul.f32 1.0, %v1312
  %v1314 = vtanh.pop %v1300
  %v1315 = vxor.u32 %v1301, 2147483648
  %v1316 = vmul.f32 %v1315, 1.442695
  %v1317 = vpow.pop %v1316
  %v1318 = vadd.f32 %v1317, 1.0
  %v1319 = vrcp.pop %v1318
  %v1320 = vmul.f32 1.0, %v1319
  %v1321 = vmul.f32 %v1313, %v1144
  %v1322 = vmul.f32 %v1307, %v1314
  %v1323 = vadd.f32 %v1321, %v1322
  %v1324 = vtanh.pop %v1323
  %v1325 = vmul.f32 %v1320, %v1324
  %s1326 = scalar_lea.vmem [#allocation5], 32
  %1327 = vst [vmem:[%s1326] sm:$0xff] %v1325
  %s1328 = smul.u32 5, 4
  %s1329 = smul.addr %s1328, 8
  %s1330 = scalar_lea.vmem [#allocation4], %s1329
  %v1331 = vld [vmem:[%s1330] sm:$0xff]
  %v1332 = vld [vmem:[%s1330 + $0x8] sm:$0xff]
  %v1333 = vld [vmem:[%s1330 + $0x10] sm:$0xff]
  %v1334 = vld [vmem:[%s1330 + $0x18] sm:$0xff]
  %1335 = vmatprep.subr.mxu0 %v429
  %1336 = vmatpush1.msra.mxu0 %v428
  %1337 = vmatprep.subr.mxu0 %v425
  %1338 = vmatpush1.msra.mxu0 %v424
  %1339 = vmatprep.subr.mxu0 %v421
  %1340 = vmatpush1.msra.mxu0 %v420
  %1341 = vmatprep.subr.mxu0 %v417
  %1342 = vmatpush1.msra.mxu0 %v416
  %1343 = vmatprep.subr.mxu0 %v413
  %1344 = vmatpush1.msra.mxu0 %v412
  %1345 = vmatprep.subr.mxu0 %v409
  %1346 = vmatpush1.msra.mxu0 %v408
  %1347 = vmatprep.subr.mxu0 %v405
  %1348 = vmatpush1.msra.mxu0 %v404
  %1349 = vmatprep.subr.mxu0 %v401
  %1350 = vmatpush1.msra.mxu0 %v400
  %1351 = vmatprep.subr.mxu0 %v397
  %1352 = vmatpush1.msra.mxu0 %v396
  %1353 = vmatprep.subr.mxu0 %v393
  %1354 = vmatpush1.msra.mxu0 %v392
  %1355 = vmatprep.subr.mxu0 %v389
  %1356 = vmatpush1.msra.mxu0 %v388
  %1357 = vmatprep.subr.mxu0 %v385
  %1358 = vmatpush1.msra.mxu0 %v384
  %1359 = vmatprep.subr.mxu0 %v381
  %1360 = vmatpush1.msra.mxu0 %v380
  %1361 = vmatprep.subr.mxu0 %v377
  %1362 = vmatpush1.msra.mxu0 %v376
  %1363 = vmatprep.subr.mxu0 %v373
  %1364 = vmatpush1.msra.mxu0 %v372
  %1365 = vmatprep.subr.mxu0 %v369
  %1366 = vmatpush1.msra.mxu0 %v368
  %1367 = vmatprep.subr.mxu0 0.0
  %1368 = vmatpush2.msra.mxu0 0.0
  %1369 = vmatprep.subr.mxu0 0.0
  %1370 = vmatpush2.msra.mxu0 0.0
  %1371 = vmatprep.subr.mxu0 0.0
  %1372 = vmatpush2.msra.mxu0 0.0
  %1373 = vmatprep.subr.mxu0 0.0
  %1374 = vmatpush2.msra.mxu0 0.0
  %1375 = vmatprep.subr.mxu0 0.0
  %1376 = vmatpush2.msra.mxu0 0.0
  %1377 = vmatprep.subr.mxu0 0.0
  %1378 = vmatpush2.msra.mxu0 0.0
  %1379 = vmatprep.subr.mxu0 0.0
  %1380 = vmatpush2.msra.mxu0 0.0
  %1381 = vmatprep.subr.mxu0 0.0
  %1382 = vmatpush2.msra.mxu0 0.0
  %1383 = vmatprep.subr.mxu0 0.0
  %1384 = vmatpush2.msra.mxu0 0.0
  %1385 = vmatprep.subr.mxu0 0.0
  %1386 = vmatpush2.msra.mxu0 0.0
  %1387 = vmatprep.subr.mxu0 0.0
  %1388 = vmatpush2.msra.mxu0 0.0
  %1389 = vmatprep.subr.mxu0 0.0
  %1390 = vmatpush2.msra.mxu0 0.0
  %1391 = vmatprep.subr.mxu0 0.0
  %1392 = vmatpush2.msra.mxu0 0.0
  %1393 = vmatprep.subr.mxu0 0.0
  %1394 = vmatpush2.msra.mxu0 0.0
  %1395 = vmatprep.subr.mxu0 0.0
  %1396 = vmatpush2.msra.mxu0 0.0
  %1397 = vmatprep.subr.mxu0 0.0
  %1398 = vmatpush2.msra.mxu0 0.0
  %1399 = vmatprep.mubr.f32.mxu0 0.0
  %1400 = vmatmul.mubr.f32.gmra.mxu0 %v1325
  %v1401 = vpop.f32.mrf.mxu0
  %v1402 = vadd.f32 0.0, %v1401
  %v1403 = vpop.f32.mrf.mxu0
  %v1404 = vadd.f32 0.0, %v1403
  %1405 = vdwg.mxu0
  %1406 = vmatprep.subr.mxu0 %v431
  %1407 = vmatpush1.msra.mxu0 %v430
  %1408 = vmatprep.subr.mxu0 %v427
  %1409 = vmatpush1.msra.mxu0 %v426
  %1410 = vmatprep.subr.mxu0 %v423
  %1411 = vmatpush1.msra.mxu0 %v422
  %1412 = vmatprep.subr.mxu0 %v419
  %1413 = vmatpush1.msra.mxu0 %v418
  %1414 = vmatprep.subr.mxu0 %v415
  %1415 = vmatpush1.msra.mxu0 %v414
  %1416 = vmatprep.subr.mxu0 %v411
  %1417 = vmatpush1.msra.mxu0 %v410
  %1418 = vmatprep.subr.mxu0 %v407
  %1419 = vmatpush1.msra.mxu0 %v406
  %1420 = vmatprep.subr.mxu0 %v403
  %1421 = vmatpush1.msra.mxu0 %v402
  %1422 = vmatprep.subr.mxu0 %v399
  %1423 = vmatpush1.msra.mxu0 %v398
  %1424 = vmatprep.subr.mxu0 %v395
  %1425 = vmatpush1.msra.mxu0 %v394
  %1426 = vmatprep.subr.mxu0 %v391
  %1427 = vmatpush1.msra.mxu0 %v390
  %1428 = vmatprep.subr.mxu0 %v387
  %1429 = vmatpush1.msra.mxu0 %v386
  %1430 = vmatprep.subr.mxu0 %v383
  %1431 = vmatpush1.msra.mxu0 %v382
  %1432 = vmatprep.subr.mxu0 %v379
  %1433 = vmatpush1.msra.mxu0 %v378
  %1434 = vmatprep.subr.mxu0 %v375
  %1435 = vmatpush1.msra.mxu0 %v374
  %1436 = vmatprep.subr.mxu0 %v371
  %1437 = vmatpush1.msra.mxu0 %v370
  %1438 = vmatprep.subr.mxu0 0.0
  %1439 = vmatpush2.msra.mxu0 0.0
  %1440 = vmatprep.subr.mxu0 0.0
  %1441 = vmatpush2.msra.mxu0 0.0
  %1442 = vmatprep.subr.mxu0 0.0
  %1443 = vmatpush2.msra.mxu0 0.0
  %1444 = vmatprep.subr.mxu0 0.0
  %1445 = vmatpush2.msra.mxu0 0.0
  %1446 = vmatprep.subr.mxu0 0.0
  %1447 = vmatpush2.msra.mxu0 0.0
  %1448 = vmatprep.subr.mxu0 0.0
  %1449 = vmatpush2.msra.mxu0 0.0
  %1450 = vmatprep.subr.mxu0 0.0
  %1451 = vmatpush2.msra.mxu0 0.0
  %1452 = vmatprep.subr.mxu0 0.0
  %1453 = vmatpush2.msra.mxu0 0.0
  %1454 = vmatprep.subr.mxu0 0.0
  %1455 = vmatpush2.msra.mxu0 0.0
  %1456 = vmatprep.subr.mxu0 0.0
  %1457 = vmatpush2.msra.mxu0 0.0
  %1458 = vmatprep.subr.mxu0 0.0
  %1459 = vmatpush2.msra.mxu0 0.0
  %1460 = vmatprep.subr.mxu0 0.0
  %1461 = vmatpush2.msra.mxu0 0.0
  %1462 = vmatprep.subr.mxu0 0.0
  %1463 = vmatpush2.msra.mxu0 0.0
  %1464 = vmatprep.subr.mxu0 0.0
  %1465 = vmatpush2.msra.mxu0 0.0
  %1466 = vmatprep.subr.mxu0 0.0
  %1467 = vmatpush2.msra.mxu0 0.0
  %1468 = vmatprep.subr.mxu0 0.0
  %1469 = vmatpush2.msra.mxu0 0.0
  %1470 = vmatprep.mubr.f32.mxu0 0.0
  %1471 = vmatmul.mubr.f32.gmra.mxu0 %v1325
  %v1472 = vpop.f32.mrf.mxu0
  %v1473 = vadd.f32 0.0, %v1472
  %v1474 = vpop.f32.mrf.mxu0
  %v1475 = vadd.f32 0.0, %v1474
  %1476 = vdwg.mxu0
  %v1477 = vadd.f32 %v1331, %v1402
  %v1478 = vadd.f32 %v1332, %v1404
  %v1479 = vadd.f32 %v1333, %v1473
  %v1480 = vadd.f32 %v1334, %v1475
  %v1481 = vxor.u32 %v1477, 2147483648
  %v1482 = vmul.f32 %v1481, 1.442695
  %v1483 = vpow.pop %v1482
  %v1484 = vadd.f32 %v1483, 1.0
  %v1485 = vrcp.pop %v1484
  %v1486 = vmul.f32 1.0, %v1485
  %v1487 = vxor.u32 %v1478, 2147483648
  %v1488 = vmul.f32 %v1487, 1.442695
  %v1489 = vpow.pop %v1488
  %v1490 = vadd.f32 %v1489, 1.0
  %v1491 = vrcp.pop %v1490
  %v1492 = vmul.f32 1.0, %v1491
  %v1493 = vtanh.pop %v1479
  %v1494 = vxor.u32 %v1480, 2147483648
  %v1495 = vmul.f32 %v1494, 1.442695
  %v1496 = vpow.pop %v1495
  %v1497 = vadd.f32 %v1496, 1.0
  %v1498 = vrcp.pop %v1497
  %v1499 = vmul.f32 1.0, %v1498
  %v1500 = vmul.f32 %v1492, %v1323
  %v1501 = vmul.f32 %v1486, %v1493
  %v1502 = vadd.f32 %v1500, %v1501
  %v1503 = vtanh.pop %v1502
  %v1504 = vmul.f32 %v1499, %v1503
  %s1505 = scalar_lea.vmem [#allocation5], 40
  %1506 = vst [vmem:[%s1505] sm:$0xff] %v1504
  %s1507 = smul.u32 6, 4
  %s1508 = smul.addr %s1507, 8
  %s1509 = scalar_lea.vmem [#allocation4], %s1508
  %v1510 = vld [vmem:[%s1509] sm:$0xff]
  %v1511 = vld [vmem:[%s1509 + $0x8] sm:$0xff]
  %v1512 = vld [vmem:[%s1509 + $0x10] sm:$0xff]
  %v1513 = vld [vmem:[%s1509 + $0x18] sm:$0xff]
  %1514 = vmatprep.subr.mxu0 %v429
  %1515 = vmatpush1.msra.mxu0 %v428
  %1516 = vmatprep.subr.mxu0 %v425
  %1517 = vmatpush1.msra.mxu0 %v424
  %1518 = vmatprep.subr.mxu0 %v421
  %1519 = vmatpush1.msra.mxu0 %v420
  %1520 = vmatprep.subr.mxu0 %v417
  %1521 = vmatpush1.msra.mxu0 %v416
  %1522 = vmatprep.subr.mxu0 %v413
  %1523 = vmatpush1.msra.mxu0 %v412
  %1524 = vmatprep.subr.mxu0 %v409
  %1525 = vmatpush1.msra.mxu0 %v408
  %1526 = vmatprep.subr.mxu0 %v405
  %1527 = vmatpush1.msra.mxu0 %v404
  %1528 = vmatprep.subr.mxu0 %v401
  %1529 = vmatpush1.msra.mxu0 %v400
  %1530 = vmatprep.subr.mxu0 %v397
  %1531 = vmatpush1.msra.mxu0 %v396
  %1532 = vmatprep.subr.mxu0 %v393
  %1533 = vmatpush1.msra.mxu0 %v392
  %1534 = vmatprep.subr.mxu0 %v389
  %1535 = vmatpush1.msra.mxu0 %v388
  %1536 = vmatprep.subr.mxu0 %v385
  %1537 = vmatpush1.msra.mxu0 %v384
  %1538 = vmatprep.subr.mxu0 %v381
  %1539 = vmatpush1.msra.mxu0 %v380
  %1540 = vmatprep.subr.mxu0 %v377
  %1541 = vmatpush1.msra.mxu0 %v376
  %1542 = vmatprep.subr.mxu0 %v373
  %1543 = vmatpush1.msra.mxu0 %v372
  %1544 = vmatprep.subr.mxu0 %v369
  %1545 = vmatpush1.msra.mxu0 %v368
  %1546 = vmatprep.subr.mxu0 0.0
  %1547 = vmatpush2.msra.mxu0 0.0
  %1548 = vmatprep.subr.mxu0 0.0
  %1549 = vmatpush2.msra.mxu0 0.0
  %1550 = vmatprep.subr.mxu0 0.0
  %1551 = vmatpush2.msra.mxu0 0.0
  %1552 = vmatprep.subr.mxu0 0.0
  %1553 = vmatpush2.msra.mxu0 0.0
  %1554 = vmatprep.subr.mxu0 0.0
  %1555 = vmatpush2.msra.mxu0 0.0
  %1556 = vmatprep.subr.mxu0 0.0
  %1557 = vmatpush2.msra.mxu0 0.0
  %1558 = vmatprep.subr.mxu0 0.0
  %1559 = vmatpush2.msra.mxu0 0.0
  %1560 = vmatprep.subr.mxu0 0.0
  %1561 = vmatpush2.msra.mxu0 0.0
  %1562 = vmatprep.subr.mxu0 0.0
  %1563 = vmatpush2.msra.mxu0 0.0
  %1564 = vmatprep.subr.mxu0 0.0
  %1565 = vmatpush2.msra.mxu0 0.0
  %1566 = vmatprep.subr.mxu0 0.0
  %1567 = vmatpush2.msra.mxu0 0.0
  %1568 = vmatprep.subr.mxu0 0.0
  %1569 = vmatpush2.msra.mxu0 0.0
  %1570 = vmatprep.subr.mxu0 0.0
  %1571 = vmatpush2.msra.mxu0 0.0
  %1572 = vmatprep.subr.mxu0 0.0
  %1573 = vmatpush2.msra.mxu0 0.0
  %1574 = vmatprep.subr.mxu0 0.0
  %1575 = vmatpush2.msra.mxu0 0.0
  %1576 = vmatprep.subr.mxu0 0.0
  %1577 = vmatpush2.msra.mxu0 0.0
  %1578 = vmatprep.mubr.f32.mxu0 0.0
  %1579 = vmatmul.mubr.f32.gmra.mxu0 %v1504
  %v1580 = vpop.f32.mrf.mxu0
  %v1581 = vadd.f32 0.0, %v1580
  %v1582 = vpop.f32.mrf.mxu0
  %v1583 = vadd.f32 0.0, %v1582
  %1584 = vdwg.mxu0
  %1585 = vmatprep.subr.mxu0 %v431
  %1586 = vmatpush1.msra.mxu0 %v430
  %1587 = vmatprep.subr.mxu0 %v427
  %1588 = vmatpush1.msra.mxu0 %v426
  %1589 = vmatprep.subr.mxu0 %v423
  %1590 = vmatpush1.msra.mxu0 %v422
  %1591 = vmatprep.subr.mxu0 %v419
  %1592 = vmatpush1.msra.mxu0 %v418
  %1593 = vmatprep.subr.mxu0 %v415
  %1594 = vmatpush1.msra.mxu0 %v414
  %1595 = vmatprep.subr.mxu0 %v411
  %1596 = vmatpush1.msra.mxu0 %v410
  %1597 = vmatprep.subr.mxu0 %v407
  %1598 = vmatpush1.msra.mxu0 %v406
  %1599 = vmatprep.subr.mxu0 %v403
  %1600 = vmatpush1.msra.mxu0 %v402
  %1601 = vmatprep.subr.mxu0 %v399
  %1602 = vmatpush1.msra.mxu0 %v398
  %1603 = vmatprep.subr.mxu0 %v395
  %1604 = vmatpush1.msra.mxu0 %v394
  %1605 = vmatprep.subr.mxu0 %v391
  %1606 = vmatpush1.msra.mxu0 %v390
  %1607 = vmatprep.subr.mxu0 %v387
  %1608 = vmatpush1.msra.mxu0 %v386
  %1609 = vmatprep.subr.mxu0 %v383
  %1610 = vmatpush1.msra.mxu0 %v382
  %1611 = vmatprep.subr.mxu0 %v379
  %1612 = vmatpush1.msra.mxu0 %v378
  %1613 = vmatprep.subr.mxu0 %v375
  %1614 = vmatpush1.msra.mxu0 %v374
  %1615 = vmatprep.subr.mxu0 %v371
  %1616 = vmatpush1.msra.mxu0 %v370
  %1617 = vmatprep.subr.mxu0 0.0
  %1618 = vmatpush2.msra.mxu0 0.0
  %1619 = vmatprep.subr.mxu0 0.0
  %1620 = vmatpush2.msra.mxu0 0.0
  %1621 = vmatprep.subr.mxu0 0.0
  %1622 = vmatpush2.msra.mxu0 0.0
  %1623 = vmatprep.subr.mxu0 0.0
  %1624 = vmatpush2.msra.mxu0 0.0
  %1625 = vmatprep.subr.mxu0 0.0
  %1626 = vmatpush2.msra.mxu0 0.0
  %1627 = vmatprep.subr.mxu0 0.0
  %1628 = vmatpush2.msra.mxu0 0.0
  %1629 = vmatprep.subr.mxu0 0.0
  %1630 = vmatpush2.msra.mxu0 0.0
  %1631 = vmatprep.subr.mxu0 0.0
  %1632 = vmatpush2.msra.mxu0 0.0
  %1633 = vmatprep.subr.mxu0 0.0
  %1634 = vmatpush2.msra.mxu0 0.0
  %1635 = vmatprep.subr.mxu0 0.0
  %1636 = vmatpush2.msra.mxu0 0.0
  %1637 = vmatprep.subr.mxu0 0.0
  %1638 = vmatpush2.msra.mxu0 0.0
  %1639 = vmatprep.subr.mxu0 0.0
  %1640 = vmatpush2.msra.mxu0 0.0
  %1641 = vmatprep.subr.mxu0 0.0
  %1642 = vmatpush2.msra.mxu0 0.0
  %1643 = vmatprep.subr.mxu0 0.0
  %1644 = vmatpush2.msra.mxu0 0.0
  %1645 = vmatprep.subr.mxu0 0.0
  %1646 = vmatpush2.msra.mxu0 0.0
  %1647 = vmatprep.subr.mxu0 0.0
  %1648 = vmatpush2.msra.mxu0 0.0
  %1649 = vmatprep.mubr.f32.mxu0 0.0
  %1650 = vmatmul.mubr.f32.gmra.mxu0 %v1504
  %v1651 = vpop.f32.mrf.mxu0
  %v1652 = vadd.f32 0.0, %v1651
  %v1653 = vpop.f32.mrf.mxu0
  %v1654 = vadd.f32 0.0, %v1653
  %1655 = vdwg.mxu0
  %v1656 = vadd.f32 %v1510, %v1581
  %v1657 = vadd.f32 %v1511, %v1583
  %v1658 = vadd.f32 %v1512, %v1652
  %v1659 = vadd.f32 %v1513, %v1654
  %v1660 = vxor.u32 %v1656, 2147483648
  %v1661 = vmul.f32 %v1660, 1.442695
  %v1662 = vpow.pop %v1661
  %v1663 = vadd.f32 %v1662, 1.0
  %v1664 = vrcp.pop %v1663
  %v1665 = vmul.f32 1.0, %v1664
  %v1666 = vxor.u32 %v1657, 2147483648
  %v1667 = vmul.f32 %v1666, 1.442695
  %v1668 = vpow.pop %v1667
  %v1669 = vadd.f32 %v1668, 1.0
  %v1670 = vrcp.pop %v1669
  %v1671 = vmul.f32 1.0, %v1670
  %v1672 = vtanh.pop %v1658
  %v1673 = vxor.u32 %v1659, 2147483648
  %v1674 = vmul.f32 %v1673, 1.442695
  %v1675 = vpow.pop %v1674
  %v1676 = vadd.f32 %v1675, 1.0
  %v1677 = vrcp.pop %v1676
  %v1678 = vmul.f32 1.0, %v1677
  %v1679 = vmul.f32 %v1671, %v1502
  %v1680 = vmul.f32 %v1665, %v1672
  %v1681 = vadd.f32 %v1679, %v1680
  %v1682 = vtanh.pop %v1681
  %v1683 = vmul.f32 %v1678, %v1682
  %s1684 = scalar_lea.vmem [#allocation5], 48
  %1685 = vst [vmem:[%s1684] sm:$0xff] %v1683
  %s1686 = smul.u32 7, 4
  %s1687 = smul.addr %s1686, 8
  %s1688 = scalar_lea.vmem [#allocation4], %s1687
  %v1689 = vld [vmem:[%s1688] sm:$0xff]
  %v1690 = vld [vmem:[%s1688 + $0x8] sm:$0xff]
  %v1691 = vld [vmem:[%s1688 + $0x10] sm:$0xff]
  %v1692 = vld [vmem:[%s1688 + $0x18] sm:$0xff]
  %1693 = vmatprep.subr.mxu0 %v429
  %1694 = vmatpush1.msra.mxu0 %v428
  %1695 = vmatprep.subr.mxu0 %v425
  %1696 = vmatpush1.msra.mxu0 %v424
  %1697 = vmatprep.subr.mxu0 %v421
  %1698 = vmatpush1.msra.mxu0 %v420
  %1699 = vmatprep.subr.mxu0 %v417
  %1700 = vmatpush1.msra.mxu0 %v416
  %1701 = vmatprep.subr.mxu0 %v413
  %1702 = vmatpush1.msra.mxu0 %v412
  %1703 = vmatprep.subr.mxu0 %v409
  %1704 = vmatpush1.msra.mxu0 %v408
  %1705 = vmatprep.subr.mxu0 %v405
  %1706 = vmatpush1.msra.mxu0 %v404
  %1707 = vmatprep.subr.mxu0 %v401
  %1708 = vmatpush1.msra.mxu0 %v400
  %1709 = vmatprep.subr.mxu0 %v397
  %1710 = vmatpush1.msra.mxu0 %v396
  %1711 = vmatprep.subr.mxu0 %v393
  %1712 = vmatpush1.msra.mxu0 %v392
  %1713 = vmatprep.subr.mxu0 %v389
  %1714 = vmatpush1.msra.mxu0 %v388
  %1715 = vmatprep.subr.mxu0 %v385
  %1716 = vmatpush1.msra.mxu0 %v384
  %1717 = vmatprep.subr.mxu0 %v381
  %1718 = vmatpush1.msra.mxu0 %v380
  %1719 = vmatprep.subr.mxu0 %v377
  %1720 = vmatpush1.msra.mxu0 %v376
  %1721 = vmatprep.subr.mxu0 %v373
  %1722 = vmatpush1.msra.mxu0 %v372
  %1723 = vmatprep.subr.mxu0 %v369
  %1724 = vmatpush1.msra.mxu0 %v368
  %1725 = vmatprep.subr.mxu0 0.0
  %1726 = vmatpush2.msra.mxu0 0.0
  %1727 = vmatprep.subr.mxu0 0.0
  %1728 = vmatpush2.msra.mxu0 0.0
  %1729 = vmatprep.subr.mxu0 0.0
  %1730 = vmatpush2.msra.mxu0 0.0
  %1731 = vmatprep.subr.mxu0 0.0
  %1732 = vmatpush2.msra.mxu0 0.0
  %1733 = vmatprep.subr.mxu0 0.0
  %1734 = vmatpush2.msra.mxu0 0.0
  %1735 = vmatprep.subr.mxu0 0.0
  %1736 = vmatpush2.msra.mxu0 0.0
  %1737 = vmatprep.subr.mxu0 0.0
  %1738 = vmatpush2.msra.mxu0 0.0
  %1739 = vmatprep.subr.mxu0 0.0
  %1740 = vmatpush2.msra.mxu0 0.0
  %1741 = vmatprep.subr.mxu0 0.0
  %1742 = vmatpush2.msra.mxu0 0.0
  %1743 = vmatprep.subr.mxu0 0.0
  %1744 = vmatpush2.msra.mxu0 0.0
  %1745 = vmatprep.subr.mxu0 0.0
  %1746 = vmatpush2.msra.mxu0 0.0
  %1747 = vmatprep.subr.mxu0 0.0
  %1748 = vmatpush2.msra.mxu0 0.0
  %1749 = vmatprep.subr.mxu0 0.0
  %1750 = vmatpush2.msra.mxu0 0.0
  %1751 = vmatprep.subr.mxu0 0.0
  %1752 = vmatpush2.msra.mxu0 0.0
  %1753 = vmatprep.subr.mxu0 0.0
  %1754 = vmatpush2.msra.mxu0 0.0
  %1755 = vmatprep.subr.mxu0 0.0
  %1756 = vmatpush2.msra.mxu0 0.0
  %1757 = vmatprep.mubr.f32.mxu0 0.0
  %1758 = vmatmul.mubr.f32.gmra.mxu0 %v1683
  %v1759 = vpop.f32.mrf.mxu0
  %v1760 = vadd.f32 0.0, %v1759
  %v1761 = vpop.f32.mrf.mxu0
  %v1762 = vadd.f32 0.0, %v1761
  %1763 = vdwg.mxu0
  %1764 = vmatprep.subr.mxu0 %v431
  %1765 = vmatpush1.msra.mxu0 %v430
  %1766 = vmatprep.subr.mxu0 %v427
  %1767 = vmatpush1.msra.mxu0 %v426
  %1768 = vmatprep.subr.mxu0 %v423
  %1769 = vmatpush1.msra.mxu0 %v422
  %1770 = vmatprep.subr.mxu0 %v419
  %1771 = vmatpush1.msra.mxu0 %v418
  %1772 = vmatprep.subr.mxu0 %v415
  %1773 = vmatpush1.msra.mxu0 %v414
  %1774 = vmatprep.subr.mxu0 %v411
  %1775 = vmatpush1.msra.mxu0 %v410
  %1776 = vmatprep.subr.mxu0 %v407
  %1777 = vmatpush1.msra.mxu0 %v406
  %1778 = vmatprep.subr.mxu0 %v403
  %1779 = vmatpush1.msra.mxu0 %v402
  %1780 = vmatprep.subr.mxu0 %v399
  %1781 = vmatpush1.msra.mxu0 %v398
  %1782 = vmatprep.subr.mxu0 %v395
  %1783 = vmatpush1.msra.mxu0 %v394
  %1784 = vmatprep.subr.mxu0 %v391
  %1785 = vmatpush1.msra.mxu0 %v390
  %1786 = vmatprep.subr.mxu0 %v387
  %1787 = vmatpush1.msra.mxu0 %v386
  %1788 = vmatprep.subr.mxu0 %v383
  %1789 = vmatpush1.msra.mxu0 %v382
  %1790 = vmatprep.subr.mxu0 %v379
  %1791 = vmatpush1.msra.mxu0 %v378
  %1792 = vmatprep.subr.mxu0 %v375
  %1793 = vmatpush1.msra.mxu0 %v374
  %1794 = vmatprep.subr.mxu0 %v371
  %1795 = vmatpush1.msra.mxu0 %v370
  %1796 = vmatprep.subr.mxu0 0.0
  %1797 = vmatpush2.msra.mxu0 0.0
  %1798 = vmatprep.subr.mxu0 0.0
  %1799 = vmatpush2.msra.mxu0 0.0
  %1800 = vmatprep.subr.mxu0 0.0
  %1801 = vmatpush2.msra.mxu0 0.0
  %1802 = vmatprep.subr.mxu0 0.0
  %1803 = vmatpush2.msra.mxu0 0.0
  %1804 = vmatprep.subr.mxu0 0.0
  %1805 = vmatpush2.msra.mxu0 0.0
  %1806 = vmatprep.subr.mxu0 0.0
  %1807 = vmatpush2.msra.mxu0 0.0
  %1808 = vmatprep.subr.mxu0 0.0
  %1809 = vmatpush2.msra.mxu0 0.0
  %1810 = vmatprep.subr.mxu0 0.0
  %1811 = vmatpush2.msra.mxu0 0.0
  %1812 = vmatprep.subr.mxu0 0.0
  %1813 = vmatpush2.msra.mxu0 0.0
  %1814 = vmatprep.subr.mxu0 0.0
  %1815 = vmatpush2.msra.mxu0 0.0
  %1816 = vmatprep.subr.mxu0 0.0
  %1817 = vmatpush2.msra.mxu0 0.0
  %1818 = vmatprep.subr.mxu0 0.0
  %1819 = vmatpush2.msra.mxu0 0.0
  %1820 = vmatprep.subr.mxu0 0.0
  %1821 = vmatpush2.msra.mxu0 0.0
  %1822 = vmatprep.subr.mxu0 0.0
  %1823 = vmatpush2.msra.mxu0 0.0
  %1824 = vmatprep.subr.mxu0 0.0
  %1825 = vmatpush2.msra.mxu0 0.0
  %1826 = vmatprep.subr.mxu0 0.0
  %1827 = vmatpush2.msra.mxu0 0.0
  %1828 = vmatprep.mubr.f32.mxu0 0.0
  %1829 = vmatmul.mubr.f32.gmra.mxu0 %v1683
  %v1830 = vpop.f32.mrf.mxu0
  %v1831 = vadd.f32 0.0, %v1830
  %v1832 = vpop.f32.mrf.mxu0
  %v1833 = vadd.f32 0.0, %v1832
  %1834 = vdwg.mxu0
  %v1835 = vadd.f32 %v1689, %v1760
  %v1836 = vadd.f32 %v1690, %v1762
  %v1837 = vadd.f32 %v1691, %v1831
  %v1838 = vadd.f32 %v1692, %v1833
  %v1839 = vxor.u32 %v1835, 2147483648
  %v1840 = vmul.f32 %v1839, 1.442695
  %v1841 = vpow.pop %v1840
  %v1842 = vadd.f32 %v1841, 1.0
  %v1843 = vrcp.pop %v1842
  %v1844 = vmul.f32 1.0, %v1843
  %v1845 = vxor.u32 %v1836, 2147483648
  %v1846 = vmul.f32 %v1845, 1.442695
  %v1847 = vpow.pop %v1846
  %v1848 = vadd.f32 %v1847, 1.0
  %v1849 = vrcp.pop %v1848
  %v1850 = vmul.f32 1.0, %v1849
  %v1851 = vtanh.pop %v1837
  %v1852 = vxor.u32 %v1838, 2147483648
  %v1853 = vmul.f32 %v1852, 1.442695
  %v1854 = vpow.pop %v1853
  %v1855 = vadd.f32 %v1854, 1.0
  %v1856 = vrcp.pop %v1855
  %v1857 = vmul.f32 1.0, %v1856
  %v1858 = vmul.f32 %v1850, %v1681
  %v1859 = vmul.f32 %v1844, %v1851
  %v1860 = vadd.f32 %v1858, %v1859
  %v1861 = vtanh.pop %v1860
  %v1862 = vmul.f32 %v1857, %v1861
  %s1863 = scalar_lea.vmem [#allocation5], 56
  %1864 = vst [vmem:[%s1863] sm:$0xff] %v1862
  %1865 = vst [vmem:[#allocation2] sm:$0xff] %v1862
  %1866 = vst [vmem:[#allocation3] sm:$0xff] %v1860
  %v1867 = vld [vmem:[#allocation5] sm:$0xff]
  %v1868 = vld [vmem:[#allocation5 + $0x8] sm:$0xff]
  %v1869 = vld [vmem:[#allocation5 + $0x10] sm:$0xff]
  %v1870 = vld [vmem:[#allocation5 + $0x18] sm:$0xff]
  %v1871 = vld [vmem:[#allocation5 + $0x20] sm:$0xff]
  %v1872 = vld [vmem:[#allocation5 + $0x28] sm:$0xff]
  %v1873 = vld [vmem:[#allocation5 + $0x30] sm:$0xff]
  %v1874 = vld [vmem:[#allocation5 + $0x38] sm:$0xff]
  %v1875 = vld [vmem:[%s4] sm:$0xff]
  %v1876 = vld [vmem:[%s4 + $0x8] sm:$0xff]
  %v1877 = vld [vmem:[%s4 + $0x10] sm:$0xff]
  %v1878 = vld [vmem:[%s4 + $0x18] sm:$0xff]
  %v1879 = vld [vmem:[%s4 + $0x20] sm:$0xff]
  %v1880 = vld [vmem:[%s4 + $0x28] sm:$0xff]
  %v1881 = vld [vmem:[%s4 + $0x30] sm:$0xff]
  %v1882 = vld [vmem:[%s4 + $0x38] sm:$0xff]
  %v1883 = vld [vmem:[%s4 + $0x40] sm:$0xff]
  %v1884 = vld [vmem:[%s4 + $0x48] sm:$0xff]
  %v1885 = vld [vmem:[%s4 + $0x50] sm:$0xff]
  %v1886 = vld [vmem:[%s4 + $0x58] sm:$0xff]
  %v1887 = vld [vmem:[%s4 + $0x60] sm:$0xff]
  %v1888 = vld [vmem:[%s4 + $0x68] sm:$0xff]
  %v1889 = vld [vmem:[%s4 + $0x70] sm:$0xff]
  %v1890 = vld [vmem:[%s4 + $0x78] sm:$0xff]
  %v1891 = vld [vmem:[%s4 + $0x80] sm:$0xff]
  %v1892 = vld [vmem:[%s4 + $0x88] sm:$0xff]
  %v1893 = vld [vmem:[%s4 + $0x90] sm:$0xff]
  %v1894 = vld [vmem:[%s4 + $0x98] sm:$0xff]
  %v1895 = vld [vmem:[%s4 + $0xa0] sm:$0xff]
  %v1896 = vld [vmem:[%s4 + $0xa8] sm:$0xff]
  %v1897 = vld [vmem:[%s4 + $0xb0] sm:$0xff]
  %v1898 = vld [vmem:[%s4 + $0xb8] sm:$0xff]
  %v1899 = vld [vmem:[%s4 + $0xc0] sm:$0xff]
  %v1900 = vld [vmem:[%s4 + $0xc8] sm:$0xff]
  %v1901 = vld [vmem:[%s4 + $0xd0] sm:$0xff]
  %v1902 = vld [vmem:[%s4 + $0xd8] sm:$0xff]
  %v1903 = vld [vmem:[%s4 + $0xe0] sm:$0xff]
  %v1904 = vld [vmem:[%s4 + $0xe8] sm:$0xff]
  %v1905 = vld [vmem:[%s4 + $0xf0] sm:$0xff]
  %v1906 = vld [vmem:[%s4 + $0xf8] sm:$0xff]
  %v1907 = vld [vmem:[%s4 + $0x100] sm:$0xff]
  %v1908 = vld [vmem:[%s4 + $0x108] sm:$0xff]
  %v1909 = vld [vmem:[%s4 + $0x110] sm:$0xff]
  %v1910 = vld [vmem:[%s4 + $0x118] sm:$0xff]
  %v1911 = vld [vmem:[%s4 + $0x120] sm:$0xff]
  %v1912 = vld [vmem:[%s4 + $0x128] sm:$0xff]
  %v1913 = vld [vmem:[%s4 + $0x130] sm:$0xff]
  %v1914 = vld [vmem:[%s4 + $0x138] sm:$0xff]
  %v1915 = vld [vmem:[%s4 + $0x140] sm:$0xff]
  %v1916 = vld [vmem:[%s4 + $0x148] sm:$0xff]
  %v1917 = vld [vmem:[%s4 + $0x150] sm:$0xff]
  %v1918 = vld [vmem:[%s4 + $0x158] sm:$0xff]
  %v1919 = vld [vmem:[%s4 + $0x160] sm:$0xff]
  %v1920 = vld [vmem:[%s4 + $0x168] sm:$0xff]
  %v1921 = vld [vmem:[%s4 + $0x170] sm:$0xff]
  %v1922 = vld [vmem:[%s4 + $0x178] sm:$0xff]
  %v1923 = vld [vmem:[%s4 + $0x180] sm:$0xff]
  %v1924 = vld [vmem:[%s4 + $0x188] sm:$0xff]
  %v1925 = vld [vmem:[%s4 + $0x190] sm:$0xff]
  %v1926 = vld [vmem:[%s4 + $0x198] sm:$0xff]
  %v1927 = vld [vmem:[%s4 + $0x1a0] sm:$0xff]
  %v1928 = vld [vmem:[%s4 + $0x1a8] sm:$0xff]
  %v1929 = vld [vmem:[%s4 + $0x1b0] sm:$0xff]
  %v1930 = vld [vmem:[%s4 + $0x1b8] sm:$0xff]
  %v1931 = vld [vmem:[%s4 + $0x1c0] sm:$0xff]
  %v1932 = vld [vmem:[%s4 + $0x1c8] sm:$0xff]
  %v1933 = vld [vmem:[%s4 + $0x1d0] sm:$0xff]
  %v1934 = vld [vmem:[%s4 + $0x1d8] sm:$0xff]
  %v1935 = vld [vmem:[%s4 + $0x1e0] sm:$0xff]
  %v1936 = vld [vmem:[%s4 + $0x1e8] sm:$0xff]
  %v1937 = vld [vmem:[%s4 + $0x1f0] sm:$0xff]
  %v1938 = vld [vmem:[%s4 + $0x1f8] sm:$0xff]
  %v1939 = vld [vmem:[%s6] sm:$0xf]
  %v1941 = vlaneseq
  %v1942 = vshrl.u32 %v1941, 7
  %v1943 = vsub.s32 0, %v1942
  %v1944 = vrot.slane %v1939, %v1943
  %v1945 = vlaneseq
  %v1946 = vshrl.u32 %v1945, 7
  %v1947 = vsub.s32 1, %v1946
  %v1948 = vrot.slane %v1939, %v1947
  %v1949 = vlaneseq
  %v1950 = vshrl.u32 %v1949, 7
  %v1951 = vsub.s32 2, %v1950
  %v1952 = vrot.slane %v1939, %v1951
  %v1953 = vlaneseq
  %v1954 = vshrl.u32 %v1953, 7
  %v1955 = vsub.s32 3, %v1954
  %v1956 = vrot.slane %v1939, %v1955
  %1961 = vmatprep.subr.mxu0 %v1936
  %1962 = vmatpush1.msra.mxu0 %v1935
  %1963 = vmatprep.subr.mxu0 %v1932
  %1964 = vmatpush1.msra.mxu0 %v1931
  %1965 = vmatprep.subr.mxu0 %v1928
  %1966 = vmatpush1.msra.mxu0 %v1927
  %1967 = vmatprep.subr.mxu0 %v1924
  %1968 = vmatpush1.msra.mxu0 %v1923
  %1969 = vmatprep.subr.mxu0 %v1920
  %1970 = vmatpush1.msra.mxu0 %v1919
  %1971 = vmatprep.subr.mxu0 %v1916
  %1972 = vmatpush1.msra.mxu0 %v1915
  %1973 = vmatprep.subr.mxu0 %v1912
  %1974 = vmatpush1.msra.mxu0 %v1911
  %1975 = vmatprep.subr.mxu0 %v1908
  %1976 = vmatpush1.msra.mxu0 %v1907
  %1977 = vmatprep.subr.mxu0 %v1904
  %1978 = vmatpush1.msra.mxu0 %v1903
  %1979 = vmatprep.subr.mxu0 %v1900
  %1980 = vmatpush1.msra.mxu0 %v1899
  %1981 = vmatprep.subr.mxu0 %v1896
  %1982 = vmatpush1.msra.mxu0 %v1895
  %1983 = vmatprep.subr.mxu0 %v1892
  %1984 = vmatpush1.msra.mxu0 %v1891
  %1985 = vmatprep.subr.mxu0 %v1888
  %1986 = vmatpush1.msra.mxu0 %v1887
  %1987 = vmatprep.subr.mxu0 %v1884
  %1988 = vmatpush1.msra.mxu0 %v1883
  %1989 = vmatprep.subr.mxu0 %v1880
  %1990 = vmatpush1.msra.mxu0 %v1879
  %1991 = vmatprep.subr.mxu0 %v1876
  %1992 = vmatpush1.msra.mxu0 %v1875
  %1993 = vmatprep.subr.mxu0 0.0
  %1994 = vmatpush2.msra.mxu0 0.0
  %1995 = vmatprep.subr.mxu0 0.0
  %1996 = vmatpush2.msra.mxu0 0.0
  %1997 = vmatprep.subr.mxu0 0.0
  %1998 = vmatpush2.msra.mxu0 0.0
  %1999 = vmatprep.subr.mxu0 0.0
  %2000 = vmatpush2.msra.mxu0 0.0
  %2001 = vmatprep.subr.mxu0 0.0
  %2002 = vmatpush2.msra.mxu0 0.0
  %2003 = vmatprep.subr.mxu0 0.0
  %2004 = vmatpush2.msra.mxu0 0.0
  %2005 = vmatprep.subr.mxu0 0.0
  %2006 = vmatpush2.msra.mxu0 0.0
  %2007 = vmatprep.subr.mxu0 0.0
  %2008 = vmatpush2.msra.mxu0 0.0
  %2009 = vmatprep.subr.mxu0 0.0
  %2010 = vmatpush2.msra.mxu0 0.0
  %2011 = vmatprep.subr.mxu0 0.0
  %2012 = vmatpush2.msra.mxu0 0.0
  %2013 = vmatprep.subr.mxu0 0.0
  %2014 = vmatpush2.msra.mxu0 0.0
  %2015 = vmatprep.subr.mxu0 0.0
  %2016 = vmatpush2.msra.mxu0 0.0
  %2017 = vmatprep.subr.mxu0 0.0
  %2018 = vmatpush2.msra.mxu0 0.0
  %2019 = vmatprep.subr.mxu0 0.0
  %2020 = vmatpush2.msra.mxu0 0.0
  %2021 = vmatprep.subr.mxu0 0.0
  %2022 = vmatpush2.msra.mxu0 0.0
  %2023 = vmatprep.subr.mxu0 0.0
  %2024 = vmatpush2.msra.mxu0 0.0
  %2025 = vmatprep.mubr.f32.mxu0 0.0
  %2026 = vmatmul.mubr.f32.gmra.mxu0 %v1867
  %v2027 = vpop.f32.mrf.mxu0
  %v2028 = vadd.f32 %v1944, %v2027
  %v2029 = vpop.f32.mrf.mxu0
  %v2030 = vadd.f32 %v1948, %v2029
  %2031 = vmatprep.mubr.f32.mxu0 0.0
  %2032 = vmatmul.mubr.f32.gmra.mxu0 %v1868
  %v2033 = vpop.f32.mrf.mxu0
  %v2034 = vadd.f32 %v1944, %v2033
  %v2035 = vpop.f32.mrf.mxu0
  %v2036 = vadd.f32 %v1948, %v2035
  %2037 = vmatprep.mubr.f32.mxu0 0.0
  %2038 = vmatmul.mubr.f32.gmra.mxu0 %v1869
  %v2039 = vpop.f32.mrf.mxu0
  %v2040 = vadd.f32 %v1944, %v2039
  %v2041 = vpop.f32.mrf.mxu0
  %v2042 = vadd.f32 %v1948, %v2041
  %2043 = vmatprep.mubr.f32.mxu0 0.0
  %2044 = vmatmul.mubr.f32.gmra.mxu0 %v1870
  %v2045 = vpop.f32.mrf.mxu0
  %v2046 = vadd.f32 %v1944, %v2045
  %v2047 = vpop.f32.mrf.mxu0
  %v2048 = vadd.f32 %v1948, %v2047
  %2049 = vmatprep.mubr.f32.mxu0 0.0
  %2050 = vmatmul.mubr.f32.gmra.mxu0 %v1871
  %v2051 = vpop.f32.mrf.mxu0
  %v2052 = vadd.f32 %v1944, %v2051
  %v2053 = vpop.f32.mrf.mxu0
  %v2054 = vadd.f32 %v1948, %v2053
  %2055 = vmatprep.mubr.f32.mxu0 0.0
  %2056 = vmatmul.mubr.f32.gmra.mxu0 %v1872
  %v2057 = vpop.f32.mrf.mxu0
  %v2058 = vadd.f32 %v1944, %v2057
  %v2059 = vpop.f32.mrf.mxu0
  %v2060 = vadd.f32 %v1948, %v2059
  %2061 = vmatprep.mubr.f32.mxu0 0.0
  %2062 = vmatmul.mubr.f32.gmra.mxu0 %v1873
  %v2063 = vpop.f32.mrf.mxu0
  %v2064 = vadd.f32 %v1944, %v2063
  %v2065 = vpop.f32.mrf.mxu0
  %v2066 = vadd.f32 %v1948, %v2065
  %2067 = vmatprep.mubr.f32.mxu0 0.0
  %2068 = vmatmul.mubr.f32.gmra.mxu0 %v1874
  %v2069 = vpop.f32.mrf.mxu0
  %v2070 = vadd.f32 %v1944, %v2069
  %v2071 = vpop.f32.mrf.mxu0
  %v2072 = vadd.f32 %v1948, %v2071
  %2073 = vdwg.mxu0
  %2074 = vmatprep.subr.mxu0 %v1938
  %2075 = vmatpush1.msra.mxu0 %v1937
  %2076 = vmatprep.subr.mxu0 %v1934
  %2077 = vmatpush1.msra.mxu0 %v1933
  %2078 = vmatprep.subr.mxu0 %v1930
  %2079 = vmatpush1.msra.mxu0 %v1929
  %2080 = vmatprep.subr.mxu0 %v1926
  %2081 = vmatpush1.msra.mxu0 %v1925
  %2082 = vmatprep.subr.mxu0 %v1922
  %2083 = vmatpush1.msra.mxu0 %v1921
  %2084 = vmatprep.subr.mxu0 %v1918
  %2085 = vmatpush1.msra.mxu0 %v1917
  %2086 = vmatprep.subr.mxu0 %v1914
  %2087 = vmatpush1.msra.mxu0 %v1913
  %2088 = vmatprep.subr.mxu0 %v1910
  %2089 = vmatpush1.msra.mxu0 %v1909
  %2090 = vmatprep.subr.mxu0 %v1906
  %2091 = vmatpush1.msra.mxu0 %v1905
  %2092 = vmatprep.subr.mxu0 %v1902
  %2093 = vmatpush1.msra.mxu0 %v1901
  %2094 = vmatprep.subr.mxu0 %v1898
  %2095 = vmatpush1.msra.mxu0 %v1897
  %2096 = vmatprep.subr.mxu0 %v1894
  %2097 = vmatpush1.msra.mxu0 %v1893
  %2098 = vmatprep.subr.mxu0 %v1890
  %2099 = vmatpush1.msra.mxu0 %v1889
  %2100 = vmatprep.subr.mxu0 %v1886
  %2101 = vmatpush1.msra.mxu0 %v1885
  %2102 = vmatprep.subr.mxu0 %v1882
  %2103 = vmatpush1.msra.mxu0 %v1881
  %2104 = vmatprep.subr.mxu0 %v1878
  %2105 = vmatpush1.msra.mxu0 %v1877
  %2106 = vmatprep.subr.mxu0 0.0
  %2107 = vmatpush2.msra.mxu0 0.0
  %2108 = vmatprep.subr.mxu0 0.0
  %2109 = vmatpush2.msra.mxu0 0.0
  %2110 = vmatprep.subr.mxu0 0.0
  %2111 = vmatpush2.msra.mxu0 0.0
  %2112 = vmatprep.subr.mxu0 0.0
  %2113 = vmatpush2.msra.mxu0 0.0
  %2114 = vmatprep.subr.mxu0 0.0
  %2115 = vmatpush2.msra.mxu0 0.0
  %2116 = vmatprep.subr.mxu0 0.0
  %2117 = vmatpush2.msra.mxu0 0.0
  %2118 = vmatprep.subr.mxu0 0.0
  %2119 = vmatpush2.msra.mxu0 0.0
  %2120 = vmatprep.subr.mxu0 0.0
  %2121 = vmatpush2.msra.mxu0 0.0
  %2122 = vmatprep.subr.mxu0 0.0
  %2123 = vmatpush2.msra.mxu0 0.0
  %2124 = vmatprep.subr.mxu0 0.0
  %2125 = vmatpush2.msra.mxu0 0.0
  %2126 = vmatprep.subr.mxu0 0.0
  %2127 = vmatpush2.msra.mxu0 0.0
  %2128 = vmatprep.subr.mxu0 0.0
  %2129 = vmatpush2.msra.mxu0 0.0
  %2130 = vmatprep.subr.mxu0 0.0
  %2131 = vmatpush2.msra.mxu0 0.0
  %2132 = vmatprep.subr.mxu0 0.0
  %2133 = vmatpush2.msra.mxu0 0.0
  %2134 = vmatprep.subr.mxu0 0.0
  %2135 = vmatpush2.msra.mxu0 0.0
  %2136 = vmatprep.subr.mxu0 0.0
  %2137 = vmatpush2.msra.mxu0 0.0
  %2138 = vmatprep.mubr.f32.mxu0 0.0
  %2139 = vmatmul.mubr.f32.gmra.mxu0 %v1867
  %v2140 = vpop.f32.mrf.mxu0
  %v2141 = vadd.f32 %v1952, %v2140
  %v2142 = vpop.f32.mrf.mxu0
  %v2143 = vadd.f32 %v1956, %v2142
  %2144 = vmatprep.mubr.f32.mxu0 0.0
  %2145 = vmatmul.mubr.f32.gmra.mxu0 %v1868
  %v2146 = vpop.f32.mrf.mxu0
  %v2147 = vadd.f32 %v1952, %v2146
  %v2148 = vpop.f32.mrf.mxu0
  %v2149 = vadd.f32 %v1956, %v2148
  %2150 = vmatprep.mubr.f32.mxu0 0.0
  %2151 = vmatmul.mubr.f32.gmra.mxu0 %v1869
  %v2152 = vpop.f32.mrf.mxu0
  %v2153 = vadd.f32 %v1952, %v2152
  %v2154 = vpop.f32.mrf.mxu0
  %v2155 = vadd.f32 %v1956, %v2154
  %2156 = vmatprep.mubr.f32.mxu0 0.0
  %2157 = vmatmul.mubr.f32.gmra.mxu0 %v1870
  %v2158 = vpop.f32.mrf.mxu0
  %v2159 = vadd.f32 %v1952, %v2158
  %v2160 = vpop.f32.mrf.mxu0
  %v2161 = vadd.f32 %v1956, %v2160
  %2162 = vmatprep.mubr.f32.mxu0 0.0
  %2163 = vmatmul.mubr.f32.gmra.mxu0 %v1871
  %v2164 = vpop.f32.mrf.mxu0
  %v2165 = vadd.f32 %v1952, %v2164
  %v2166 = vpop.f32.mrf.mxu0
  %v2167 = vadd.f32 %v1956, %v2166
  %2168 = vmatprep.mubr.f32.mxu0 0.0
  %2169 = vmatmul.mubr.f32.gmra.mxu0 %v1872
  %v2170 = vpop.f32.mrf.mxu0
  %v2171 = vadd.f32 %v1952, %v2170
  %v2172 = vpop.f32.mrf.mxu0
  %v2173 = vadd.f32 %v1956, %v2172
  %2174 = vmatprep.mubr.f32.mxu0 0.0
  %2175 = vmatmul.mubr.f32.gmra.mxu0 %v1873
  %v2176 = vpop.f32.mrf.mxu0
  %v2177 = vadd.f32 %v1952, %v2176
  %v2178 = vpop.f32.mrf.mxu0
  %v2179 = vadd.f32 %v1956, %v2178
  %2180 = vmatprep.mubr.f32.mxu0 0.0
  %2181 = vmatmul.mubr.f32.gmra.mxu0 %v1874
  %v2182 = vpop.f32.mrf.mxu0
  %v2183 = vadd.f32 %v1952, %v2182
  %v2184 = vpop.f32.mrf.mxu0
  %v2185 = vadd.f32 %v1956, %v2184
  %2186 = vdwg.mxu0
  %2187 = vst [vmem:[#allocation4] sm:$0xff] %v2028
  %2188 = vst [vmem:[#allocation4 + $0x8] sm:$0xff] %v2030
  %2189 = vst [vmem:[#allocation4 + $0x10] sm:$0xff] %v2141
  %2190 = vst [vmem:[#allocation4 + $0x18] sm:$0xff] %v2143
  %2191 = vst [vmem:[#allocation4 + $0x20] sm:$0xff] %v2034
  %2192 = vst [vmem:[#allocation4 + $0x28] sm:$0xff] %v2036
  %2193 = vst [vmem:[#allocation4 + $0x30] sm:$0xff] %v2147
  %2194 = vst [vmem:[#allocation4 + $0x38] sm:$0xff] %v2149
  %2195 = vst [vmem:[#allocation4 + $0x40] sm:$0xff] %v2040
  %2196 = vst [vmem:[#allocation4 + $0x48] sm:$0xff] %v2042
  %2197 = vst [vmem:[#allocation4 + $0x50] sm:$0xff] %v2153
  %2198 = vst [vmem:[#allocation4 + $0x58] sm:$0xff] %v2155
  %2199 = vst [vmem:[#allocation4 + $0x60] sm:$0xff] %v2046
  %2200 = vst [vmem:[#allocation4 + $0x68] sm:$0xff] %v2048
  %2201 = vst [vmem:[#allocation4 + $0x70] sm:$0xff] %v2159
  %2202 = vst [vmem:[#allocation4 + $0x78] sm:$0xff] %v2161
  %2203 = vst [vmem:[#allocation4 + $0x80] sm:$0xff] %v2052
  %2204 = vst [vmem:[#allocation4 + $0x88] sm:$0xff] %v2054
  %2205 = vst [vmem:[#allocation4 + $0x90] sm:$0xff] %v2165
  %2206 = vst [vmem:[#allocation4 + $0x98] sm:$0xff] %v2167
  %2207 = vst [vmem:[#allocation4 + $0xa0] sm:$0xff] %v2058
  %2208 = vst [vmem:[#allocation4 + $0xa8] sm:$0xff] %v2060
  %2209 = vst [vmem:[#allocation4 + $0xb0] sm:$0xff] %v2171
  %2210 = vst [vmem:[#allocation4 + $0xb8] sm:$0xff] %v2173
  %2211 = vst [vmem:[#allocation4 + $0xc0] sm:$0xff] %v2064
  %2212 = vst [vmem:[#allocation4 + $0xc8] sm:$0xff] %v2066
  %2213 = vst [vmem:[#allocation4 + $0xd0] sm:$0xff] %v2177
  %2214 = vst [vmem:[#allocation4 + $0xd8] sm:$0xff] %v2179
  %2215 = vst [vmem:[#allocation4 + $0xe0] sm:$0xff] %v2070
  %2216 = vst [vmem:[#allocation4 + $0xe8] sm:$0xff] %v2072
  %2217 = vst [vmem:[#allocation4 + $0xf0] sm:$0xff] %v2183
  %2218 = vst [vmem:[#allocation4 + $0xf8] sm:$0xff] %v2185
  %v2219 = vld [vmem:[%s5] sm:$0xff]
  %v2220 = vld [vmem:[%s5 + $0x8] sm:$0xff]
  %v2221 = vld [vmem:[%s5 + $0x10] sm:$0xff]
  %v2222 = vld [vmem:[%s5 + $0x18] sm:$0xff]
  %v2223 = vld [vmem:[%s5 + $0x20] sm:$0xff]
  %v2224 = vld [vmem:[%s5 + $0x28] sm:$0xff]
  %v2225 = vld [vmem:[%s5 + $0x30] sm:$0xff]
  %v2226 = vld [vmem:[%s5 + $0x38] sm:$0xff]
  %v2227 = vld [vmem:[%s5 + $0x40] sm:$0xff]
  %v2228 = vld [vmem:[%s5 + $0x48] sm:$0xff]
  %v2229 = vld [vmem:[%s5 + $0x50] sm:$0xff]
  %v2230 = vld [vmem:[%s5 + $0x58] sm:$0xff]
  %v2231 = vld [vmem:[%s5 + $0x60] sm:$0xff]
  %v2232 = vld [vmem:[%s5 + $0x68] sm:$0xff]
  %v2233 = vld [vmem:[%s5 + $0x70] sm:$0xff]
  %v2234 = vld [vmem:[%s5 + $0x78] sm:$0xff]
  %v2235 = vld [vmem:[%s5 + $0x80] sm:$0xff]
  %v2236 = vld [vmem:[%s5 + $0x88] sm:$0xff]
  %v2237 = vld [vmem:[%s5 + $0x90] sm:$0xff]
  %v2238 = vld [vmem:[%s5 + $0x98] sm:$0xff]
  %v2239 = vld [vmem:[%s5 + $0xa0] sm:$0xff]
  %v2240 = vld [vmem:[%s5 + $0xa8] sm:$0xff]
  %v2241 = vld [vmem:[%s5 + $0xb0] sm:$0xff]
  %v2242 = vld [vmem:[%s5 + $0xb8] sm:$0xff]
  %v2243 = vld [vmem:[%s5 + $0xc0] sm:$0xff]
  %v2244 = vld [vmem:[%s5 + $0xc8] sm:$0xff]
  %v2245 = vld [vmem:[%s5 + $0xd0] sm:$0xff]
  %v2246 = vld [vmem:[%s5 + $0xd8] sm:$0xff]
  %v2247 = vld [vmem:[%s5 + $0xe0] sm:$0xff]
  %v2248 = vld [vmem:[%s5 + $0xe8] sm:$0xff]
  %v2249 = vld [vmem:[%s5 + $0xf0] sm:$0xff]
  %v2250 = vld [vmem:[%s5 + $0xf8] sm:$0xff]
  %v2251 = vld [vmem:[%s5 + $0x100] sm:$0xff]
  %v2252 = vld [vmem:[%s5 + $0x108] sm:$0xff]
  %v2253 = vld [vmem:[%s5 + $0x110] sm:$0xff]
  %v2254 = vld [vmem:[%s5 + $0x118] sm:$0xff]
  %v2255 = vld [vmem:[%s5 + $0x120] sm:$0xff]
  %v2256 = vld [vmem:[%s5 + $0x128] sm:$0xff]
  %v2257 = vld [vmem:[%s5 + $0x130] sm:$0xff]
  %v2258 = vld [vmem:[%s5 + $0x138] sm:$0xff]
  %v2259 = vld [vmem:[%s5 + $0x140] sm:$0xff]
  %v2260 = vld [vmem:[%s5 + $0x148] sm:$0xff]
  %v2261 = vld [vmem:[%s5 + $0x150] sm:$0xff]
  %v2262 = vld [vmem:[%s5 + $0x158] sm:$0xff]
  %v2263 = vld [vmem:[%s5 + $0x160] sm:$0xff]
  %v2264 = vld [vmem:[%s5 + $0x168] sm:$0xff]
  %v2265 = vld [vmem:[%s5 + $0x170] sm:$0xff]
  %v2266 = vld [vmem:[%s5 + $0x178] sm:$0xff]
  %v2267 = vld [vmem:[%s5 + $0x180] sm:$0xff]
  %v2268 = vld [vmem:[%s5 + $0x188] sm:$0xff]
  %v2269 = vld [vmem:[%s5 + $0x190] sm:$0xff]
  %v2270 = vld [vmem:[%s5 + $0x198] sm:$0xff]
  %v2271 = vld [vmem:[%s5 + $0x1a0] sm:$0xff]
  %v2272 = vld [vmem:[%s5 + $0x1a8] sm:$0xff]
  %v2273 = vld [vmem:[%s5 + $0x1b0] sm:$0xff]
  %v2274 = vld [vmem:[%s5 + $0x1b8] sm:$0xff]
  %v2275 = vld [vmem:[%s5 + $0x1c0] sm:$0xff]
  %v2276 = vld [vmem:[%s5 + $0x1c8] sm:$0xff]
  %v2277 = vld [vmem:[%s5 + $0x1d0] sm:$0xff]
  %v2278 = vld [vmem:[%s5 + $0x1d8] sm:$0xff]
  %v2279 = vld [vmem:[%s5 + $0x1e0] sm:$0xff]
  %v2280 = vld [vmem:[%s5 + $0x1e8] sm:$0xff]
  %v2281 = vld [vmem:[%s5 + $0x1f0] sm:$0xff]
  %v2282 = vld [vmem:[%s5 + $0x1f8] sm:$0xff]
  %s2283 = scalar_lea.vmem [#allocation2], 8
  %v2284 = vld [vmem:[%s2283] sm:$0xff]
  %s2285 = scalar_lea.vmem [#allocation3], 8
  %v2286 = vld [vmem:[%s2285] sm:$0xff]
  %v2287 = vld [vmem:[%s436] sm:$0xff]
  %v2288 = vld [vmem:[%s436 + $0x8] sm:$0xff]
  %v2289 = vld [vmem:[%s436 + $0x10] sm:$0xff]
  %v2290 = vld [vmem:[%s436 + $0x18] sm:$0xff]
  %2291 = vmatprep.subr.mxu0 %v2280
  %2292 = vmatpush1.msra.mxu0 %v2279
  %2293 = vmatprep.subr.mxu0 %v2276
  %2294 = vmatpush1.msra.mxu0 %v2275
  %2295 = vmatprep.subr.mxu0 %v2272
  %2296 = vmatpush1.msra.mxu0 %v2271
  %2297 = vmatprep.subr.mxu0 %v2268
  %2298 = vmatpush1.msra.mxu0 %v2267
  %2299 = vmatprep.subr.mxu0 %v2264
  %2300 = vmatpush1.msra.mxu0 %v2263
  %2301 = vmatprep.subr.mxu0 %v2260
  %2302 = vmatpush1.msra.mxu0 %v2259
  %2303 = vmatprep.subr.mxu0 %v2256
  %2304 = vmatpush1.msra.mxu0 %v2255
  %2305 = vmatprep.subr.mxu0 %v2252
  %2306 = vmatpush1.msra.mxu0 %v2251
  %2307 = vmatprep.subr.mxu0 %v2248
  %2308 = vmatpush1.msra.mxu0 %v2247
  %2309 = vmatprep.subr.mxu0 %v2244
  %2310 = vmatpush1.msra.mxu0 %v2243
  %2311 = vmatprep.subr.mxu0 %v2240
  %2312 = vmatpush1.msra.mxu0 %v2239
  %2313 = vmatprep.subr.mxu0 %v2236
  %2314 = vmatpush1.msra.mxu0 %v2235
  %2315 = vmatprep.subr.mxu0 %v2232
  %2316 = vmatpush1.msra.mxu0 %v2231
  %2317 = vmatprep.subr.mxu0 %v2228
  %2318 = vmatpush1.msra.mxu0 %v2227
  %2319 = vmatprep.subr.mxu0 %v2224
  %2320 = vmatpush1.msra.mxu0 %v2223
  %2321 = vmatprep.subr.mxu0 %v2220
  %2322 = vmatpush1.msra.mxu0 %v2219
  %2323 = vmatprep.subr.mxu0 0.0
  %2324 = vmatpush2.msra.mxu0 0.0
  %2325 = vmatprep.subr.mxu0 0.0
  %2326 = vmatpush2.msra.mxu0 0.0
  %2327 = vmatprep.subr.mxu0 0.0
  %2328 = vmatpush2.msra.mxu0 0.0
  %2329 = vmatprep.subr.mxu0 0.0
  %2330 = vmatpush2.msra.mxu0 0.0
  %2331 = vmatprep.subr.mxu0 0.0
  %2332 = vmatpush2.msra.mxu0 0.0
  %2333 = vmatprep.subr.mxu0 0.0
  %2334 = vmatpush2.msra.mxu0 0.0
  %2335 = vmatprep.subr.mxu0 0.0
  %2336 = vmatpush2.msra.mxu0 0.0
  %2337 = vmatprep.subr.mxu0 0.0
  %2338 = vmatpush2.msra.mxu0 0.0
  %2339 = vmatprep.subr.mxu0 0.0
  %2340 = vmatpush2.msra.mxu0 0.0
  %2341 = vmatprep.subr.mxu0 0.0
  %2342 = vmatpush2.msra.mxu0 0.0
  %2343 = vmatprep.subr.mxu0 0.0
  %2344 = vmatpush2.msra.mxu0 0.0
  %2345 = vmatprep.subr.mxu0 0.0
  %2346 = vmatpush2.msra.mxu0 0.0
  %2347 = vmatprep.subr.mxu0 0.0
  %2348 = vmatpush2.msra.mxu0 0.0
  %2349 = vmatprep.subr.mxu0 0.0
  %2350 = vmatpush2.msra.mxu0 0.0
  %2351 = vmatprep.subr.mxu0 0.0
  %2352 = vmatpush2.msra.mxu0 0.0
  %2353 = vmatprep.subr.mxu0 0.0
  %2354 = vmatpush2.msra.mxu0 0.0
  %2355 = vmatprep.mubr.f32.mxu0 0.0
  %2356 = vmatmul.mubr.f32.gmra.mxu0 %v2284
  %v2357 = vpop.f32.mrf.mxu0
  %v2358 = vadd.f32 0.0, %v2357
  %v2359 = vpop.f32.mrf.mxu0
  %v2360 = vadd.f32 0.0, %v2359
  %2361 = vdwg.mxu0
  %2362 = vmatprep.subr.mxu0 %v2282
  %2363 = vmatpush1.msra.mxu0 %v2281
  %2364 = vmatprep.subr.mxu0 %v2278
  %2365 = vmatpush1.msra.mxu0 %v2277
  %2366 = vmatprep.subr.mxu0 %v2274
  %2367 = vmatpush1.msra.mxu0 %v2273
  %2368 = vmatprep.subr.mxu0 %v2270
  %2369 = vmatpush1.msra.mxu0 %v2269
  %2370 = vmatprep.subr.mxu0 %v2266
  %2371 = vmatpush1.msra.mxu0 %v2265
  %2372 = vmatprep.subr.mxu0 %v2262
  %2373 = vmatpush1.msra.mxu0 %v2261
  %2374 = vmatprep.subr.mxu0 %v2258
  %2375 = vmatpush1.msra.mxu0 %v2257
  %2376 = vmatprep.subr.mxu0 %v2254
  %2377 = vmatpush1.msra.mxu0 %v2253
  %2378 = vmatprep.subr.mxu0 %v2250
  %2379 = vmatpush1.msra.mxu0 %v2249
  %2380 = vmatprep.subr.mxu0 %v2246
  %2381 = vmatpush1.msra.mxu0 %v2245
  %2382 = vmatprep.subr.mxu0 %v2242
  %2383 = vmatpush1.msra.mxu0 %v2241
  %2384 = vmatprep.subr.mxu0 %v2238
  %2385 = vmatpush1.msra.mxu0 %v2237
  %2386 = vmatprep.subr.mxu0 %v2234
  %2387 = vmatpush1.msra.mxu0 %v2233
  %2388 = vmatprep.subr.mxu0 %v2230
  %2389 = vmatpush1.msra.mxu0 %v2229
  %2390 = vmatprep.subr.mxu0 %v2226
  %2391 = vmatpush1.msra.mxu0 %v2225
  %2392 = vmatprep.subr.mxu0 %v2222
  %2393 = vmatpush1.msra.mxu0 %v2221
  %2394 = vmatprep.subr.mxu0 0.0
  %2395 = vmatpush2.msra.mxu0 0.0
  %2396 = vmatprep.subr.mxu0 0.0
  %2397 = vmatpush2.msra.mxu0 0.0
  %2398 = vmatprep.subr.mxu0 0.0
  %2399 = vmatpush2.msra.mxu0 0.0
  %2400 = vmatprep.subr.mxu0 0.0
  %2401 = vmatpush2.msra.mxu0 0.0
  %2402 = vmatprep.subr.mxu0 0.0
  %2403 = vmatpush2.msra.mxu0 0.0
  %2404 = vmatprep.subr.mxu0 0.0
  %2405 = vmatpush2.msra.mxu0 0.0
  %2406 = vmatprep.subr.mxu0 0.0
  %2407 = vmatpush2.msra.mxu0 0.0
  %2408 = vmatprep.subr.mxu0 0.0
  %2409 = vmatpush2.msra.mxu0 0.0
  %2410 = vmatprep.subr.mxu0 0.0
  %2411 = vmatpush2.msra.mxu0 0.0
  %2412 = vmatprep.subr.mxu0 0.0
  %2413 = vmatpush2.msra.mxu0 0.0
  %2414 = vmatprep.subr.mxu0 0.0
  %2415 = vmatpush2.msra.mxu0 0.0
  %2416 = vmatprep.subr.mxu0 0.0
  %2417 = vmatpush2.msra.mxu0 0.0
  %2418 = vmatprep.subr.mxu0 0.0
  %2419 = vmatpush2.msra.mxu0 0.0
  %2420 = vmatprep.subr.mxu0 0.0
  %2421 = vmatpush2.msra.mxu0 0.0
  %2422 = vmatprep.subr.mxu0 0.0
  %2423 = vmatpush2.msra.mxu0 0.0
  %2424 = vmatprep.subr.mxu0 0.0
  %2425 = vmatpush2.msra.mxu0 0.0
  %2426 = vmatprep.mubr.f32.mxu0 0.0
  %2427 = vmatmul.mubr.f32.gmra.mxu0 %v2284
  %v2428 = vpop.f32.mrf.mxu0
  %v2429 = vadd.f32 0.0, %v2428
  %v2430 = vpop.f32.mrf.mxu0
  %v2431 = vadd.f32 0.0, %v2430
  %2432 = vdwg.mxu0
  %v2433 = vadd.f32 %v2287, %v2358
  %v2434 = vadd.f32 %v2288, %v2360
  %v2435 = vadd.f32 %v2289, %v2429
  %v2436 = vadd.f32 %v2290, %v2431
  %v2437 = vxor.u32 %v2433, 2147483648
  %v2438 = vmul.f32 %v2437, 1.442695
  %v2439 = vpow.pop %v2438
  %v2440 = vadd.f32 %v2439, 1.0
  %v2441 = vrcp.pop %v2440
  %v2442 = vmul.f32 1.0, %v2441
  %v2443 = vxor.u32 %v2434, 2147483648
  %v2444 = vmul.f32 %v2443, 1.442695
  %v2445 = vpow.pop %v2444
  %v2446 = vadd.f32 %v2445, 1.0
  %v2447 = vrcp.pop %v2446
  %v2448 = vmul.f32 1.0, %v2447
  %v2449 = vtanh.pop %v2435
  %v2450 = vxor.u32 %v2436, 2147483648
  %v2451 = vmul.f32 %v2450, 1.442695
  %v2452 = vpow.pop %v2451
  %v2453 = vadd.f32 %v2452, 1.0
  %v2454 = vrcp.pop %v2453
  %v2455 = vmul.f32 1.0, %v2454
  %v2456 = vmul.f32 %v2448, %v2286
  %v2457 = vmul.f32 %v2442, %v2449
  %v2458 = vadd.f32 %v2456, %v2457
  %v2459 = vtanh.pop %v2458
  %v2460 = vmul.f32 %v2455, %v2459
  %v2461 = vld [vmem:[%s614] sm:$0xff]
  %v2462 = vld [vmem:[%s614 + $0x8] sm:$0xff]
  %v2463 = vld [vmem:[%s614 + $0x10] sm:$0xff]
  %v2464 = vld [vmem:[%s614 + $0x18] sm:$0xff]
  %2465 = vmatprep.subr.mxu0 %v2280
  %2466 = vmatpush1.msra.mxu0 %v2279
  %2467 = vmatprep.subr.mxu0 %v2276
  %2468 = vmatpush1.msra.mxu0 %v2275
  %2469 = vmatprep.subr.mxu0 %v2272
  %2470 = vmatpush1.msra.mxu0 %v2271
  %2471 = vmatprep.subr.mxu0 %v2268
  %2472 = vmatpush1.msra.mxu0 %v2267
  %2473 = vmatprep.subr.mxu0 %v2264
  %2474 = vmatpush1.msra.mxu0 %v2263
  %2475 = vmatprep.subr.mxu0 %v2260
  %2476 = vmatpush1.msra.mxu0 %v2259
  %2477 = vmatprep.subr.mxu0 %v2256
  %2478 = vmatpush1.msra.mxu0 %v2255
  %2479 = vmatprep.subr.mxu0 %v2252
  %2480 = vmatpush1.msra.mxu0 %v2251
  %2481 = vmatprep.subr.mxu0 %v2248
  %2482 = vmatpush1.msra.mxu0 %v2247
  %2483 = vmatprep.subr.mxu0 %v2244
  %2484 = vmatpush1.msra.mxu0 %v2243
  %2485 = vmatprep.subr.mxu0 %v2240
  %2486 = vmatpush1.msra.mxu0 %v2239
  %2487 = vmatprep.subr.mxu0 %v2236
  %2488 = vmatpush1.msra.mxu0 %v2235
  %2489 = vmatprep.subr.mxu0 %v2232
  %2490 = vmatpush1.msra.mxu0 %v2231
  %2491 = vmatprep.subr.mxu0 %v2228
  %2492 = vmatpush1.msra.mxu0 %v2227
  %2493 = vmatprep.subr.mxu0 %v2224
  %2494 = vmatpush1.msra.mxu0 %v2223
  %2495 = vmatprep.subr.mxu0 %v2220
  %2496 = vmatpush1.msra.mxu0 %v2219
  %2497 = vmatprep.subr.mxu0 0.0
  %2498 = vmatpush2.msra.mxu0 0.0
  %2499 = vmatprep.subr.mxu0 0.0
  %2500 = vmatpush2.msra.mxu0 0.0
  %2501 = vmatprep.subr.mxu0 0.0
  %2502 = vmatpush2.msra.mxu0 0.0
  %2503 = vmatprep.subr.mxu0 0.0
  %2504 = vmatpush2.msra.mxu0 0.0
  %2505 = vmatprep.subr.mxu0 0.0
  %2506 = vmatpush2.msra.mxu0 0.0
  %2507 = vmatprep.subr.mxu0 0.0
  %2508 = vmatpush2.msra.mxu0 0.0
  %2509 = vmatprep.subr.mxu0 0.0
  %2510 = vmatpush2.msra.mxu0 0.0
  %2511 = vmatprep.subr.mxu0 0.0
  %2512 = vmatpush2.msra.mxu0 0.0
  %2513 = vmatprep.subr.mxu0 0.0
  %2514 = vmatpush2.msra.mxu0 0.0
  %2515 = vmatprep.subr.mxu0 0.0
  %2516 = vmatpush2.msra.mxu0 0.0
  %2517 = vmatprep.subr.mxu0 0.0
  %2518 = vmatpush2.msra.mxu0 0.0
  %2519 = vmatprep.subr.mxu0 0.0
  %2520 = vmatpush2.msra.mxu0 0.0
  %2521 = vmatprep.subr.mxu0 0.0
  %2522 = vmatpush2.msra.mxu0 0.0
  %2523 = vmatprep.subr.mxu0 0.0
  %2524 = vmatpush2.msra.mxu0 0.0
  %2525 = vmatprep.subr.mxu0 0.0
  %2526 = vmatpush2.msra.mxu0 0.0
  %2527 = vmatprep.subr.mxu0 0.0
  %2528 = vmatpush2.msra.mxu0 0.0
  %2529 = vmatprep.mubr.f32.mxu0 0.0
  %2530 = vmatmul.mubr.f32.gmra.mxu0 %v2460
  %v2531 = vpop.f32.mrf.mxu0
  %v2532 = vadd.f32 0.0, %v2531
  %v2533 = vpop.f32.mrf.mxu0
  %v2534 = vadd.f32 0.0, %v2533
  %2535 = vdwg.mxu0
  %2536 = vmatprep.subr.mxu0 %v2282
  %2537 = vmatpush1.msra.mxu0 %v2281
  %2538 = vmatprep.subr.mxu0 %v2278
  %2539 = vmatpush1.msra.mxu0 %v2277
  %2540 = vmatprep.subr.mxu0 %v2274
  %2541 = vmatpush1.msra.mxu0 %v2273
  %2542 = vmatprep.subr.mxu0 %v2270
  %2543 = vmatpush1.msra.mxu0 %v2269
  %2544 = vmatprep.subr.mxu0 %v2266
  %2545 = vmatpush1.msra.mxu0 %v2265
  %2546 = vmatprep.subr.mxu0 %v2262
  %2547 = vmatpush1.msra.mxu0 %v2261
  %2548 = vmatprep.subr.mxu0 %v2258
  %2549 = vmatpush1.msra.mxu0 %v2257
  %2550 = vmatprep.subr.mxu0 %v2254
  %2551 = vmatpush1.msra.mxu0 %v2253
  %2552 = vmatprep.subr.mxu0 %v2250
  %2553 = vmatpush1.msra.mxu0 %v2249
  %2554 = vmatprep.subr.mxu0 %v2246
  %2555 = vmatpush1.msra.mxu0 %v2245
  %2556 = vmatprep.subr.mxu0 %v2242
  %2557 = vmatpush1.msra.mxu0 %v2241
  %2558 = vmatprep.subr.mxu0 %v2238
  %2559 = vmatpush1.msra.mxu0 %v2237
  %2560 = vmatprep.subr.mxu0 %v2234
  %2561 = vmatpush1.msra.mxu0 %v2233
  %2562 = vmatprep.subr.mxu0 %v2230
  %2563 = vmatpush1.msra.mxu0 %v2229
  %2564 = vmatprep.subr.mxu0 %v2226
  %2565 = vmatpush1.msra.mxu0 %v2225
  %2566 = vmatprep.subr.mxu0 %v2222
  %2567 = vmatpush1.msra.mxu0 %v2221
  %2568 = vmatprep.subr.mxu0 0.0
  %2569 = vmatpush2.msra.mxu0 0.0
  %2570 = vmatprep.subr.mxu0 0.0
  %2571 = vmatpush2.msra.mxu0 0.0
  %2572 = vmatprep.subr.mxu0 0.0
  %2573 = vmatpush2.msra.mxu0 0.0
  %2574 = vmatprep.subr.mxu0 0.0
  %2575 = vmatpush2.msra.mxu0 0.0
  %2576 = vmatprep.subr.mxu0 0.0
  %2577 = vmatpush2.msra.mxu0 0.0
  %2578 = vmatprep.subr.mxu0 0.0
  %2579 = vmatpush2.msra.mxu0 0.0
  %2580 = vmatprep.subr.mxu0 0.0
  %2581 = vmatpush2.msra.mxu0 0.0
  %2582 = vmatprep.subr.mxu0 0.0
  %2583 = vmatpush2.msra.mxu0 0.0
  %2584 = vmatprep.subr.mxu0 0.0
  %2585 = vmatpush2.msra.mxu0 0.0
  %2586 = vmatprep.subr.mxu0 0.0
  %2587 = vmatpush2.msra.mxu0 0.0
  %2588 = vmatprep.subr.mxu0 0.0
  %2589 = vmatpush2.msra.mxu0 0.0
  %2590 = vmatprep.subr.mxu0 0.0
  %2591 = vmatpush2.msra.mxu0 0.0
  %2592 = vmatprep.subr.mxu0 0.0
  %2593 = vmatpush2.msra.mxu0 0.0
  %2594 = vmatprep.subr.mxu0 0.0
  %2595 = vmatpush2.msra.mxu0 0.0
  %2596 = vmatprep.subr.mxu0 0.0
  %2597 = vmatpush2.msra.mxu0 0.0
  %2598 = vmatprep.subr.mxu0 0.0
  %2599 = vmatpush2.msra.mxu0 0.0
  %2600 = vmatprep.mubr.f32.mxu0 0.0
  %2601 = vmatmul.mubr.f32.gmra.mxu0 %v2460
  %v2602 = vpop.f32.mrf.mxu0
  %v2603 = vadd.f32 0.0, %v2602
  %v2604 = vpop.f32.mrf.mxu0
  %v2605 = vadd.f32 0.0, %v2604
  %2606 = vdwg.mxu0
  %v2607 = vadd.f32 %v2461, %v2532
  %v2608 = vadd.f32 %v2462, %v2534
  %v2609 = vadd.f32 %v2463, %v2603
  %v2610 = vadd.f32 %v2464, %v2605
  %v2611 = vxor.u32 %v2607, 2147483648
  %v2612 = vmul.f32 %v2611, 1.442695
  %v2613 = vpow.pop %v2612
  %v2614 = vadd.f32 %v2613, 1.0
  %v2615 = vrcp.pop %v2614
  %v2616 = vmul.f32 1.0, %v2615
  %v2617 = vxor.u32 %v2608, 2147483648
  %v2618 = vmul.f32 %v2617, 1.442695
  %v2619 = vpow.pop %v2618
  %v2620 = vadd.f32 %v2619, 1.0
  %v2621 = vrcp.pop %v2620
  %v2622 = vmul.f32 1.0, %v2621
  %v2623 = vtanh.pop %v2609
  %v2624 = vxor.u32 %v2610, 2147483648
  %v2625 = vmul.f32 %v2624, 1.442695
  %v2626 = vpow.pop %v2625
  %v2627 = vadd.f32 %v2626, 1.0
  %v2628 = vrcp.pop %v2627
  %v2629 = vmul.f32 1.0, %v2628
  %v2630 = vmul.f32 %v2622, %v2458
  %v2631 = vmul.f32 %v2616, %v2623
  %v2632 = vadd.f32 %v2630, %v2631
  %v2633 = vtanh.pop %v2632
  %v2634 = vmul.f32 %v2629, %v2633
  %v2635 = vld [vmem:[%s793] sm:$0xff]
  %v2636 = vld [vmem:[%s793 + $0x8] sm:$0xff]
  %v2637 = vld [vmem:[%s793 + $0x10] sm:$0xff]
  %v2638 = vld [vmem:[%s793 + $0x18] sm:$0xff]
  %2639 = vmatprep.subr.mxu0 %v2280
  %2640 = vmatpush1.msra.mxu0 %v2279
  %2641 = vmatprep.subr.mxu0 %v2276
  %2642 = vmatpush1.msra.mxu0 %v2275
  %2643 = vmatprep.subr.mxu0 %v2272
  %2644 = vmatpush1.msra.mxu0 %v2271
  %2645 = vmatprep.subr.mxu0 %v2268
  %2646 = vmatpush1.msra.mxu0 %v2267
  %2647 = vmatprep.subr.mxu0 %v2264
  %2648 = vmatpush1.msra.mxu0 %v2263
  %2649 = vmatprep.subr.mxu0 %v2260
  %2650 = vmatpush1.msra.mxu0 %v2259
  %2651 = vmatprep.subr.mxu0 %v2256
  %2652 = vmatpush1.msra.mxu0 %v2255
  %2653 = vmatprep.subr.mxu0 %v2252
  %2654 = vmatpush1.msra.mxu0 %v2251
  %2655 = vmatprep.subr.mxu0 %v2248
  %2656 = vmatpush1.msra.mxu0 %v2247
  %2657 = vmatprep.subr.mxu0 %v2244
  %2658 = vmatpush1.msra.mxu0 %v2243
  %2659 = vmatprep.subr.mxu0 %v2240
  %2660 = vmatpush1.msra.mxu0 %v2239
  %2661 = vmatprep.subr.mxu0 %v2236
  %2662 = vmatpush1.msra.mxu0 %v2235
  %2663 = vmatprep.subr.mxu0 %v2232
  %2664 = vmatpush1.msra.mxu0 %v2231
  %2665 = vmatprep.subr.mxu0 %v2228
  %2666 = vmatpush1.msra.mxu0 %v2227
  %2667 = vmatprep.subr.mxu0 %v2224
  %2668 = vmatpush1.msra.mxu0 %v2223
  %2669 = vmatprep.subr.mxu0 %v2220
  %2670 = vmatpush1.msra.mxu0 %v2219
  %2671 = vmatprep.subr.mxu0 0.0
  %2672 = vmatpush2.msra.mxu0 0.0
  %2673 = vmatprep.subr.mxu0 0.0
  %2674 = vmatpush2.msra.mxu0 0.0
  %2675 = vmatprep.subr.mxu0 0.0
  %2676 = vmatpush2.msra.mxu0 0.0
  %2677 = vmatprep.subr.mxu0 0.0
  %2678 = vmatpush2.msra.mxu0 0.0
  %2679 = vmatprep.subr.mxu0 0.0
  %2680 = vmatpush2.msra.mxu0 0.0
  %2681 = vmatprep.subr.mxu0 0.0
  %2682 = vmatpush2.msra.mxu0 0.0
  %2683 = vmatprep.subr.mxu0 0.0
  %2684 = vmatpush2.msra.mxu0 0.0
  %2685 = vmatprep.subr.mxu0 0.0
  %2686 = vmatpush2.msra.mxu0 0.0
  %2687 = vmatprep.subr.mxu0 0.0
  %2688 = vmatpush2.msra.mxu0 0.0
  %2689 = vmatprep.subr.mxu0 0.0
  %2690 = vmatpush2.msra.mxu0 0.0
  %2691 = vmatprep.subr.mxu0 0.0
  %2692 = vmatpush2.msra.mxu0 0.0
  %2693 = vmatprep.subr.mxu0 0.0
  %2694 = vmatpush2.msra.mxu0 0.0
  %2695 = vmatprep.subr.mxu0 0.0
  %2696 = vmatpush2.msra.mxu0 0.0
  %2697 = vmatprep.subr.mxu0 0.0
  %2698 = vmatpush2.msra.mxu0 0.0
  %2699 = vmatprep.subr.mxu0 0.0
  %2700 = vmatpush2.msra.mxu0 0.0
  %2701 = vmatprep.subr.mxu0 0.0
  %2702 = vmatpush2.msra.mxu0 0.0
  %2703 = vmatprep.mubr.f32.mxu0 0.0
  %2704 = vmatmul.mubr.f32.gmra.mxu0 %v2634
  %v2705 = vpop.f32.mrf.mxu0
  %v2706 = vadd.f32 0.0, %v2705
  %v2707 = vpop.f32.mrf.mxu0
  %v2708 = vadd.f32 0.0, %v2707
  %2709 = vdwg.mxu0
  %2710 = vmatprep.subr.mxu0 %v2282
  %2711 = vmatpush1.msra.mxu0 %v2281
  %2712 = vmatprep.subr.mxu0 %v2278
  %2713 = vmatpush1.msra.mxu0 %v2277
  %2714 = vmatprep.subr.mxu0 %v2274
  %2715 = vmatpush1.msra.mxu0 %v2273
  %2716 = vmatprep.subr.mxu0 %v2270
  %2717 = vmatpush1.msra.mxu0 %v2269
  %2718 = vmatprep.subr.mxu0 %v2266
  %2719 = vmatpush1.msra.mxu0 %v2265
  %2720 = vmatprep.subr.mxu0 %v2262
  %2721 = vmatpush1.msra.mxu0 %v2261
  %2722 = vmatprep.subr.mxu0 %v2258
  %2723 = vmatpush1.msra.mxu0 %v2257
  %2724 = vmatprep.subr.mxu0 %v2254
  %2725 = vmatpush1.msra.mxu0 %v2253
  %2726 = vmatprep.subr.mxu0 %v2250
  %2727 = vmatpush1.msra.mxu0 %v2249
  %2728 = vmatprep.subr.mxu0 %v2246
  %2729 = vmatpush1.msra.mxu0 %v2245
  %2730 = vmatprep.subr.mxu0 %v2242
  %2731 = vmatpush1.msra.mxu0 %v2241
  %2732 = vmatprep.subr.mxu0 %v2238
  %2733 = vmatpush1.msra.mxu0 %v2237
  %2734 = vmatprep.subr.mxu0 %v2234
  %2735 = vmatpush1.msra.mxu0 %v2233
  %2736 = vmatprep.subr.mxu0 %v2230
  %2737 = vmatpush1.msra.mxu0 %v2229
  %2738 = vmatprep.subr.mxu0 %v2226
  %2739 = vmatpush1.msra.mxu0 %v2225
  %2740 = vmatprep.subr.mxu0 %v2222
  %2741 = vmatpush1.msra.mxu0 %v2221
  %2742 = vmatprep.subr.mxu0 0.0
  %2743 = vmatpush2.msra.mxu0 0.0
  %2744 = vmatprep.subr.mxu0 0.0
  %2745 = vmatpush2.msra.mxu0 0.0
  %2746 = vmatprep.subr.mxu0 0.0
  %2747 = vmatpush2.msra.mxu0 0.0
  %2748 = vmatprep.subr.mxu0 0.0
  %2749 = vmatpush2.msra.mxu0 0.0
  %2750 = vmatprep.subr.mxu0 0.0
  %2751 = vmatpush2.msra.mxu0 0.0
  %2752 = vmatprep.subr.mxu0 0.0
  %2753 = vmatpush2.msra.mxu0 0.0
  %2754 = vmatprep.subr.mxu0 0.0
  %2755 = vmatpush2.msra.mxu0 0.0
  %2756 = vmatprep.subr.mxu0 0.0
  %2757 = vmatpush2.msra.mxu0 0.0
  %2758 = vmatprep.subr.mxu0 0.0
  %2759 = vmatpush2.msra.mxu0 0.0
  %2760 = vmatprep.subr.mxu0 0.0
  %2761 = vmatpush2.msra.mxu0 0.0
  %2762 = vmatprep.subr.mxu0 0.0
  %2763 = vmatpush2.msra.mxu0 0.0
  %2764 = vmatprep.subr.mxu0 0.0
  %2765 = vmatpush2.msra.mxu0 0.0
  %2766 = vmatprep.subr.mxu0 0.0
  %2767 = vmatpush2.msra.mxu0 0.0
  %2768 = vmatprep.subr.mxu0 0.0
  %2769 = vmatpush2.msra.mxu0 0.0
  %2770 = vmatprep.subr.mxu0 0.0
  %2771 = vmatpush2.msra.mxu0 0.0
  %2772 = vmatprep.subr.mxu0 0.0
  %2773 = vmatpush2.msra.mxu0 0.0
  %2774 = vmatprep.mubr.f32.mxu0 0.0
  %2775 = vmatmul.mubr.f32.gmra.mxu0 %v2634
  %v2776 = vpop.f32.mrf.mxu0
  %v2777 = vadd.f32 0.0, %v2776
  %v2778 = vpop.f32.mrf.mxu0
  %v2779 = vadd.f32 0.0, %v2778
  %2780 = vdwg.mxu0
  %v2781 = vadd.f32 %v2635, %v2706
  %v2782 = vadd.f32 %v2636, %v2708
  %v2783 = vadd.f32 %v2637, %v2777
  %v2784 = vadd.f32 %v2638, %v2779
  %v2785 = vxor.u32 %v2781, 2147483648
  %v2786 = vmul.f32 %v2785, 1.442695
  %v2787 = vpow.pop %v2786
  %v2788 = vadd.f32 %v2787, 1.0
  %v2789 = vrcp.pop %v2788
  %v2790 = vmul.f32 1.0, %v2789
  %v2791 = vxor.u32 %v2782, 2147483648
  %v2792 = vmul.f32 %v2791, 1.442695
  %v2793 = vpow.pop %v2792
  %v2794 = vadd.f32 %v2793, 1.0
  %v2795 = vrcp.pop %v2794
  %v2796 = vmul.f32 1.0, %v2795
  %v2797 = vtanh.pop %v2783
  %v2798 = vxor.u32 %v2784, 2147483648
  %v2799 = vmul.f32 %v2798, 1.442695
  %v2800 = vpow.pop %v2799
  %v2801 = vadd.f32 %v2800, 1.0
  %v2802 = vrcp.pop %v2801
  %v2803 = vmul.f32 1.0, %v2802
  %v2804 = vmul.f32 %v2796, %v2632
  %v2805 = vmul.f32 %v2790, %v2797
  %v2806 = vadd.f32 %v2804, %v2805
  %v2807 = vtanh.pop %v2806
  %v2808 = vmul.f32 %v2803, %v2807
  %v2809 = vld [vmem:[%s972] sm:$0xff]
  %v2810 = vld [vmem:[%s972 + $0x8] sm:$0xff]
  %v2811 = vld [vmem:[%s972 + $0x10] sm:$0xff]
  %v2812 = vld [vmem:[%s972 + $0x18] sm:$0xff]
  %2813 = vmatprep.subr.mxu0 %v2280
  %2814 = vmatpush1.msra.mxu0 %v2279
  %2815 = vmatprep.subr.mxu0 %v2276
  %2816 = vmatpush1.msra.mxu0 %v2275
  %2817 = vmatprep.subr.mxu0 %v2272
  %2818 = vmatpush1.msra.mxu0 %v2271
  %2819 = vmatprep.subr.mxu0 %v2268
  %2820 = vmatpush1.msra.mxu0 %v2267
  %2821 = vmatprep.subr.mxu0 %v2264
  %2822 = vmatpush1.msra.mxu0 %v2263
  %2823 = vmatprep.subr.mxu0 %v2260
  %2824 = vmatpush1.msra.mxu0 %v2259
  %2825 = vmatprep.subr.mxu0 %v2256
  %2826 = vmatpush1.msra.mxu0 %v2255
  %2827 = vmatprep.subr.mxu0 %v2252
  %2828 = vmatpush1.msra.mxu0 %v2251
  %2829 = vmatprep.subr.mxu0 %v2248
  %2830 = vmatpush1.msra.mxu0 %v2247
  %2831 = vmatprep.subr.mxu0 %v2244
  %2832 = vmatpush1.msra.mxu0 %v2243
  %2833 = vmatprep.subr.mxu0 %v2240
  %2834 = vmatpush1.msra.mxu0 %v2239
  %2835 = vmatprep.subr.mxu0 %v2236
  %2836 = vmatpush1.msra.mxu0 %v2235
  %2837 = vmatprep.subr.mxu0 %v2232
  %2838 = vmatpush1.msra.mxu0 %v2231
  %2839 = vmatprep.subr.mxu0 %v2228
  %2840 = vmatpush1.msra.mxu0 %v2227
  %2841 = vmatprep.subr.mxu0 %v2224
  %2842 = vmatpush1.msra.mxu0 %v2223
  %2843 = vmatprep.subr.mxu0 %v2220
  %2844 = vmatpush1.msra.mxu0 %v2219
  %2845 = vmatprep.subr.mxu0 0.0
  %2846 = vmatpush2.msra.mxu0 0.0
  %2847 = vmatprep.subr.mxu0 0.0
  %2848 = vmatpush2.msra.mxu0 0.0
  %2849 = vmatprep.subr.mxu0 0.0
  %2850 = vmatpush2.msra.mxu0 0.0
  %2851 = vmatprep.subr.mxu0 0.0
  %2852 = vmatpush2.msra.mxu0 0.0
  %2853 = vmatprep.subr.mxu0 0.0
  %2854 = vmatpush2.msra.mxu0 0.0
  %2855 = vmatprep.subr.mxu0 0.0
  %2856 = vmatpush2.msra.mxu0 0.0
  %2857 = vmatprep.subr.mxu0 0.0
  %2858 = vmatpush2.msra.mxu0 0.0
  %2859 = vmatprep.subr.mxu0 0.0
  %2860 = vmatpush2.msra.mxu0 0.0
  %2861 = vmatprep.subr.mxu0 0.0
  %2862 = vmatpush2.msra.mxu0 0.0
  %2863 = vmatprep.subr.mxu0 0.0
  %2864 = vmatpush2.msra.mxu0 0.0
  %2865 = vmatprep.subr.mxu0 0.0
  %2866 = vmatpush2.msra.mxu0 0.0
  %2867 = vmatprep.subr.mxu0 0.0
  %2868 = vmatpush2.msra.mxu0 0.0
  %2869 = vmatprep.subr.mxu0 0.0
  %2870 = vmatpush2.msra.mxu0 0.0
  %2871 = vmatprep.subr.mxu0 0.0
  %2872 = vmatpush2.msra.mxu0 0.0
  %2873 = vmatprep.subr.mxu0 0.0
  %2874 = vmatpush2.msra.mxu0 0.0
  %2875 = vmatprep.subr.mxu0 0.0
  %2876 = vmatpush2.msra.mxu0 0.0
  %2877 = vmatprep.mubr.f32.mxu0 0.0
  %2878 = vmatmul.mubr.f32.gmra.mxu0 %v2808
  %v2879 = vpop.f32.mrf.mxu0
  %v2880 = vadd.f32 0.0, %v2879
  %v2881 = vpop.f32.mrf.mxu0
  %v2882 = vadd.f32 0.0, %v2881
  %2883 = vdwg.mxu0
  %2884 = vmatprep.subr.mxu0 %v2282
  %2885 = vmatpush1.msra.mxu0 %v2281
  %2886 = vmatprep.subr.mxu0 %v2278
  %2887 = vmatpush1.msra.mxu0 %v2277
  %2888 = vmatprep.subr.mxu0 %v2274
  %2889 = vmatpush1.msra.mxu0 %v2273
  %2890 = vmatprep.subr.mxu0 %v2270
  %2891 = vmatpush1.msra.mxu0 %v2269
  %2892 = vmatprep.subr.mxu0 %v2266
  %2893 = vmatpush1.msra.mxu0 %v2265
  %2894 = vmatprep.subr.mxu0 %v2262
  %2895 = vmatpush1.msra.mxu0 %v2261
  %2896 = vmatprep.subr.mxu0 %v2258
  %2897 = vmatpush1.msra.mxu0 %v2257
  %2898 = vmatprep.subr.mxu0 %v2254
  %2899 = vmatpush1.msra.mxu0 %v2253
  %2900 = vmatprep.subr.mxu0 %v2250
  %2901 = vmatpush1.msra.mxu0 %v2249
  %2902 = vmatprep.subr.mxu0 %v2246
  %2903 = vmatpush1.msra.mxu0 %v2245
  %2904 = vmatprep.subr.mxu0 %v2242
  %2905 = vmatpush1.msra.mxu0 %v2241
  %2906 = vmatprep.subr.mxu0 %v2238
  %2907 = vmatpush1.msra.mxu0 %v2237
  %2908 = vmatprep.subr.mxu0 %v2234
  %2909 = vmatpush1.msra.mxu0 %v2233
  %2910 = vmatprep.subr.mxu0 %v2230
  %2911 = vmatpush1.msra.mxu0 %v2229
  %2912 = vmatprep.subr.mxu0 %v2226
  %2913 = vmatpush1.msra.mxu0 %v2225
  %2914 = vmatprep.subr.mxu0 %v2222
  %2915 = vmatpush1.msra.mxu0 %v2221
  %2916 = vmatprep.subr.mxu0 0.0
  %2917 = vmatpush2.msra.mxu0 0.0
  %2918 = vmatprep.subr.mxu0 0.0
  %2919 = vmatpush2.msra.mxu0 0.0
  %2920 = vmatprep.subr.mxu0 0.0
  %2921 = vmatpush2.msra.mxu0 0.0
  %2922 = vmatprep.subr.mxu0 0.0
  %2923 = vmatpush2.msra.mxu0 0.0
  %2924 = vmatprep.subr.mxu0 0.0
  %2925 = vmatpush2.msra.mxu0 0.0
  %2926 = vmatprep.subr.mxu0 0.0
  %2927 = vmatpush2.msra.mxu0 0.0
  %2928 = vmatprep.subr.mxu0 0.0
  %2929 = vmatpush2.msra.mxu0 0.0
  %2930 = vmatprep.subr.mxu0 0.0
  %2931 = vmatpush2.msra.mxu0 0.0
  %2932 = vmatprep.subr.mxu0 0.0
  %2933 = vmatpush2.msra.mxu0 0.0
  %2934 = vmatprep.subr.mxu0 0.0
  %2935 = vmatpush2.msra.mxu0 0.0
  %2936 = vmatprep.subr.mxu0 0.0
  %2937 = vmatpush2.msra.mxu0 0.0
  %2938 = vmatprep.subr.mxu0 0.0
  %2939 = vmatpush2.msra.mxu0 0.0
  %2940 = vmatprep.subr.mxu0 0.0
  %2941 = vmatpush2.msra.mxu0 0.0
  %2942 = vmatprep.subr.mxu0 0.0
  %2943 = vmatpush2.msra.mxu0 0.0
  %2944 = vmatprep.subr.mxu0 0.0
  %2945 = vmatpush2.msra.mxu0 0.0
  %2946 = vmatprep.subr.mxu0 0.0
  %2947 = vmatpush2.msra.mxu0 0.0
  %2948 = vmatprep.mubr.f32.mxu0 0.0
  %2949 = vmatmul.mubr.f32.gmra.mxu0 %v2808
  %v2950 = vpop.f32.mrf.mxu0
  %v2951 = vadd.f32 0.0, %v2950
  %v2952 = vpop.f32.mrf.mxu0
  %v2953 = vadd.f32 0.0, %v2952
  %2954 = vdwg.mxu0
  %v2955 = vadd.f32 %v2809, %v2880
  %v2956 = vadd.f32 %v2810, %v2882
  %v2957 = vadd.f32 %v2811, %v2951
  %v2958 = vadd.f32 %v2812, %v2953
  %v2959 = vxor.u32 %v2955, 2147483648
  %v2960 = vmul.f32 %v2959, 1.442695
  %v2961 = vpow.pop %v2960
  %v2962 = vadd.f32 %v2961, 1.0
  %v2963 = vrcp.pop %v2962
  %v2964 = vmul.f32 1.0, %v2963
  %v2965 = vxor.u32 %v2956, 2147483648
  %v2966 = vmul.f32 %v2965, 1.442695
  %v2967 = vpow.pop %v2966
  %v2968 = vadd.f32 %v2967, 1.0
  %v2969 = vrcp.pop %v2968
  %v2970 = vmul.f32 1.0, %v2969
  %v2971 = vtanh.pop %v2957
  %v2972 = vxor.u32 %v2958, 2147483648
  %v2973 = vmul.f32 %v2972, 1.442695
  %v2974 = vpow.pop %v2973
  %v2975 = vadd.f32 %v2974, 1.0
  %v2976 = vrcp.pop %v2975
  %v2977 = vmul.f32 1.0, %v2976
  %v2978 = vmul.f32 %v2970, %v2806
  %v2979 = vmul.f32 %v2964, %v2971
  %v2980 = vadd.f32 %v2978, %v2979
  %v2981 = vtanh.pop %v2980
  %v2982 = vmul.f32 %v2977, %v2981
  %v2983 = vld [vmem:[%s1151] sm:$0xff]
  %v2984 = vld [vmem:[%s1151 + $0x8] sm:$0xff]
  %v2985 = vld [vmem:[%s1151 + $0x10] sm:$0xff]
  %v2986 = vld [vmem:[%s1151 + $0x18] sm:$0xff]
  %2987 = vmatprep.subr.mxu0 %v2280
  %2988 = vmatpush1.msra.mxu0 %v2279
  %2989 = vmatprep.subr.mxu0 %v2276
  %2990 = vmatpush1.msra.mxu0 %v2275
  %2991 = vmatprep.subr.mxu0 %v2272
  %2992 = vmatpush1.msra.mxu0 %v2271
  %2993 = vmatprep.subr.mxu0 %v2268
  %2994 = vmatpush1.msra.mxu0 %v2267
  %2995 = vmatprep.subr.mxu0 %v2264
  %2996 = vmatpush1.msra.mxu0 %v2263
  %2997 = vmatprep.subr.mxu0 %v2260
  %2998 = vmatpush1.msra.mxu0 %v2259
  %2999 = vmatprep.subr.mxu0 %v2256
  %3000 = vmatpush1.msra.mxu0 %v2255
  %3001 = vmatprep.subr.mxu0 %v2252
  %3002 = vmatpush1.msra.mxu0 %v2251
  %3003 = vmatprep.subr.mxu0 %v2248
  %3004 = vmatpush1.msra.mxu0 %v2247
  %3005 = vmatprep.subr.mxu0 %v2244
  %3006 = vmatpush1.msra.mxu0 %v2243
  %3007 = vmatprep.subr.mxu0 %v2240
  %3008 = vmatpush1.msra.mxu0 %v2239
  %3009 = vmatprep.subr.mxu0 %v2236
  %3010 = vmatpush1.msra.mxu0 %v2235
  %3011 = vmatprep.subr.mxu0 %v2232
  %3012 = vmatpush1.msra.mxu0 %v2231
  %3013 = vmatprep.subr.mxu0 %v2228
  %3014 = vmatpush1.msra.mxu0 %v2227
  %3015 = vmatprep.subr.mxu0 %v2224
  %3016 = vmatpush1.msra.mxu0 %v2223
  %3017 = vmatprep.subr.mxu0 %v2220
  %3018 = vmatpush1.msra.mxu0 %v2219
  %3019 = vmatprep.subr.mxu0 0.0
  %3020 = vmatpush2.msra.mxu0 0.0
  %3021 = vmatprep.subr.mxu0 0.0
  %3022 = vmatpush2.msra.mxu0 0.0
  %3023 = vmatprep.subr.mxu0 0.0
  %3024 = vmatpush2.msra.mxu0 0.0
  %3025 = vmatprep.subr.mxu0 0.0
  %3026 = vmatpush2.msra.mxu0 0.0
  %3027 = vmatprep.subr.mxu0 0.0
  %3028 = vmatpush2.msra.mxu0 0.0
  %3029 = vmatprep.subr.mxu0 0.0
  %3030 = vmatpush2.msra.mxu0 0.0
  %3031 = vmatprep.subr.mxu0 0.0
  %3032 = vmatpush2.msra.mxu0 0.0
  %3033 = vmatprep.subr.mxu0 0.0
  %3034 = vmatpush2.msra.mxu0 0.0
  %3035 = vmatprep.subr.mxu0 0.0
  %3036 = vmatpush2.msra.mxu0 0.0
  %3037 = vmatprep.subr.mxu0 0.0
  %3038 = vmatpush2.msra.mxu0 0.0
  %3039 = vmatprep.subr.mxu0 0.0
  %3040 = vmatpush2.msra.mxu0 0.0
  %3041 = vmatprep.subr.mxu0 0.0
  %3042 = vmatpush2.msra.mxu0 0.0
  %3043 = vmatprep.subr.mxu0 0.0
  %3044 = vmatpush2.msra.mxu0 0.0
  %3045 = vmatprep.subr.mxu0 0.0
  %3046 = vmatpush2.msra.mxu0 0.0
  %3047 = vmatprep.subr.mxu0 0.0
  %3048 = vmatpush2.msra.mxu0 0.0
  %3049 = vmatprep.subr.mxu0 0.0
  %3050 = vmatpush2.msra.mxu0 0.0
  %3051 = vmatprep.mubr.f32.mxu0 0.0
  %3052 = vmatmul.mubr.f32.gmra.mxu0 %v2982
  %v3053 = vpop.f32.mrf.mxu0
  %v3054 = vadd.f32 0.0, %v3053
  %v3055 = vpop.f32.mrf.mxu0
  %v3056 = vadd.f32 0.0, %v3055
  %3057 = vdwg.mxu0
  %3058 = vmatprep.subr.mxu0 %v2282
  %3059 = vmatpush1.msra.mxu0 %v2281
  %3060 = vmatprep.subr.mxu0 %v2278
  %3061 = vmatpush1.msra.mxu0 %v2277
  %3062 = vmatprep.subr.mxu0 %v2274
  %3063 = vmatpush1.msra.mxu0 %v2273
  %3064 = vmatprep.subr.mxu0 %v2270
  %3065 = vmatpush1.msra.mxu0 %v2269
  %3066 = vmatprep.subr.mxu0 %v2266
  %3067 = vmatpush1.msra.mxu0 %v2265
  %3068 = vmatprep.subr.mxu0 %v2262
  %3069 = vmatpush1.msra.mxu0 %v2261
  %3070 = vmatprep.subr.mxu0 %v2258
  %3071 = vmatpush1.msra.mxu0 %v2257
  %3072 = vmatprep.subr.mxu0 %v2254
  %3073 = vmatpush1.msra.mxu0 %v2253
  %3074 = vmatprep.subr.mxu0 %v2250
  %3075 = vmatpush1.msra.mxu0 %v2249
  %3076 = vmatprep.subr.mxu0 %v2246
  %3077 = vmatpush1.msra.mxu0 %v2245
  %3078 = vmatprep.subr.mxu0 %v2242
  %3079 = vmatpush1.msra.mxu0 %v2241
  %3080 = vmatprep.subr.mxu0 %v2238
  %3081 = vmatpush1.msra.mxu0 %v2237
  %3082 = vmatprep.subr.mxu0 %v2234
  %3083 = vmatpush1.msra.mxu0 %v2233
  %3084 = vmatprep.subr.mxu0 %v2230
  %3085 = vmatpush1.msra.mxu0 %v2229
  %3086 = vmatprep.subr.mxu0 %v2226
  %3087 = vmatpush1.msra.mxu0 %v2225
  %3088 = vmatprep.subr.mxu0 %v2222
  %3089 = vmatpush1.msra.mxu0 %v2221
  %3090 = vmatprep.subr.mxu0 0.0
  %3091 = vmatpush2.msra.mxu0 0.0
  %3092 = vmatprep.subr.mxu0 0.0
  %3093 = vmatpush2.msra.mxu0 0.0
  %3094 = vmatprep.subr.mxu0 0.0
  %3095 = vmatpush2.msra.mxu0 0.0
  %3096 = vmatprep.subr.mxu0 0.0
  %3097 = vmatpush2.msra.mxu0 0.0
  %3098 = vmatprep.subr.mxu0 0.0
  %3099 = vmatpush2.msra.mxu0 0.0
  %3100 = vmatprep.subr.mxu0 0.0
  %3101 = vmatpush2.msra.mxu0 0.0
  %3102 = vmatprep.subr.mxu0 0.0
  %3103 = vmatpush2.msra.mxu0 0.0
  %3104 = vmatprep.subr.mxu0 0.0
  %3105 = vmatpush2.msra.mxu0 0.0
  %3106 = vmatprep.subr.mxu0 0.0
  %3107 = vmatpush2.msra.mxu0 0.0
  %3108 = vmatprep.subr.mxu0 0.0
  %3109 = vmatpush2.msra.mxu0 0.0
  %3110 = vmatprep.subr.mxu0 0.0
  %3111 = vmatpush2.msra.mxu0 0.0
  %3112 = vmatprep.subr.mxu0 0.0
  %3113 = vmatpush2.msra.mxu0 0.0
  %3114 = vmatprep.subr.mxu0 0.0
  %3115 = vmatpush2.msra.mxu0 0.0
  %3116 = vmatprep.subr.mxu0 0.0
  %3117 = vmatpush2.msra.mxu0 0.0
  %3118 = vmatprep.subr.mxu0 0.0
  %3119 = vmatpush2.msra.mxu0 0.0
  %3120 = vmatprep.subr.mxu0 0.0
  %3121 = vmatpush2.msra.mxu0 0.0
  %3122 = vmatprep.mubr.f32.mxu0 0.0
  %3123 = vmatmul.mubr.f32.gmra.mxu0 %v2982
  %v3124 = vpop.f32.mrf.mxu0
  %v3125 = vadd.f32 0.0, %v3124
  %v3126 = vpop.f32.mrf.mxu0
  %v3127 = vadd.f32 0.0, %v3126
  %3128 = vdwg.mxu0
  %v3129 = vadd.f32 %v2983, %v3054
  %v3130 = vadd.f32 %v2984, %v3056
  %v3131 = vadd.f32 %v2985, %v3125
  %v3132 = vadd.f32 %v2986, %v3127
  %v3133 = vxor.u32 %v3129, 2147483648
  %v3134 = vmul.f32 %v3133, 1.442695
  %v3135 = vpow.pop %v3134
  %v3136 = vadd.f32 %v3135, 1.0
  %v3137 = vrcp.pop %v3136
  %v3138 = vmul.f32 1.0, %v3137
  %v3139 = vxor.u32 %v3130, 2147483648
  %v3140 = vmul.f32 %v3139, 1.442695
  %v3141 = vpow.pop %v3140
  %v3142 = vadd.f32 %v3141, 1.0
  %v3143 = vrcp.pop %v3142
  %v3144 = vmul.f32 1.0, %v3143
  %v3145 = vtanh.pop %v3131
  %v3146 = vxor.u32 %v3132, 2147483648
  %v3147 = vmul.f32 %v3146, 1.442695
  %v3148 = vpow.pop %v3147
  %v3149 = vadd.f32 %v3148, 1.0
  %v3150 = vrcp.pop %v3149
  %v3151 = vmul.f32 1.0, %v3150
  %v3152 = vmul.f32 %v3144, %v2980
  %v3153 = vmul.f32 %v3138, %v3145
  %v3154 = vadd.f32 %v3152, %v3153
  %v3155 = vtanh.pop %v3154
  %v3156 = vmul.f32 %v3151, %v3155
  %v3157 = vld [vmem:[%s1330] sm:$0xff]
  %v3158 = vld [vmem:[%s1330 + $0x8] sm:$0xff]
  %v3159 = vld [vmem:[%s1330 + $0x10] sm:$0xff]
  %v3160 = vld [vmem:[%s1330 + $0x18] sm:$0xff]
  %3161 = vmatprep.subr.mxu0 %v2280
  %3162 = vmatpush1.msra.mxu0 %v2279
  %3163 = vmatprep.subr.mxu0 %v2276
  %3164 = vmatpush1.msra.mxu0 %v2275
  %3165 = vmatprep.subr.mxu0 %v2272
  %3166 = vmatpush1.msra.mxu0 %v2271
  %3167 = vmatprep.subr.mxu0 %v2268
  %3168 = vmatpush1.msra.mxu0 %v2267
  %3169 = vmatprep.subr.mxu0 %v2264
  %3170 = vmatpush1.msra.mxu0 %v2263
  %3171 = vmatprep.subr.mxu0 %v2260
  %3172 = vmatpush1.msra.mxu0 %v2259
  %3173 = vmatprep.subr.mxu0 %v2256
  %3174 = vmatpush1.msra.mxu0 %v2255
  %3175 = vmatprep.subr.mxu0 %v2252
  %3176 = vmatpush1.msra.mxu0 %v2251
  %3177 = vmatprep.subr.mxu0 %v2248
  %3178 = vmatpush1.msra.mxu0 %v2247
  %3179 = vmatprep.subr.mxu0 %v2244
  %3180 = vmatpush1.msra.mxu0 %v2243
  %3181 = vmatprep.subr.mxu0 %v2240
  %3182 = vmatpush1.msra.mxu0 %v2239
  %3183 = vmatprep.subr.mxu0 %v2236
  %3184 = vmatpush1.msra.mxu0 %v2235
  %3185 = vmatprep.subr.mxu0 %v2232
  %3186 = vmatpush1.msra.mxu0 %v2231
  %3187 = vmatprep.subr.mxu0 %v2228
  %3188 = vmatpush1.msra.mxu0 %v2227
  %3189 = vmatprep.subr.mxu0 %v2224
  %3190 = vmatpush1.msra.mxu0 %v2223
  %3191 = vmatprep.subr.mxu0 %v2220
  %3192 = vmatpush1.msra.mxu0 %v2219
  %3193 = vmatprep.subr.mxu0 0.0
  %3194 = vmatpush2.msra.mxu0 0.0
  %3195 = vmatprep.subr.mxu0 0.0
  %3196 = vmatpush2.msra.mxu0 0.0
  %3197 = vmatprep.subr.mxu0 0.0
  %3198 = vmatpush2.msra.mxu0 0.0
  %3199 = vmatprep.subr.mxu0 0.0
  %3200 = vmatpush2.msra.mxu0 0.0
  %3201 = vmatprep.subr.mxu0 0.0
  %3202 = vmatpush2.msra.mxu0 0.0
  %3203 = vmatprep.subr.mxu0 0.0
  %3204 = vmatpush2.msra.mxu0 0.0
  %3205 = vmatprep.subr.mxu0 0.0
  %3206 = vmatpush2.msra.mxu0 0.0
  %3207 = vmatprep.subr.mxu0 0.0
  %3208 = vmatpush2.msra.mxu0 0.0
  %3209 = vmatprep.subr.mxu0 0.0
  %3210 = vmatpush2.msra.mxu0 0.0
  %3211 = vmatprep.subr.mxu0 0.0
  %3212 = vmatpush2.msra.mxu0 0.0
  %3213 = vmatprep.subr.mxu0 0.0
  %3214 = vmatpush2.msra.mxu0 0.0
  %3215 = vmatprep.subr.mxu0 0.0
  %3216 = vmatpush2.msra.mxu0 0.0
  %3217 = vmatprep.subr.mxu0 0.0
  %3218 = vmatpush2.msra.mxu0 0.0
  %3219 = vmatprep.subr.mxu0 0.0
  %3220 = vmatpush2.msra.mxu0 0.0
  %3221 = vmatprep.subr.mxu0 0.0
  %3222 = vmatpush2.msra.mxu0 0.0
  %3223 = vmatprep.subr.mxu0 0.0
  %3224 = vmatpush2.msra.mxu0 0.0
  %3225 = vmatprep.mubr.f32.mxu0 0.0
  %3226 = vmatmul.mubr.f32.gmra.mxu0 %v3156
  %v3227 = vpop.f32.mrf.mxu0
  %v3228 = vadd.f32 0.0, %v3227
  %v3229 = vpop.f32.mrf.mxu0
  %v3230 = vadd.f32 0.0, %v3229
  %3231 = vdwg.mxu0
  %3232 = vmatprep.subr.mxu0 %v2282
  %3233 = vmatpush1.msra.mxu0 %v2281
  %3234 = vmatprep.subr.mxu0 %v2278
  %3235 = vmatpush1.msra.mxu0 %v2277
  %3236 = vmatprep.subr.mxu0 %v2274
  %3237 = vmatpush1.msra.mxu0 %v2273
  %3238 = vmatprep.subr.mxu0 %v2270
  %3239 = vmatpush1.msra.mxu0 %v2269
  %3240 = vmatprep.subr.mxu0 %v2266
  %3241 = vmatpush1.msra.mxu0 %v2265
  %3242 = vmatprep.subr.mxu0 %v2262
  %3243 = vmatpush1.msra.mxu0 %v2261
  %3244 = vmatprep.subr.mxu0 %v2258
  %3245 = vmatpush1.msra.mxu0 %v2257
  %3246 = vmatprep.subr.mxu0 %v2254
  %3247 = vmatpush1.msra.mxu0 %v2253
  %3248 = vmatprep.subr.mxu0 %v2250
  %3249 = vmatpush1.msra.mxu0 %v2249
  %3250 = vmatprep.subr.mxu0 %v2246
  %3251 = vmatpush1.msra.mxu0 %v2245
  %3252 = vmatprep.subr.mxu0 %v2242
  %3253 = vmatpush1.msra.mxu0 %v2241
  %3254 = vmatprep.subr.mxu0 %v2238
  %3255 = vmatpush1.msra.mxu0 %v2237
  %3256 = vmatprep.subr.mxu0 %v2234
  %3257 = vmatpush1.msra.mxu0 %v2233
  %3258 = vmatprep.subr.mxu0 %v2230
  %3259 = vmatpush1.msra.mxu0 %v2229
  %3260 = vmatprep.subr.mxu0 %v2226
  %3261 = vmatpush1.msra.mxu0 %v2225
  %3262 = vmatprep.subr.mxu0 %v2222
  %3263 = vmatpush1.msra.mxu0 %v2221
  %3264 = vmatprep.subr.mxu0 0.0
  %3265 = vmatpush2.msra.mxu0 0.0
  %3266 = vmatprep.subr.mxu0 0.0
  %3267 = vmatpush2.msra.mxu0 0.0
  %3268 = vmatprep.subr.mxu0 0.0
  %3269 = vmatpush2.msra.mxu0 0.0
  %3270 = vmatprep.subr.mxu0 0.0
  %3271 = vmatpush2.msra.mxu0 0.0
  %3272 = vmatprep.subr.mxu0 0.0
  %3273 = vmatpush2.msra.mxu0 0.0
  %3274 = vmatprep.subr.mxu0 0.0
  %3275 = vmatpush2.msra.mxu0 0.0
  %3276 = vmatprep.subr.mxu0 0.0
  %3277 = vmatpush2.msra.mxu0 0.0
  %3278 = vmatprep.subr.mxu0 0.0
  %3279 = vmatpush2.msra.mxu0 0.0
  %3280 = vmatprep.subr.mxu0 0.0
  %3281 = vmatpush2.msra.mxu0 0.0
  %3282 = vmatprep.subr.mxu0 0.0
  %3283 = vmatpush2.msra.mxu0 0.0
  %3284 = vmatprep.subr.mxu0 0.0
  %3285 = vmatpush2.msra.mxu0 0.0
  %3286 = vmatprep.subr.mxu0 0.0
  %3287 = vmatpush2.msra.mxu0 0.0
  %3288 = vmatprep.subr.mxu0 0.0
  %3289 = vmatpush2.msra.mxu0 0.0
  %3290 = vmatprep.subr.mxu0 0.0
  %3291 = vmatpush2.msra.mxu0 0.0
  %3292 = vmatprep.subr.mxu0 0.0
  %3293 = vmatpush2.msra.mxu0 0.0
  %3294 = vmatprep.subr.mxu0 0.0
  %3295 = vmatpush2.msra.mxu0 0.0
  %3296 = vmatprep.mubr.f32.mxu0 0.0
  %3297 = vmatmul.mubr.f32.gmra.mxu0 %v3156
  %v3298 = vpop.f32.mrf.mxu0
  %v3299 = vadd.f32 0.0, %v3298
  %v3300 = vpop.f32.mrf.mxu0
  %v3301 = vadd.f32 0.0, %v3300
  %3302 = vdwg.mxu0
  %v3303 = vadd.f32 %v3157, %v3228
  %v3304 = vadd.f32 %v3158, %v3230
  %v3305 = vadd.f32 %v3159, %v3299
  %v3306 = vadd.f32 %v3160, %v3301
  %v3307 = vxor.u32 %v3303, 2147483648
  %v3308 = vmul.f32 %v3307, 1.442695
  %v3309 = vpow.pop %v3308
  %v3310 = vadd.f32 %v3309, 1.0
  %v3311 = vrcp.pop %v3310
  %v3312 = vmul.f32 1.0, %v3311
  %v3313 = vxor.u32 %v3304, 2147483648
  %v3314 = vmul.f32 %v3313, 1.442695
  %v3315 = vpow.pop %v3314
  %v3316 = vadd.f32 %v3315, 1.0
  %v3317 = vrcp.pop %v3316
  %v3318 = vmul.f32 1.0, %v3317
  %v3319 = vtanh.pop %v3305
  %v3320 = vxor.u32 %v3306, 2147483648
  %v3321 = vmul.f32 %v3320, 1.442695
  %v3322 = vpow.pop %v3321
  %v3323 = vadd.f32 %v3322, 1.0
  %v3324 = vrcp.pop %v3323
  %v3325 = vmul.f32 1.0, %v3324
  %v3326 = vmul.f32 %v3318, %v3154
  %v3327 = vmul.f32 %v3312, %v3319
  %v3328 = vadd.f32 %v3326, %v3327
  %v3329 = vtanh.pop %v3328
  %v3330 = vmul.f32 %v3325, %v3329
  %v3331 = vld [vmem:[%s1509] sm:$0xff]
  %v3332 = vld [vmem:[%s1509 + $0x8] sm:$0xff]
  %v3333 = vld [vmem:[%s1509 + $0x10] sm:$0xff]
  %v3334 = vld [vmem:[%s1509 + $0x18] sm:$0xff]
  %3335 = vmatprep.subr.mxu0 %v2280
  %3336 = vmatpush1.msra.mxu0 %v2279
  %3337 = vmatprep.subr.mxu0 %v2276
  %3338 = vmatpush1.msra.mxu0 %v2275
  %3339 = vmatprep.subr.mxu0 %v2272
  %3340 = vmatpush1.msra.mxu0 %v2271
  %3341 = vmatprep.subr.mxu0 %v2268
  %3342 = vmatpush1.msra.mxu0 %v2267
  %3343 = vmatprep.subr.mxu0 %v2264
  %3344 = vmatpush1.msra.mxu0 %v2263
  %3345 = vmatprep.subr.mxu0 %v2260
  %3346 = vmatpush1.msra.mxu0 %v2259
  %3347 = vmatprep.subr.mxu0 %v2256
  %3348 = vmatpush1.msra.mxu0 %v2255
  %3349 = vmatprep.subr.mxu0 %v2252
  %3350 = vmatpush1.msra.mxu0 %v2251
  %3351 = vmatprep.subr.mxu0 %v2248
  %3352 = vmatpush1.msra.mxu0 %v2247
  %3353 = vmatprep.subr.mxu0 %v2244
  %3354 = vmatpush1.msra.mxu0 %v2243
  %3355 = vmatprep.subr.mxu0 %v2240
  %3356 = vmatpush1.msra.mxu0 %v2239
  %3357 = vmatprep.subr.mxu0 %v2236
  %3358 = vmatpush1.msra.mxu0 %v2235
  %3359 = vmatprep.subr.mxu0 %v2232
  %3360 = vmatpush1.msra.mxu0 %v2231
  %3361 = vmatprep.subr.mxu0 %v2228
  %3362 = vmatpush1.msra.mxu0 %v2227
  %3363 = vmatprep.subr.mxu0 %v2224
  %3364 = vmatpush1.msra.mxu0 %v2223
  %3365 = vmatprep.subr.mxu0 %v2220
  %3366 = vmatpush1.msra.mxu0 %v2219
  %3367 = vmatprep.subr.mxu0 0.0
  %3368 = vmatpush2.msra.mxu0 0.0
  %3369 = vmatprep.subr.mxu0 0.0
  %3370 = vmatpush2.msra.mxu0 0.0
  %3371 = vmatprep.subr.mxu0 0.0
  %3372 = vmatpush2.msra.mxu0 0.0
  %3373 = vmatprep.subr.mxu0 0.0
  %3374 = vmatpush2.msra.mxu0 0.0
  %3375 = vmatprep.subr.mxu0 0.0
  %3376 = vmatpush2.msra.mxu0 0.0
  %3377 = vmatprep.subr.mxu0 0.0
  %3378 = vmatpush2.msra.mxu0 0.0
  %3379 = vmatprep.subr.mxu0 0.0
  %3380 = vmatpush2.msra.mxu0 0.0
  %3381 = vmatprep.subr.mxu0 0.0
  %3382 = vmatpush2.msra.mxu0 0.0
  %3383 = vmatprep.subr.mxu0 0.0
  %3384 = vmatpush2.msra.mxu0 0.0
  %3385 = vmatprep.subr.mxu0 0.0
  %3386 = vmatpush2.msra.mxu0 0.0
  %3387 = vmatprep.subr.mxu0 0.0
  %3388 = vmatpush2.msra.mxu0 0.0
  %3389 = vmatprep.subr.mxu0 0.0
  %3390 = vmatpush2.msra.mxu0 0.0
  %3391 = vmatprep.subr.mxu0 0.0
  %3392 = vmatpush2.msra.mxu0 0.0
  %3393 = vmatprep.subr.mxu0 0.0
  %3394 = vmatpush2.msra.mxu0 0.0
  %3395 = vmatprep.subr.mxu0 0.0
  %3396 = vmatpush2.msra.mxu0 0.0
  %3397 = vmatprep.subr.mxu0 0.0
  %3398 = vmatpush2.msra.mxu0 0.0
  %3399 = vmatprep.mubr.f32.mxu0 0.0
  %3400 = vmatmul.mubr.f32.gmra.mxu0 %v3330
  %v3401 = vpop.f32.mrf.mxu0
  %v3402 = vadd.f32 0.0, %v3401
  %v3403 = vpop.f32.mrf.mxu0
  %v3404 = vadd.f32 0.0, %v3403
  %3405 = vdwg.mxu0
  %3406 = vmatprep.subr.mxu0 %v2282
  %3407 = vmatpush1.msra.mxu0 %v2281
  %3408 = vmatprep.subr.mxu0 %v2278
  %3409 = vmatpush1.msra.mxu0 %v2277
  %3410 = vmatprep.subr.mxu0 %v2274
  %3411 = vmatpush1.msra.mxu0 %v2273
  %3412 = vmatprep.subr.mxu0 %v2270
  %3413 = vmatpush1.msra.mxu0 %v2269
  %3414 = vmatprep.subr.mxu0 %v2266
  %3415 = vmatpush1.msra.mxu0 %v2265
  %3416 = vmatprep.subr.mxu0 %v2262
  %3417 = vmatpush1.msra.mxu0 %v2261
  %3418 = vmatprep.subr.mxu0 %v2258
  %3419 = vmatpush1.msra.mxu0 %v2257
  %3420 = vmatprep.subr.mxu0 %v2254
  %3421 = vmatpush1.msra.mxu0 %v2253
  %3422 = vmatprep.subr.mxu0 %v2250
  %3423 = vmatpush1.msra.mxu0 %v2249
  %3424 = vmatprep.subr.mxu0 %v2246
  %3425 = vmatpush1.msra.mxu0 %v2245
  %3426 = vmatprep.subr.mxu0 %v2242
  %3427 = vmatpush1.msra.mxu0 %v2241
  %3428 = vmatprep.subr.mxu0 %v2238
  %3429 = vmatpush1.msra.mxu0 %v2237
  %3430 = vmatprep.subr.mxu0 %v2234
  %3431 = vmatpush1.msra.mxu0 %v2233
  %3432 = vmatprep.subr.mxu0 %v2230
  %3433 = vmatpush1.msra.mxu0 %v2229
  %3434 = vmatprep.subr.mxu0 %v2226
  %3435 = vmatpush1.msra.mxu0 %v2225
  %3436 = vmatprep.subr.mxu0 %v2222
  %3437 = vmatpush1.msra.mxu0 %v2221
  %3438 = vmatprep.subr.mxu0 0.0
  %3439 = vmatpush2.msra.mxu0 0.0
  %3440 = vmatprep.subr.mxu0 0.0
  %3441 = vmatpush2.msra.mxu0 0.0
  %3442 = vmatprep.subr.mxu0 0.0
  %3443 = vmatpush2.msra.mxu0 0.0
  %3444 = vmatprep.subr.mxu0 0.0
  %3445 = vmatpush2.msra.mxu0 0.0
  %3446 = vmatprep.subr.mxu0 0.0
  %3447 = vmatpush2.msra.mxu0 0.0
  %3448 = vmatprep.subr.mxu0 0.0
  %3449 = vmatpush2.msra.mxu0 0.0
  %3450 = vmatprep.subr.mxu0 0.0
  %3451 = vmatpush2.msra.mxu0 0.0
  %3452 = vmatprep.subr.mxu0 0.0
  %3453 = vmatpush2.msra.mxu0 0.0
  %3454 = vmatprep.subr.mxu0 0.0
  %3455 = vmatpush2.msra.mxu0 0.0
  %3456 = vmatprep.subr.mxu0 0.0
  %3457 = vmatpush2.msra.mxu0 0.0
  %3458 = vmatprep.subr.mxu0 0.0
  %3459 = vmatpush2.msra.mxu0 0.0
  %3460 = vmatprep.subr.mxu0 0.0
  %3461 = vmatpush2.msra.mxu0 0.0
  %3462 = vmatprep.subr.mxu0 0.0
  %3463 = vmatpush2.msra.mxu0 0.0
  %3464 = vmatprep.subr.mxu0 0.0
  %3465 = vmatpush2.msra.mxu0 0.0
  %3466 = vmatprep.subr.mxu0 0.0
  %3467 = vmatpush2.msra.mxu0 0.0
  %3468 = vmatprep.subr.mxu0 0.0
  %3469 = vmatpush2.msra.mxu0 0.0
  %3470 = vmatprep.mubr.f32.mxu0 0.0
  %3471 = vmatmul.mubr.f32.gmra.mxu0 %v3330
  %v3472 = vpop.f32.mrf.mxu0
  %v3473 = vadd.f32 0.0, %v3472
  %v3474 = vpop.f32.mrf.mxu0
  %v3475 = vadd.f32 0.0, %v3474
  %3476 = vdwg.mxu0
  %v3477 = vadd.f32 %v3331, %v3402
  %v3478 = vadd.f32 %v3332, %v3404
  %v3479 = vadd.f32 %v3333, %v3473
  %v3480 = vadd.f32 %v3334, %v3475
  %v3481 = vxor.u32 %v3477, 2147483648
  %v3482 = vmul.f32 %v3481, 1.442695
  %v3483 = vpow.pop %v3482
  %v3484 = vadd.f32 %v3483, 1.0
  %v3485 = vrcp.pop %v3484
  %v3486 = vmul.f32 1.0, %v3485
  %v3487 = vxor.u32 %v3478, 2147483648
  %v3488 = vmul.f32 %v3487, 1.442695
  %v3489 = vpow.pop %v3488
  %v3490 = vadd.f32 %v3489, 1.0
  %v3491 = vrcp.pop %v3490
  %v3492 = vmul.f32 1.0, %v3491
  %v3493 = vtanh.pop %v3479
  %v3494 = vxor.u32 %v3480, 2147483648
  %v3495 = vmul.f32 %v3494, 1.442695
  %v3496 = vpow.pop %v3495
  %v3497 = vadd.f32 %v3496, 1.0
  %v3498 = vrcp.pop %v3497
  %v3499 = vmul.f32 1.0, %v3498
  %v3500 = vmul.f32 %v3492, %v3328
  %v3501 = vmul.f32 %v3486, %v3493
  %v3502 = vadd.f32 %v3500, %v3501
  %v3503 = vtanh.pop %v3502
  %v3504 = vmul.f32 %v3499, %v3503
  %v3505 = vld [vmem:[%s1688] sm:$0xff]
  %v3506 = vld [vmem:[%s1688 + $0x8] sm:$0xff]
  %v3507 = vld [vmem:[%s1688 + $0x10] sm:$0xff]
  %v3508 = vld [vmem:[%s1688 + $0x18] sm:$0xff]
  %3509 = vmatprep.subr.mxu0 %v2280
  %3510 = vmatpush1.msra.mxu0 %v2279
  %3511 = vmatprep.subr.mxu0 %v2276
  %3512 = vmatpush1.msra.mxu0 %v2275
  %3513 = vmatprep.subr.mxu0 %v2272
  %3514 = vmatpush1.msra.mxu0 %v2271
  %3515 = vmatprep.subr.mxu0 %v2268
  %3516 = vmatpush1.msra.mxu0 %v2267
  %3517 = vmatprep.subr.mxu0 %v2264
  %3518 = vmatpush1.msra.mxu0 %v2263
  %3519 = vmatprep.subr.mxu0 %v2260
  %3520 = vmatpush1.msra.mxu0 %v2259
  %3521 = vmatprep.subr.mxu0 %v2256
  %3522 = vmatpush1.msra.mxu0 %v2255
  %3523 = vmatprep.subr.mxu0 %v2252
  %3524 = vmatpush1.msra.mxu0 %v2251
  %3525 = vmatprep.subr.mxu0 %v2248
  %3526 = vmatpush1.msra.mxu0 %v2247
  %3527 = vmatprep.subr.mxu0 %v2244
  %3528 = vmatpush1.msra.mxu0 %v2243
  %3529 = vmatprep.subr.mxu0 %v2240
  %3530 = vmatpush1.msra.mxu0 %v2239
  %3531 = vmatprep.subr.mxu0 %v2236
  %3532 = vmatpush1.msra.mxu0 %v2235
  %3533 = vmatprep.subr.mxu0 %v2232
  %3534 = vmatpush1.msra.mxu0 %v2231
  %3535 = vmatprep.subr.mxu0 %v2228
  %3536 = vmatpush1.msra.mxu0 %v2227
  %3537 = vmatprep.subr.mxu0 %v2224
  %3538 = vmatpush1.msra.mxu0 %v2223
  %3539 = vmatprep.subr.mxu0 %v2220
  %3540 = vmatpush1.msra.mxu0 %v2219
  %3541 = vmatprep.subr.mxu0 0.0
  %3542 = vmatpush2.msra.mxu0 0.0
  %3543 = vmatprep.subr.mxu0 0.0
  %3544 = vmatpush2.msra.mxu0 0.0
  %3545 = vmatprep.subr.mxu0 0.0
  %3546 = vmatpush2.msra.mxu0 0.0
  %3547 = vmatprep.subr.mxu0 0.0
  %3548 = vmatpush2.msra.mxu0 0.0
  %3549 = vmatprep.subr.mxu0 0.0
  %3550 = vmatpush2.msra.mxu0 0.0
  %3551 = vmatprep.subr.mxu0 0.0
  %3552 = vmatpush2.msra.mxu0 0.0
  %3553 = vmatprep.subr.mxu0 0.0
  %3554 = vmatpush2.msra.mxu0 0.0
  %3555 = vmatprep.subr.mxu0 0.0
  %3556 = vmatpush2.msra.mxu0 0.0
  %3557 = vmatprep.subr.mxu0 0.0
  %3558 = vmatpush2.msra.mxu0 0.0
  %3559 = vmatprep.subr.mxu0 0.0
  %3560 = vmatpush2.msra.mxu0 0.0
  %3561 = vmatprep.subr.mxu0 0.0
  %3562 = vmatpush2.msra.mxu0 0.0
  %3563 = vmatprep.subr.mxu0 0.0
  %3564 = vmatpush2.msra.mxu0 0.0
  %3565 = vmatprep.subr.mxu0 0.0
  %3566 = vmatpush2.msra.mxu0 0.0
  %3567 = vmatprep.subr.mxu0 0.0
  %3568 = vmatpush2.msra.mxu0 0.0
  %3569 = vmatprep.subr.mxu0 0.0
  %3570 = vmatpush2.msra.mxu0 0.0
  %3571 = vmatprep.subr.mxu0 0.0
  %3572 = vmatpush2.msra.mxu0 0.0
  %3573 = vmatprep.mubr.f32.mxu0 0.0
  %3574 = vmatmul.mubr.f32.gmra.mxu0 %v3504
  %v3575 = vpop.f32.mrf.mxu0
  %v3576 = vadd.f32 0.0, %v3575
  %v3577 = vpop.f32.mrf.mxu0
  %v3578 = vadd.f32 0.0, %v3577
  %3579 = vdwg.mxu0
  %3580 = vmatprep.subr.mxu0 %v2282
  %3581 = vmatpush1.msra.mxu0 %v2281
  %3582 = vmatprep.subr.mxu0 %v2278
  %3583 = vmatpush1.msra.mxu0 %v2277
  %3584 = vmatprep.subr.mxu0 %v2274
  %3585 = vmatpush1.msra.mxu0 %v2273
  %3586 = vmatprep.subr.mxu0 %v2270
  %3587 = vmatpush1.msra.mxu0 %v2269
  %3588 = vmatprep.subr.mxu0 %v2266
  %3589 = vmatpush1.msra.mxu0 %v2265
  %3590 = vmatprep.subr.mxu0 %v2262
  %3591 = vmatpush1.msra.mxu0 %v2261
  %3592 = vmatprep.subr.mxu0 %v2258
  %3593 = vmatpush1.msra.mxu0 %v2257
  %3594 = vmatprep.subr.mxu0 %v2254
  %3595 = vmatpush1.msra.mxu0 %v2253
  %3596 = vmatprep.subr.mxu0 %v2250
  %3597 = vmatpush1.msra.mxu0 %v2249
  %3598 = vmatprep.subr.mxu0 %v2246
  %3599 = vmatpush1.msra.mxu0 %v2245
  %3600 = vmatprep.subr.mxu0 %v2242
  %3601 = vmatpush1.msra.mxu0 %v2241
  %3602 = vmatprep.subr.mxu0 %v2238
  %3603 = vmatpush1.msra.mxu0 %v2237
  %3604 = vmatprep.subr.mxu0 %v2234
  %3605 = vmatpush1.msra.mxu0 %v2233
  %3606 = vmatprep.subr.mxu0 %v2230
  %3607 = vmatpush1.msra.mxu0 %v2229
  %3608 = vmatprep.subr.mxu0 %v2226
  %3609 = vmatpush1.msra.mxu0 %v2225
  %3610 = vmatprep.subr.mxu0 %v2222
  %3611 = vmatpush1.msra.mxu0 %v2221
  %3612 = vmatprep.subr.mxu0 0.0
  %3613 = vmatpush2.msra.mxu0 0.0
  %3614 = vmatprep.subr.mxu0 0.0
  %3615 = vmatpush2.msra.mxu0 0.0
  %3616 = vmatprep.subr.mxu0 0.0
  %3617 = vmatpush2.msra.mxu0 0.0
  %3618 = vmatprep.subr.mxu0 0.0
  %3619 = vmatpush2.msra.mxu0 0.0
  %3620 = vmatprep.subr.mxu0 0.0
  %3621 = vmatpush2.msra.mxu0 0.0
  %3622 = vmatprep.subr.mxu0 0.0
  %3623 = vmatpush2.msra.mxu0 0.0
  %3624 = vmatprep.subr.mxu0 0.0
  %3625 = vmatpush2.msra.mxu0 0.0
  %3626 = vmatprep.subr.mxu0 0.0
  %3627 = vmatpush2.msra.mxu0 0.0
  %3628 = vmatprep.subr.mxu0 0.0
  %3629 = vmatpush2.msra.mxu0 0.0
  %3630 = vmatprep.subr.mxu0 0.0
  %3631 = vmatpush2.msra.mxu0 0.0
  %3632 = vmatprep.subr.mxu0 0.0
  %3633 = vmatpush2.msra.mxu0 0.0
  %3634 = vmatprep.subr.mxu0 0.0
  %3635 = vmatpush2.msra.mxu0 0.0
  %3636 = vmatprep.subr.mxu0 0.0
  %3637 = vmatpush2.msra.mxu0 0.0
  %3638 = vmatprep.subr.mxu0 0.0
  %3639 = vmatpush2.msra.mxu0 0.0
  %3640 = vmatprep.subr.mxu0 0.0
  %3641 = vmatpush2.msra.mxu0 0.0
  %3642 = vmatprep.subr.mxu0 0.0
  %3643 = vmatpush2.msra.mxu0 0.0
  %3644 = vmatprep.mubr.f32.mxu0 0.0
  %3645 = vmatmul.mubr.f32.gmra.mxu0 %v3504
  %v3646 = vpop.f32.mrf.mxu0
  %v3647 = vadd.f32 0.0, %v3646
  %v3648 = vpop.f32.mrf.mxu0
  %v3649 = vadd.f32 0.0, %v3648
  %3650 = vdwg.mxu0
  %v3651 = vadd.f32 %v3505, %v3576
  %v3652 = vadd.f32 %v3506, %v3578
  %v3653 = vadd.f32 %v3507, %v3647
  %v3654 = vadd.f32 %v3508, %v3649
  %v3655 = vxor.u32 %v3651, 2147483648
  %v3656 = vmul.f32 %v3655, 1.442695
  %v3657 = vpow.pop %v3656
  %v3658 = vadd.f32 %v3657, 1.0
  %v3659 = vrcp.pop %v3658
  %v3660 = vmul.f32 1.0, %v3659
  %v3661 = vxor.u32 %v3652, 2147483648
  %v3662 = vmul.f32 %v3661, 1.442695
  %v3663 = vpow.pop %v3662
  %v3664 = vadd.f32 %v3663, 1.0
  %v3665 = vrcp.pop %v3664
  %v3666 = vmul.f32 1.0, %v3665
  %v3667 = vtanh.pop %v3653
  %v3668 = vxor.u32 %v3654, 2147483648
  %v3669 = vmul.f32 %v3668, 1.442695
  %v3670 = vpow.pop %v3669
  %v3671 = vadd.f32 %v3670, 1.0
  %v3672 = vrcp.pop %v3671
  %v3673 = vmul.f32 1.0, %v3672
  %v3674 = vmul.f32 %v3666, %v3502
  %v3675 = vmul.f32 %v3660, %v3667
  %v3676 = vadd.f32 %v3674, %v3675
  %v3677 = vtanh.pop %v3676
  %v3678 = vmul.f32 %v3673, %v3677
  %3679 = vst [vmem:[%s2283] sm:$0xff] %v3678
  %3680 = vst [vmem:[%s2285] sm:$0xff] %v3676
  // Predicated region
  $region42: #{lstm_model_forward.1} parent=0 // pred_check
    %p3681 = pneg %p32
  $region43: #{lstm_model_forward.1} parent=0 // pred_check_branch
    %3683 = sbr.rel (%p3681) target = $region45
  $region44: #{lstm_model_forward.1} parent=0 // pred_region
    %v3684 = vld [vmem:[%s7] sm:$0xff]
    %v3685 = vld [vmem:[%s7 + $0x8] sm:$0xff]
    %v3686 = vld [vmem:[%s7 + $0x10] sm:$0xff]
    %v3687 = vld [vmem:[%s7 + $0x18] sm:$0xff]
    %v3688 = vld [vmem:[%s7 + $0x20] sm:$0xff]
    %v3689 = vld [vmem:[%s7 + $0x28] sm:$0xff]
    %v3690 = vld [vmem:[%s7 + $0x30] sm:$0xff]
    %v3691 = vld [vmem:[%s7 + $0x38] sm:$0xff]
    %v3692 = vld [vmem:[%s7 + $0x40] sm:$0xff]
    %v3693 = vld [vmem:[%s7 + $0x48] sm:$0xff]
    %v3694 = vld [vmem:[%s7 + $0x50] sm:$0xff]
    %v3695 = vld [vmem:[%s7 + $0x58] sm:$0xff]
    %v3696 = vld [vmem:[%s7 + $0x60] sm:$0xff]
    %v3697 = vld [vmem:[%s7 + $0x68] sm:$0xff]
    %v3698 = vld [vmem:[%s7 + $0x70] sm:$0xff]
    %v3699 = vld [vmem:[%s7 + $0x78] sm:$0xff]
    %v3700 = vld [vmem:[%s8] sm:$0x1]
    %v3702 = vlaneseq
    %v3703 = vshrl.u32 %v3702, 7
    %v3704 = vsub.s32 0, %v3703
    %v3705 = vrot.slane %v3700, %v3704
    %3707 = vmatprep.subr.mxu0 0.0
    %3708 = vmatpush1.msra.mxu0 %v3699
    %3709 = vmatprep.subr.mxu0 0.0
    %3710 = vmatpush1.msra.mxu0 %v3698
    %3711 = vmatprep.subr.mxu0 0.0
    %3712 = vmatpush1.msra.mxu0 %v3697
    %3713 = vmatprep.subr.mxu0 0.0
    %3714 = vmatpush1.msra.mxu0 %v3696
    %3715 = vmatprep.subr.mxu0 0.0
    %3716 = vmatpush1.msra.mxu0 %v3695
    %3717 = vmatprep.subr.mxu0 0.0
    %3718 = vmatpush1.msra.mxu0 %v3694
    %3719 = vmatprep.subr.mxu0 0.0
    %3720 = vmatpush1.msra.mxu0 %v3693
    %3721 = vmatprep.subr.mxu0 0.0
    %3722 = vmatpush1.msra.mxu0 %v3692
    %3723 = vmatprep.subr.mxu0 0.0
    %3724 = vmatpush1.msra.mxu0 %v3691
    %3725 = vmatprep.subr.mxu0 0.0
    %3726 = vmatpush1.msra.mxu0 %v3690
    %3727 = vmatprep.subr.mxu0 0.0
    %3728 = vmatpush1.msra.mxu0 %v3689
    %3729 = vmatprep.subr.mxu0 0.0
    %3730 = vmatpush1.msra.mxu0 %v3688
    %3731 = vmatprep.subr.mxu0 0.0
    %3732 = vmatpush1.msra.mxu0 %v3687
    %3733 = vmatprep.subr.mxu0 0.0
    %3734 = vmatpush1.msra.mxu0 %v3686
    %3735 = vmatprep.subr.mxu0 0.0
    %3736 = vmatpush1.msra.mxu0 %v3685
    %3737 = vmatprep.subr.mxu0 0.0
    %3738 = vmatpush1.msra.mxu0 %v3684
    %3739 = vmatprep.subr.mxu0 0.0
    %3740 = vmatpush2.msra.mxu0 0.0
    %3741 = vmatprep.subr.mxu0 0.0
    %3742 = vmatpush2.msra.mxu0 0.0
    %3743 = vmatprep.subr.mxu0 0.0
    %3744 = vmatpush2.msra.mxu0 0.0
    %3745 = vmatprep.subr.mxu0 0.0
    %3746 = vmatpush2.msra.mxu0 0.0
    %3747 = vmatprep.subr.mxu0 0.0
    %3748 = vmatpush2.msra.mxu0 0.0
    %3749 = vmatprep.subr.mxu0 0.0
    %3750 = vmatpush2.msra.mxu0 0.0
    %3751 = vmatprep.subr.mxu0 0.0
    %3752 = vmatpush2.msra.mxu0 0.0
    %3753 = vmatprep.subr.mxu0 0.0
    %3754 = vmatpush2.msra.mxu0 0.0
    %3755 = vmatprep.subr.mxu0 0.0
    %3756 = vmatpush2.msra.mxu0 0.0
    %3757 = vmatprep.subr.mxu0 0.0
    %3758 = vmatpush2.msra.mxu0 0.0
    %3759 = vmatprep.subr.mxu0 0.0
    %3760 = vmatpush2.msra.mxu0 0.0
    %3761 = vmatprep.subr.mxu0 0.0
    %3762 = vmatpush2.msra.mxu0 0.0
    %3763 = vmatprep.subr.mxu0 0.0
    %3764 = vmatpush2.msra.mxu0 0.0
    %3765 = vmatprep.subr.mxu0 0.0
    %3766 = vmatpush2.msra.mxu0 0.0
    %3767 = vmatprep.subr.mxu0 0.0
    %3768 = vmatpush2.msra.mxu0 0.0
    %3769 = vmatprep.subr.mxu0 0.0
    %3770 = vmatpush2.msra.mxu0 0.0
    %3771 = vmatprep.mubr.f32.mxu0 0.0
    %3772 = vmatmul.mubr.f32.gmra.mxu0 %v3678
    %v3773 = vpop.f32.mrf.mxu0
    %v3774 = vadd.f32 %v3705, %v3773
    %v3775 = vpop.f32.mrf.mxu0
    %3776 = vdwg.mxu0
    %3777 = vst [vmem:[%s9] sm:$0xff] %v3774
  $region45: #{lstm_model_forward.1} parent=0 // pred_fallthru
    _
  // Predicated region
  $region46: #{lstm_model_forward.1} parent=0 // pred_check
    _
  $region47: #{lstm_model_forward.1} parent=0 // pred_check_branch
    %3779 = sbr.rel (0) target = $region49
  $region48: #{lstm_model_forward.1} parent=0 // pred_region
    _
  $region49: #{lstm_model_forward.1} parent=0 // pred_fallthru
    _
  // Predicated region
  $region50: #{lstm_model_forward.1} parent=0 // pred_check
    _
  $region51: #{lstm_model_forward.1} parent=0 // pred_check_branch
    %3781 = sbr.rel (0) target = $region53
  $region52: #{lstm_model_forward.1} parent=0 // pred_region
    _
  $region53: #{lstm_model_forward.1} parent=0 // pred_fallthru
    _

</llo_original>
